<compile_context>
chip_gen: v5e
topology: v5e:2x2
jax: 0.10.0
libtpu: 0.0.40
codegen_flags: <defaults>
</compile_context>

<pallas_src>
import functools

import jax
import jax.numpy as jnp
from jax.experimental import pallas as pl
from jax.experimental.pallas import tpu as pltpu

N_DISP = 8   # disparity-shift candidates in the synthetic correlation volume
FEAT = 32    # synthetic feature channels


# ----------------------------------------------------------------------------
# Fused kernel: feature conv -> streamed correlation+heads -> confidence
# ----------------------------------------------------------------------------
def _fused_kernel(lx_ref, rx_ref, wtab_ref, decr_ref, decs_ref, hsm_ref,
                  flow1_ref, flow2_ref, disp_ref, conf_ref,
                  *, n_disp, feat, n_chan, feat_dtype):
    TH = lx_ref.shape[2]   # row-tile height
    WW = lx_ref.shape[3]   # image width (lane axis)

    # ---- 1x1 feature conv.  Normalization (and, for the left image, the 1/F
    # correlation mean factor) is already folded into the weight table.
    # Feature layout (TH, F, WW): F on sublanes, W lane-dense.
    wtab = wtab_ref[...]                               # (F, 2C+2) = [wl|bl|wr|br]
    wl = wtab[:, 0:n_chan]
    bl = wtab[:, n_chan:n_chan + 1]
    wr = wtab[:, n_chan + 1:2 * n_chan + 1]
    br = wtab[:, 2 * n_chan + 1:2 * n_chan + 2]

    def features(x_ref, w, b):
        acc = jnp.broadcast_to(b[None, :, :], (TH, feat, WW))
        for c in range(n_chan):                        # C is tiny (3): VPU FMAs
            xc = x_ref[0, c, :, :]                     # (TH, WW)
            wc = w[:, c:c + 1]                         # (F, 1)
            acc = acc + xc[:, None, :] * wc[None, :, :]
        return acc.astype(feat_dtype)                  # bf16 on v6e/v7x, f32 on v5e

    f1 = features(lx_ref, wl, bl)
    f2 = features(rx_ref, wr, br)

    lane = jax.lax.broadcasted_iota(jnp.int32, (TH, WW), 1)
    zero = jnp.zeros((TH, WW), jnp.float32)

    # SMEM head table: [w1 (D,2) | b1 (2) | w2' (D,2) | b2' (2)], row-major.
    # (w2'/b2' already include head 1, i.e. flow2 = corr @ w2' + b2'.)
    off_w1 = 0
    off_b1 = 2 * n_disp
    off_w2 = 2 * n_disp + 2
    off_b2 = off_w2 + 2 * n_disp

    a10 = jnp.full((TH, WW), hsm_ref[off_b1 + 0], jnp.float32)   # flow1 ch0
    a11 = jnp.full((TH, WW), hsm_ref[off_b1 + 1], jnp.float32)   # flow1 ch1
    a20 = jnp.full((TH, WW), hsm_ref[off_b2 + 0], jnp.float32)   # flow2 ch0
    a21 = jnp.full((TH, WW), hsm_ref[off_b2 + 1], jnp.float32)   # flow2 ch1
    csum = zero                                                  # conf accum

    # ---- streamed disparity loop: produce cd, immediately fold it into the 5
    # accumulators, discard it.  Heads/conf accumulate in f32 regardless of
    # the feature dtype ("keep head/conf math in f32").
    for d in range(n_disp):
        f2s = f2 if d == 0 else pltpu.roll(f2, shift=d, axis=2)  # XLU lane roll
        cd = jnp.sum(f1 * f2s, axis=1).astype(jnp.float32)       # sublane reduce
        if d > 0:
            cd = jnp.where(lane >= d, cd, zero)                  # zero wrapped cols
        a10 = a10 + cd * hsm_ref[off_w1 + 2 * d + 0]
        a11 = a11 + cd * hsm_ref[off_w1 + 2 * d + 1]
        a20 = a20 + cd * hsm_ref[off_w2 + 2 * d + 0]
        a21 = a21 + cd * hsm_ref[off_w2 + 2 * d + 1]
        csum = csum + cd

    # lane-dense NCHW output slabs
    flow1_ref[0, 0, :, :] = a10
    flow1_ref[0, 1, :, :] = a11
    flow2_ref[0, 0, :, :] = a20
    flow2_ref[0, 1, :, :] = a21
    disp_ref[0, 0, :, :] = a20               # pred_disp = flow2[:, 0]

    # ---- confidence directly at quarter resolution.
    # F.interpolate(scale_factor=0.5, nearest) == pick rows 2i / cols 2j; done
    # here with two tiny 0/1 selection matmuls on the otherwise idle MXU
    # (robust lowering, no strided value slices).  1/n_disp is folded into
    # decs, so sigmoid sees the mean over disparity candidates.
    half_rows = jnp.dot(decr_ref[...], csum,
                        preferred_element_type=jnp.float32)      # (TH/2, WW)
    quarter = jnp.dot(half_rows, decs_ref[...],
                      preferred_element_type=jnp.float32)        # (TH/2, WW/2)
    conf_ref[0, 0, :, :] = jax.nn.sigmoid(quarter)


# ----------------------------------------------------------------------------
# Wrapper (semantics of CREStereoMF.forward)
# ----------------------------------------------------------------------------
def _pick_feature_dtype():
    """bf16 intermediates on v6e/v7x (bf16 VPU/XLU); f32 elsewhere (v5e etc)."""
    try:
        kind = jax.devices()[0].device_kind.lower()
    except Exception:  # pragma: no cover
        return jnp.float32
    if "v6" in kind or "v7" in kind:
        return jnp.bfloat16
    return jnp.float32


def _pick_row_tile(h):
    for t in (64, 48, 32, 16):
        if h % t == 0:
            return t
    return h


def _estimate_vmem_bytes(n_chan, feat, row_tile, width, feat_bytes):
    th, w = row_tile, width
    per_tile = (
        2 * n_chan * th * w * 4 * 2          # lx / rx blocks, double-buffered
        + 5 * th * w * 4 * 2                 # flow1/flow2/disp out, double-buffered
        + (th // 2) * (w // 2) * 4 * 2       # conf out
        + 3 * th * feat * w * feat_bytes     # f1, f2, one rolled f2
        + 8 * th * w * 4                     # accumulators / cd / iota / temps
        + w * (w // 2) * 4 * 2               # column-decimation matrix
    )
    est = int(per_tile * 1.4) + (4 << 20)
    return int(min(64 << 20, max(32 << 20, est)))   # <= 64 MiB: safe on all gens


def crestereo_mf_forward(left, right, params, *, row_tile=None,
                         feature_dtype=None, vmem_limit_bytes=None):
    # left, right: NCHW float32 (same convention as the PyTorch module).
    B, C, H, W = left.shape
    F = params["w_feat"].shape[1]
    D = params["w_flow1"].shape[0]
    assert params["w_feat"].shape[0] == C

    if feature_dtype is None:
        feature_dtype = _pick_feature_dtype()
    if row_tile is None:
        row_tile = _pick_row_tile(H)

    assert H % 2 == 0 and W % 2 == 0
    assert H % row_tile == 0 and row_tile % 2 == 0
    assert (row_tile % 8 == 0) or (row_tile == H)
    assert ((row_tile // 2) % 8 == 0) or (row_tile == H)   # conf block rows

    left = left.astype(jnp.float32)
    right = right.astype(jnp.float32)

    # Global min/max (tiny XLA reductions) folded into the feature conv:
    #   x_norm = (x - mn) * s,  s = 1/(mx - mn)
    #   x_norm @ W + b  ==  x @ (s*W) + (b - mn*s*sum_c W[c,:])
    # The 1/F correlation-mean factor is additionally folded into the LEFT
    # feature weights (corr scales linearly in f1).
    eps = jnp.float32(1e-12)   # guard constant-image degenerate case
    l_min, l_max = jnp.min(left), jnp.max(left)
    r_min, r_max = jnp.min(right), jnp.max(right)
    s_l = 1.0 / (l_max - l_min + eps)
    s_r = 1.0 / (r_max - r_min + eps)

    w_feat = params["w_feat"].astype(jnp.float32)             # (C, F)
    b_feat = params["b_feat"].astype(jnp.float32)             # (F,)
    col_sum = jnp.sum(w_feat, axis=0)                         # (F,)
    inv_f = jnp.float32(1.0 / F)
    wl_t = (w_feat * (s_l * inv_f)).T                         # (F, C)
    bl = ((b_feat - l_min * s_l * col_sum) * inv_f).reshape(F, 1)
    wr_t = (w_feat * s_r).T                                   # (F, C)
    br = (b_feat - r_min * s_r * col_sum).reshape(F, 1)
    wtab = jnp.concatenate([wl_t, bl, wr_t, br], axis=1)      # (F, 2C+2)

    # Flow heads: pre-fold head 2 (flow2 = flow1 + corr@w2 + b2  ==  corr@(w1+w2)
    # + (b1+b2)), pack everything into one small SMEM scalar table.
    w1 = params["w_flow1"].astype(jnp.float32)                # (D, 2)
    b1 = params["b_flow1"].astype(jnp.float32)                # (2,)
    w2f = w1 + params["w_flow2"].astype(jnp.float32)
    b2f = b1 + params["b_flow2"].astype(jnp.float32)
    hsm = jnp.concatenate(
        [w1.reshape(-1), b1, w2f.reshape(-1), b2f]).astype(jnp.float32)

    # Selection matrices for the in-kernel nearest 0.5x decimation (constants,
    # folded by XLA).  1/D mean factor folded into dec_s.
    th_half, w_half = row_tile // 2, W // 2
    dec_r = (jnp.arange(row_tile)[None, :] ==
             (2 * jnp.arange(th_half))[:, None]).astype(jnp.float32)   # (th/2, th)
    dec_s = ((jnp.arange(W)[:, None] ==
              (2 * jnp.arange(w_half))[None, :]).astype(jnp.float32)
             * jnp.float32(1.0 / D))                                   # (W, W/2)

    feat_bytes = 2 if feature_dtype == jnp.bfloat16 else 4
    if vmem_limit_bytes is None:
        vmem_limit_bytes = _estimate_vmem_bytes(C, F, row_tile, W, feat_bytes)

    grid = (B, H // row_tile)   # v7x: keep B*(H/row_tile) even and >= 2 (megacore)
    kern = functools.partial(_fused_kernel, n_disp=D, feat=F, n_chan=C,
                             feat_dtype=feature_dtype)

    img_spec = pl.BlockSpec((1, C, row_tile, W), lambda b, i: (b, 0, i, 0))
    wtab_spec = pl.BlockSpec((F, 2 * C + 2), lambda b, i: (0, 0))
    decr_spec = pl.BlockSpec((th_half, row_tile), lambda b, i: (0, 0))
    decs_spec = pl.BlockSpec((W, w_half), lambda b, i: (0, 0))
    smem_spec = pl.BlockSpec(memory_space=pltpu.MemorySpace.SMEM)
    out2_spec = pl.BlockSpec((1, 2, row_tile, W), lambda b, i: (b, 0, i, 0))
    out1_spec = pl.BlockSpec((1, 1, row_tile, W), lambda b, i: (b, 0, i, 0))
    conf_spec = pl.BlockSpec((1, 1, th_half, w_half), lambda b, i: (b, 0, i, 0))

    flow1, flow2, pred_disp, conf = pl.pallas_call(
        kern,
        out_shape=(
            jax.ShapeDtypeStruct((B, 2, H, W), jnp.float32),
            jax.ShapeDtypeStruct((B, 2, H, W), jnp.float32),
            jax.ShapeDtypeStruct((B, 1, H, W), jnp.float32),
            jax.ShapeDtypeStruct((B, 1, H // 2, W // 2), jnp.float32),
        ),
        grid=grid,
        in_specs=[img_spec, img_spec, wtab_spec, decr_spec, decs_spec, smem_spec],
        out_specs=(out2_spec, out2_spec, out1_spec, conf_spec),
        compiler_params=pltpu.CompilerParams(
            dimension_semantics=("parallel", "parallel"),
            vmem_limit_bytes=int(vmem_limit_bytes),
        ),
    )(left, right, wtab, dec_r, dec_s, hsm)

    return {
        "disp_confidence": conf,
        "flow_preds": [flow1, flow2],
        "pred_disp": pred_disp,
    }


# ----------------------------------------------------------------------------
# Pure-JAX reference (same synthetic net) for a correctness check.
# ----------------------------------------------------------------------------
def _reference_forward(left, right, params):
    eps = 1e-12
    ln = (left - left.min()) / (left.max() - left.min() + eps)
    rn = (right - right.min()) / (right.max() - right.min() + eps)
    l = jnp.transpose(ln, (0, 2, 3, 1))
    r = jnp.transpose(rn, (0, 2, 3, 1))
    f1 = l @ params["w_feat"] + params["b_feat"]
    f2 = r @ params["w_feat"] + params["b_feat"]
    B, H, W, _ = f1.shape
    D = params["w_flow1"].shape[0]
    corr = []
    for d in range(D):
        f2s = jnp.pad(f2, ((0, 0), (0, 0), (d, 0), (0, 0)))[:, :, :W, :]
        corr.append(jnp.mean(f1 * f2s, axis=-1))
    corr = jnp.stack(corr, axis=-1)                                  # (B,H,W,D)
    flow1 = corr @ params["w_flow1"] + params["b_flow1"]
    flow2 = flow1 + corr @ params["w_flow2"] + params["b_flow2"]
    flow1 = jnp.transpose(flow1, (0, 3, 1, 2))
    flow2 = jnp.transpose(flow2, (0, 3, 1, 2))
    conf = jax.nn.sigmoid(jnp.mean(corr, axis=-1))[:, None, ::2, ::2]
    return {"disp_confidence": conf, "flow_preds": [flow1, flow2],
            "pred_disp": flow2[:, 0:1]}


if __name__ == "__main__":
    key = jax.random.PRNGKey(0)
    k1, k2, k3, k4, k5 = jax.random.split(key, 5)

    B, C, H, W = 2, 3, 16, 128   # W multiple of 128 -> lane-dense tiles
    left = jax.random.normal(k1, (B, C, H, W), jnp.float32)
    right = jax.random.normal(k2, (B, C, H, W), jnp.float32)

    params = {
        "w_feat": 0.1 * jax.random.normal(k3, (C, FEAT), jnp.float32),
        "b_feat": jnp.zeros((FEAT,), jnp.float32),
        "w_flow1": 0.1 * jax.random.normal(k4, (N_DISP, 2), jnp.float32),
        "b_flow1": jnp.zeros((2,), jnp.float32),
        "w_flow2": 0.1 * jax.random.normal(k5, (N_DISP, 2), jnp.float32),
        "b_flow2": jnp.zeros((2,), jnp.float32),
    }

    ref = _reference_forward(left, right, params)

    def check(outputs, tol):
        # shape checks (torch-compatible conventions)
        assert outputs["pred_disp"].shape == (B, 1, H, W)
        assert outputs["disp_confidence"].shape == (B, 1, H // 2, W // 2)
        assert len(outputs["flow_preds"]) == 2
        assert outputs["flow_preds"][-1].shape == (B, 2, H, W)
        for got, want in [
            (outputs["flow_preds"][0], ref["flow_preds"][0]),
            (outputs["flow_preds"][1], ref["flow_preds"][1]),
            (outputs["pred_disp"], ref["pred_disp"]),
            (outputs["disp_confidence"], ref["disp_confidence"]),
        ]:
            err = float(jnp.max(jnp.abs(got - want)))
            assert err < tol, f"mismatch vs reference: {err} (tol {tol})"

    # f32 intermediates: correctness gate (and the production path on v5e).
    fwd_f32 = jax.jit(functools.partial(
        crestereo_mf_forward, row_tile=16, feature_dtype=jnp.float32))
    out_f32 = fwd_f32(left, right, params)
    jax.block_until_ready(out_f32)
    check(out_f32, 1e-3)

    # bf16 intermediates: the v6e/v7x perf path (~2x VALU/XLU, half the VMEM of
    # f1/f2/rolled-f2; head/conf math stays f32).  Validated opportunistically:
    # if this Mosaic build rejects packed-bf16 rolls/reductions we skip it, the
    # f32 path above remains the fully-checked result.
    out_bf16 = None
    try:
        fwd_bf16 = jax.jit(functools.partial(
            crestereo_mf_forward, row_tile=16, feature_dtype=jnp.bfloat16))
        out_bf16 = fwd_bf16(left, right, params)
        jax.block_until_ready(out_bf16)
    except Exception as e:  # pragma: no cover
        print("NOTE: bf16 feature path skipped on this backend: "
              f"{type(e).__name__}")
    if out_bf16 is not None:
        check(out_bf16, 2e-2)

    print("KERNEL_OK")
</pallas_src>

<mosaic_0001>
module attributes {stable_mosaic.version = 11 : i64} {
  func.func @_fused_kernel(%arg0: i32, %arg1: i32, %arg2: memref<1x3x16x128xf32, #tpu.memory_space<vmem>>, %arg3: memref<1x3x16x128xf32, #tpu.memory_space<vmem>>, %arg4: memref<32x8xf32, #tpu.memory_space<vmem>>, %arg5: memref<8x16xf32, #tpu.memory_space<vmem>>, %arg6: memref<128x64xf32, #tpu.memory_space<vmem>>, %arg7: memref<36xf32, #tpu.memory_space<smem>>, %arg8: memref<1x2x16x128xf32, #tpu.memory_space<vmem>>, %arg9: memref<1x2x16x128xf32, #tpu.memory_space<vmem>>, %arg10: memref<1x1x16x128xf32, #tpu.memory_space<vmem>>, %arg11: memref<1x1x8x64xf32, #tpu.memory_space<vmem>>) attributes {dimension_semantics = [#tpu.dimension_semantics<parallel>, #tpu.dimension_semantics<parallel>], iteration_bounds = array<i64: 2, 1>, scalar_prefetch = 0 : i64, scratch_operands = 0 : i64, tpu.core_type = #tpu.core_type<tc>, window_params = [{transform_indices = @transform_0, window_bounds = array<i64: 1, 3, 16, 128>}, {transform_indices = @transform_1, window_bounds = array<i64: 1, 3, 16, 128>}, {pipeline_mode = #tpu.pipeline_mode<synchronous>, transform_indices = @transform_2, window_bounds = array<i64: 32, 8>}, {pipeline_mode = #tpu.pipeline_mode<synchronous>, transform_indices = @transform_3, window_bounds = array<i64: 8, 16>}, {pipeline_mode = #tpu.pipeline_mode<synchronous>, transform_indices = @transform_4, window_bounds = array<i64: 128, 64>}, {transform_indices = @transform_5, window_bounds = array<i64: 36>}, {transform_indices = @transform_6, window_bounds = array<i64: 1, 2, 16, 128>}, {transform_indices = @transform_7, window_bounds = array<i64: 1, 2, 16, 128>}, {transform_indices = @transform_8, window_bounds = array<i64: 1, 1, 16, 128>}, {transform_indices = @transform_9, window_bounds = array<i64: 1, 1, 8, 64>}]} {
    %c0 = arith.constant 0 : index
    %c0_0 = arith.constant 0 : index
    %0 = vector.load %arg4[%c0, %c0_0] : memref<32x8xf32, #tpu.memory_space<vmem>>, vector<32x8xf32>
    %1 = vector.extract_strided_slice %0 {offsets = [0, 0], sizes = [32, 3], strides = [1, 1]} : vector<32x8xf32> to vector<32x3xf32>
    %2 = vector.extract_strided_slice %0 {offsets = [0, 3], sizes = [32, 1], strides = [1, 1]} : vector<32x8xf32> to vector<32x1xf32>
    %3 = vector.extract_strided_slice %0 {offsets = [0, 4], sizes = [32, 3], strides = [1, 1]} : vector<32x8xf32> to vector<32x3xf32>
    %4 = vector.extract_strided_slice %0 {offsets = [0, 7], sizes = [32, 1], strides = [1, 1]} : vector<32x8xf32> to vector<32x1xf32>
    %5 = vector.shape_cast %2 : vector<32x1xf32> to vector<1x32x1xf32>
    %6 = vector.shape_cast %5 : vector<1x32x1xf32> to vector<1x32x1xf32>
    %7 = vector.broadcast %6 : vector<1x32x1xf32> to vector<16x32x128xf32>
    %c0_1 = arith.constant 0 : index
    %c0_2 = arith.constant 0 : index
    %c0_3 = arith.constant 0 : index
    %c0_4 = arith.constant 0 : index
    %8 = vector.load %arg2[%c0_1, %c0_2, %c0_3, %c0_4] : memref<1x3x16x128xf32, #tpu.memory_space<vmem>>, vector<1x1x16x128xf32>
    %9 = vector.shape_cast %8 : vector<1x1x16x128xf32> to vector<16x128xf32>
    %10 = vector.extract_strided_slice %1 {offsets = [0, 0], sizes = [32, 1], strides = [1, 1]} : vector<32x3xf32> to vector<32x1xf32>
    %11 = vector.shape_cast %9 : vector<16x128xf32> to vector<16x1x128xf32>
    %12 = vector.shape_cast %10 : vector<32x1xf32> to vector<1x32x1xf32>
    %13 = vector.broadcast %11 : vector<16x1x128xf32> to vector<16x32x128xf32>
    %14 = vector.broadcast %12 : vector<1x32x1xf32> to vector<16x32x128xf32>
    %15 = arith.mulf %13, %14 : vector<16x32x128xf32>
    %16 = arith.addf %7, %15 : vector<16x32x128xf32>
    %c0_5 = arith.constant 0 : index
    %c1 = arith.constant 1 : index
    %c0_6 = arith.constant 0 : index
    %c0_7 = arith.constant 0 : index
    %17 = vector.load %arg2[%c0_5, %c1, %c0_6, %c0_7] : memref<1x3x16x128xf32, #tpu.memory_space<vmem>>, vector<1x1x16x128xf32>
    %18 = vector.shape_cast %17 : vector<1x1x16x128xf32> to vector<16x128xf32>
    %19 = vector.extract_strided_slice %1 {offsets = [0, 1], sizes = [32, 1], strides = [1, 1]} : vector<32x3xf32> to vector<32x1xf32>
    %20 = vector.shape_cast %18 : vector<16x128xf32> to vector<16x1x128xf32>
    %21 = vector.shape_cast %19 : vector<32x1xf32> to vector<1x32x1xf32>
    %22 = vector.broadcast %20 : vector<16x1x128xf32> to vector<16x32x128xf32>
    %23 = vector.broadcast %21 : vector<1x32x1xf32> to vector<16x32x128xf32>
    %24 = arith.mulf %22, %23 : vector<16x32x128xf32>
    %25 = arith.addf %16, %24 : vector<16x32x128xf32>
    %c0_8 = arith.constant 0 : index
    %c2 = arith.constant 2 : index
    %c0_9 = arith.constant 0 : index
    %c0_10 = arith.constant 0 : index
    %26 = vector.load %arg2[%c0_8, %c2, %c0_9, %c0_10] : memref<1x3x16x128xf32, #tpu.memory_space<vmem>>, vector<1x1x16x128xf32>
    %27 = vector.shape_cast %26 : vector<1x1x16x128xf32> to vector<16x128xf32>
    %28 = vector.extract_strided_slice %1 {offsets = [0, 2], sizes = [32, 1], strides = [1, 1]} : vector<32x3xf32> to vector<32x1xf32>
    %29 = vector.shape_cast %27 : vector<16x128xf32> to vector<16x1x128xf32>
    %30 = vector.shape_cast %28 : vector<32x1xf32> to vector<1x32x1xf32>
    %31 = vector.broadcast %29 : vector<16x1x128xf32> to vector<16x32x128xf32>
    %32 = vector.broadcast %30 : vector<1x32x1xf32> to vector<16x32x128xf32>
    %33 = arith.mulf %31, %32 : vector<16x32x128xf32>
    %34 = arith.addf %25, %33 : vector<16x32x128xf32>
    %35 = vector.shape_cast %4 : vector<32x1xf32> to vector<1x32x1xf32>
    %36 = vector.shape_cast %35 : vector<1x32x1xf32> to vector<1x32x1xf32>
    %37 = vector.broadcast %36 : vector<1x32x1xf32> to vector<16x32x128xf32>
    %c0_11 = arith.constant 0 : index
    %c0_12 = arith.constant 0 : index
    %c0_13 = arith.constant 0 : index
    %c0_14 = arith.constant 0 : index
    %38 = vector.load %arg3[%c0_11, %c0_12, %c0_13, %c0_14] : memref<1x3x16x128xf32, #tpu.memory_space<vmem>>, vector<1x1x16x128xf32>
    %39 = vector.shape_cast %38 : vector<1x1x16x128xf32> to vector<16x128xf32>
    %40 = vector.extract_strided_slice %3 {offsets = [0, 0], sizes = [32, 1], strides = [1, 1]} : vector<32x3xf32> to vector<32x1xf32>
    %41 = vector.shape_cast %39 : vector<16x128xf32> to vector<16x1x128xf32>
    %42 = vector.shape_cast %40 : vector<32x1xf32> to vector<1x32x1xf32>
    %43 = vector.broadcast %41 : vector<16x1x128xf32> to vector<16x32x128xf32>
    %44 = vector.broadcast %42 : vector<1x32x1xf32> to vector<16x32x128xf32>
    %45 = arith.mulf %43, %44 : vector<16x32x128xf32>
    %46 = arith.addf %37, %45 : vector<16x32x128xf32>
    %c0_15 = arith.constant 0 : index
    %c1_16 = arith.constant 1 : index
    %c0_17 = arith.constant 0 : index
    %c0_18 = arith.constant 0 : index
    %47 = vector.load %arg3[%c0_15, %c1_16, %c0_17, %c0_18] : memref<1x3x16x128xf32, #tpu.memory_space<vmem>>, vector<1x1x16x128xf32>
    %48 = vector.shape_cast %47 : vector<1x1x16x128xf32> to vector<16x128xf32>
    %49 = vector.extract_strided_slice %3 {offsets = [0, 1], sizes = [32, 1], strides = [1, 1]} : vector<32x3xf32> to vector<32x1xf32>
    %50 = vector.shape_cast %48 : vector<16x128xf32> to vector<16x1x128xf32>
    %51 = vector.shape_cast %49 : vector<32x1xf32> to vector<1x32x1xf32>
    %52 = vector.broadcast %50 : vector<16x1x128xf32> to vector<16x32x128xf32>
    %53 = vector.broadcast %51 : vector<1x32x1xf32> to vector<16x32x128xf32>
    %54 = arith.mulf %52, %53 : vector<16x32x128xf32>
    %55 = arith.addf %46, %54 : vector<16x32x128xf32>
    %c0_19 = arith.constant 0 : index
    %c2_20 = arith.constant 2 : index
    %c0_21 = arith.constant 0 : index
    %c0_22 = arith.constant 0 : index
    %56 = vector.load %arg3[%c0_19, %c2_20, %c0_21, %c0_22] : memref<1x3x16x128xf32, #tpu.memory_space<vmem>>, vector<1x1x16x128xf32>
    %57 = vector.shape_cast %56 : vector<1x1x16x128xf32> to vector<16x128xf32>
    %58 = vector.extract_strided_slice %3 {offsets = [0, 2], sizes = [32, 1], strides = [1, 1]} : vector<32x3xf32> to vector<32x1xf32>
    %59 = vector.shape_cast %57 : vector<16x128xf32> to vector<16x1x128xf32>
    %60 = vector.shape_cast %58 : vector<32x1xf32> to vector<1x32x1xf32>
    %61 = vector.broadcast %59 : vector<16x1x128xf32> to vector<16x32x128xf32>
    %62 = vector.broadcast %60 : vector<1x32x1xf32> to vector<16x32x128xf32>
    %63 = arith.mulf %61, %62 : vector<16x32x128xf32>
    %64 = arith.addf %55, %63 : vector<16x32x128xf32>
    %65 = tpu.iota {dimensions = array<i32: 1>} : vector<16x128xi32>
    %cst = arith.constant 0.000000e+00 : f32
    %66 = vector.broadcast %cst : f32 to vector<16x128xf32>
    %c16 = arith.constant 16 : index
    %67 = memref.load %arg7[%c16] : memref<36xf32, #tpu.memory_space<smem>>
    %68 = vector.broadcast %67 : f32 to vector<16x128xf32>
    %c17 = arith.constant 17 : index
    %69 = memref.load %arg7[%c17] : memref<36xf32, #tpu.memory_space<smem>>
    %70 = vector.broadcast %69 : f32 to vector<16x128xf32>
    %c34 = arith.constant 34 : index
    %71 = memref.load %arg7[%c34] : memref<36xf32, #tpu.memory_space<smem>>
    %72 = vector.broadcast %71 : f32 to vector<16x128xf32>
    %c35 = arith.constant 35 : index
    %73 = memref.load %arg7[%c35] : memref<36xf32, #tpu.memory_space<smem>>
    %74 = vector.broadcast %73 : f32 to vector<16x128xf32>
    %75 = arith.mulf %34, %64 : vector<16x32x128xf32>
    %cst_23 = arith.constant dense<0.000000e+00> : vector<16x128xf32>
    %76 = vector.multi_reduction <add>, %75, %cst_23 [1] : vector<16x32x128xf32> to vector<16x128xf32>
    %c0_24 = arith.constant 0 : index
    %77 = memref.load %arg7[%c0_24] : memref<36xf32, #tpu.memory_space<smem>>
    %78 = vector.broadcast %77 : f32 to vector<16x128xf32>
    %79 = arith.mulf %76, %78 : vector<16x128xf32>
    %80 = arith.addf %68, %79 : vector<16x128xf32>
    %c1_25 = arith.constant 1 : index
    %81 = memref.load %arg7[%c1_25] : memref<36xf32, #tpu.memory_space<smem>>
    %82 = vector.broadcast %81 : f32 to vector<16x128xf32>
    %83 = arith.mulf %76, %82 : vector<16x128xf32>
    %84 = arith.addf %70, %83 : vector<16x128xf32>
    %c18 = arith.constant 18 : index
    %85 = memref.load %arg7[%c18] : memref<36xf32, #tpu.memory_space<smem>>
    %86 = vector.broadcast %85 : f32 to vector<16x128xf32>
    %87 = arith.mulf %76, %86 : vector<16x128xf32>
    %88 = arith.addf %72, %87 : vector<16x128xf32>
    %c19 = arith.constant 19 : index
    %89 = memref.load %arg7[%c19] : memref<36xf32, #tpu.memory_space<smem>>
    %90 = vector.broadcast %89 : f32 to vector<16x128xf32>
    %91 = arith.mulf %76, %90 : vector<16x128xf32>
    %92 = arith.addf %74, %91 : vector<16x128xf32>
    %93 = arith.addf %66, %76 : vector<16x128xf32>
    %c1_i32 = arith.constant 1 : i32
    %94 = tpu.dynamic_rotate %64 by %c1_i32 dim 2 : vector<16x32x128xf32>, i32 -> vector<16x32x128xf32>
    %95 = arith.mulf %34, %94 : vector<16x32x128xf32>
    %cst_26 = arith.constant dense<0.000000e+00> : vector<16x128xf32>
    %96 = vector.multi_reduction <add>, %95, %cst_26 [1] : vector<16x32x128xf32> to vector<16x128xf32>
    %c1_i32_27 = arith.constant 1 : i32
    %97 = vector.broadcast %c1_i32_27 : i32 to vector<16x128xi32>
    %98 = arith.cmpi sge, %65, %97 : vector<16x128xi32>
    %99 = arith.select %98, %96, %66 : vector<16x128xi1>, vector<16x128xf32>
    %c2_28 = arith.constant 2 : index
    %100 = memref.load %arg7[%c2_28] : memref<36xf32, #tpu.memory_space<smem>>
    %101 = vector.broadcast %100 : f32 to vector<16x128xf32>
    %102 = arith.mulf %99, %101 : vector<16x128xf32>
    %103 = arith.addf %80, %102 : vector<16x128xf32>
    %c3 = arith.constant 3 : index
    %104 = memref.load %arg7[%c3] : memref<36xf32, #tpu.memory_space<smem>>
    %105 = vector.broadcast %104 : f32 to vector<16x128xf32>
    %106 = arith.mulf %99, %105 : vector<16x128xf32>
    %107 = arith.addf %84, %106 : vector<16x128xf32>
    %c20 = arith.constant 20 : index
    %108 = memref.load %arg7[%c20] : memref<36xf32, #tpu.memory_space<smem>>
    %109 = vector.broadcast %108 : f32 to vector<16x128xf32>
    %110 = arith.mulf %99, %109 : vector<16x128xf32>
    %111 = arith.addf %88, %110 : vector<16x128xf32>
    %c21 = arith.constant 21 : index
    %112 = memref.load %arg7[%c21] : memref<36xf32, #tpu.memory_space<smem>>
    %113 = vector.broadcast %112 : f32 to vector<16x128xf32>
    %114 = arith.mulf %99, %113 : vector<16x128xf32>
    %115 = arith.addf %92, %114 : vector<16x128xf32>
    %116 = arith.addf %93, %99 : vector<16x128xf32>
    %c2_i32 = arith.constant 2 : i32
    %117 = tpu.dynamic_rotate %64 by %c2_i32 dim 2 : vector<16x32x128xf32>, i32 -> vector<16x32x128xf32>
    %118 = arith.mulf %34, %117 : vector<16x32x128xf32>
    %cst_29 = arith.constant dense<0.000000e+00> : vector<16x128xf32>
    %119 = vector.multi_reduction <add>, %118, %cst_29 [1] : vector<16x32x128xf32> to vector<16x128xf32>
    %c2_i32_30 = arith.constant 2 : i32
    %120 = vector.broadcast %c2_i32_30 : i32 to vector<16x128xi32>
    %121 = arith.cmpi sge, %65, %120 : vector<16x128xi32>
    %122 = arith.select %121, %119, %66 : vector<16x128xi1>, vector<16x128xf32>
    %c4 = arith.constant 4 : index
    %123 = memref.load %arg7[%c4] : memref<36xf32, #tpu.memory_space<smem>>
    %124 = vector.broadcast %123 : f32 to vector<16x128xf32>
    %125 = arith.mulf %122, %124 : vector<16x128xf32>
    %126 = arith.addf %103, %125 : vector<16x128xf32>
    %c5 = arith.constant 5 : index
    %127 = memref.load %arg7[%c5] : memref<36xf32, #tpu.memory_space<smem>>
    %128 = vector.broadcast %127 : f32 to vector<16x128xf32>
    %129 = arith.mulf %122, %128 : vector<16x128xf32>
    %130 = arith.addf %107, %129 : vector<16x128xf32>
    %c22 = arith.constant 22 : index
    %131 = memref.load %arg7[%c22] : memref<36xf32, #tpu.memory_space<smem>>
    %132 = vector.broadcast %131 : f32 to vector<16x128xf32>
    %133 = arith.mulf %122, %132 : vector<16x128xf32>
    %134 = arith.addf %111, %133 : vector<16x128xf32>
    %c23 = arith.constant 23 : index
    %135 = memref.load %arg7[%c23] : memref<36xf32, #tpu.memory_space<smem>>
    %136 = vector.broadcast %135 : f32 to vector<16x128xf32>
    %137 = arith.mulf %122, %136 : vector<16x128xf32>
    %138 = arith.addf %115, %137 : vector<16x128xf32>
    %139 = arith.addf %116, %122 : vector<16x128xf32>
    %c3_i32 = arith.constant 3 : i32
    %140 = tpu.dynamic_rotate %64 by %c3_i32 dim 2 : vector<16x32x128xf32>, i32 -> vector<16x32x128xf32>
    %141 = arith.mulf %34, %140 : vector<16x32x128xf32>
    %cst_31 = arith.constant dense<0.000000e+00> : vector<16x128xf32>
    %142 = vector.multi_reduction <add>, %141, %cst_31 [1] : vector<16x32x128xf32> to vector<16x128xf32>
    %c3_i32_32 = arith.constant 3 : i32
    %143 = vector.broadcast %c3_i32_32 : i32 to vector<16x128xi32>
    %144 = arith.cmpi sge, %65, %143 : vector<16x128xi32>
    %145 = arith.select %144, %142, %66 : vector<16x128xi1>, vector<16x128xf32>
    %c6 = arith.constant 6 : index
    %146 = memref.load %arg7[%c6] : memref<36xf32, #tpu.memory_space<smem>>
    %147 = vector.broadcast %146 : f32 to vector<16x128xf32>
    %148 = arith.mulf %145, %147 : vector<16x128xf32>
    %149 = arith.addf %126, %148 : vector<16x128xf32>
    %c7 = arith.constant 7 : index
    %150 = memref.load %arg7[%c7] : memref<36xf32, #tpu.memory_space<smem>>
    %151 = vector.broadcast %150 : f32 to vector<16x128xf32>
    %152 = arith.mulf %145, %151 : vector<16x128xf32>
    %153 = arith.addf %130, %152 : vector<16x128xf32>
    %c24 = arith.constant 24 : index
    %154 = memref.load %arg7[%c24] : memref<36xf32, #tpu.memory_space<smem>>
    %155 = vector.broadcast %154 : f32 to vector<16x128xf32>
    %156 = arith.mulf %145, %155 : vector<16x128xf32>
    %157 = arith.addf %134, %156 : vector<16x128xf32>
    %c25 = arith.constant 25 : index
    %158 = memref.load %arg7[%c25] : memref<36xf32, #tpu.memory_space<smem>>
    %159 = vector.broadcast %158 : f32 to vector<16x128xf32>
    %160 = arith.mulf %145, %159 : vector<16x128xf32>
    %161 = arith.addf %138, %160 : vector<16x128xf32>
    %162 = arith.addf %139, %145 : vector<16x128xf32>
    %c4_i32 = arith.constant 4 : i32
    %163 = tpu.dynamic_rotate %64 by %c4_i32 dim 2 : vector<16x32x128xf32>, i32 -> vector<16x32x128xf32>
    %164 = arith.mulf %34, %163 : vector<16x32x128xf32>
    %cst_33 = arith.constant dense<0.000000e+00> : vector<16x128xf32>
    %165 = vector.multi_reduction <add>, %164, %cst_33 [1] : vector<16x32x128xf32> to vector<16x128xf32>
    %c4_i32_34 = arith.constant 4 : i32
    %166 = vector.broadcast %c4_i32_34 : i32 to vector<16x128xi32>
    %167 = arith.cmpi sge, %65, %166 : vector<16x128xi32>
    %168 = arith.select %167, %165, %66 : vector<16x128xi1>, vector<16x128xf32>
    %c8 = arith.constant 8 : index
    %169 = memref.load %arg7[%c8] : memref<36xf32, #tpu.memory_space<smem>>
    %170 = vector.broadcast %169 : f32 to vector<16x128xf32>
    %171 = arith.mulf %168, %170 : vector<16x128xf32>
    %172 = arith.addf %149, %171 : vector<16x128xf32>
    %c9 = arith.constant 9 : index
    %173 = memref.load %arg7[%c9] : memref<36xf32, #tpu.memory_space<smem>>
    %174 = vector.broadcast %173 : f32 to vector<16x128xf32>
    %175 = arith.mulf %168, %174 : vector<16x128xf32>
    %176 = arith.addf %153, %175 : vector<16x128xf32>
    %c26 = arith.constant 26 : index
    %177 = memref.load %arg7[%c26] : memref<36xf32, #tpu.memory_space<smem>>
    %178 = vector.broadcast %177 : f32 to vector<16x128xf32>
    %179 = arith.mulf %168, %178 : vector<16x128xf32>
    %180 = arith.addf %157, %179 : vector<16x128xf32>
    %c27 = arith.constant 27 : index
    %181 = memref.load %arg7[%c27] : memref<36xf32, #tpu.memory_space<smem>>
    %182 = vector.broadcast %181 : f32 to vector<16x128xf32>
    %183 = arith.mulf %168, %182 : vector<16x128xf32>
    %184 = arith.addf %161, %183 : vector<16x128xf32>
    %185 = arith.addf %162, %168 : vector<16x128xf32>
    %c5_i32 = arith.constant 5 : i32
    %186 = tpu.dynamic_rotate %64 by %c5_i32 dim 2 : vector<16x32x128xf32>, i32 -> vector<16x32x128xf32>
    %187 = arith.mulf %34, %186 : vector<16x32x128xf32>
    %cst_35 = arith.constant dense<0.000000e+00> : vector<16x128xf32>
    %188 = vector.multi_reduction <add>, %187, %cst_35 [1] : vector<16x32x128xf32> to vector<16x128xf32>
    %c5_i32_36 = arith.constant 5 : i32
    %189 = vector.broadcast %c5_i32_36 : i32 to vector<16x128xi32>
    %190 = arith.cmpi sge, %65, %189 : vector<16x128xi32>
    %191 = arith.select %190, %188, %66 : vector<16x128xi1>, vector<16x128xf32>
    %c10 = arith.constant 10 : index
    %192 = memref.load %arg7[%c10] : memref<36xf32, #tpu.memory_space<smem>>
    %193 = vector.broadcast %192 : f32 to vector<16x128xf32>
    %194 = arith.mulf %191, %193 : vector<16x128xf32>
    %195 = arith.addf %172, %194 : vector<16x128xf32>
    %c11 = arith.constant 11 : index
    %196 = memref.load %arg7[%c11] : memref<36xf32, #tpu.memory_space<smem>>
    %197 = vector.broadcast %196 : f32 to vector<16x128xf32>
    %198 = arith.mulf %191, %197 : vector<16x128xf32>
    %199 = arith.addf %176, %198 : vector<16x128xf32>
    %c28 = arith.constant 28 : index
    %200 = memref.load %arg7[%c28] : memref<36xf32, #tpu.memory_space<smem>>
    %201 = vector.broadcast %200 : f32 to vector<16x128xf32>
    %202 = arith.mulf %191, %201 : vector<16x128xf32>
    %203 = arith.addf %180, %202 : vector<16x128xf32>
    %c29 = arith.constant 29 : index
    %204 = memref.load %arg7[%c29] : memref<36xf32, #tpu.memory_space<smem>>
    %205 = vector.broadcast %204 : f32 to vector<16x128xf32>
    %206 = arith.mulf %191, %205 : vector<16x128xf32>
    %207 = arith.addf %184, %206 : vector<16x128xf32>
    %208 = arith.addf %185, %191 : vector<16x128xf32>
    %c6_i32 = arith.constant 6 : i32
    %209 = tpu.dynamic_rotate %64 by %c6_i32 dim 2 : vector<16x32x128xf32>, i32 -> vector<16x32x128xf32>
    %210 = arith.mulf %34, %209 : vector<16x32x128xf32>
    %cst_37 = arith.constant dense<0.000000e+00> : vector<16x128xf32>
    %211 = vector.multi_reduction <add>, %210, %cst_37 [1] : vector<16x32x128xf32> to vector<16x128xf32>
    %c6_i32_38 = arith.constant 6 : i32
    %212 = vector.broadcast %c6_i32_38 : i32 to vector<16x128xi32>
    %213 = arith.cmpi sge, %65, %212 : vector<16x128xi32>
    %214 = arith.select %213, %211, %66 : vector<16x128xi1>, vector<16x128xf32>
    %c12 = arith.constant 12 : index
    %215 = memref.load %arg7[%c12] : memref<36xf32, #tpu.memory_space<smem>>
    %216 = vector.broadcast %215 : f32 to vector<16x128xf32>
    %217 = arith.mulf %214, %216 : vector<16x128xf32>
    %218 = arith.addf %195, %217 : vector<16x128xf32>
    %c13 = arith.constant 13 : index
    %219 = memref.load %arg7[%c13] : memref<36xf32, #tpu.memory_space<smem>>
    %220 = vector.broadcast %219 : f32 to vector<16x128xf32>
    %221 = arith.mulf %214, %220 : vector<16x128xf32>
    %222 = arith.addf %199, %221 : vector<16x128xf32>
    %c30 = arith.constant 30 : index
    %223 = memref.load %arg7[%c30] : memref<36xf32, #tpu.memory_space<smem>>
    %224 = vector.broadcast %223 : f32 to vector<16x128xf32>
    %225 = arith.mulf %214, %224 : vector<16x128xf32>
    %226 = arith.addf %203, %225 : vector<16x128xf32>
    %c31 = arith.constant 31 : index
    %227 = memref.load %arg7[%c31] : memref<36xf32, #tpu.memory_space<smem>>
    %228 = vector.broadcast %227 : f32 to vector<16x128xf32>
    %229 = arith.mulf %214, %228 : vector<16x128xf32>
    %230 = arith.addf %207, %229 : vector<16x128xf32>
    %231 = arith.addf %208, %214 : vector<16x128xf32>
    %c7_i32 = arith.constant 7 : i32
    %232 = tpu.dynamic_rotate %64 by %c7_i32 dim 2 : vector<16x32x128xf32>, i32 -> vector<16x32x128xf32>
    %233 = arith.mulf %34, %232 : vector<16x32x128xf32>
    %cst_39 = arith.constant dense<0.000000e+00> : vector<16x128xf32>
    %234 = vector.multi_reduction <add>, %233, %cst_39 [1] : vector<16x32x128xf32> to vector<16x128xf32>
    %c7_i32_40 = arith.constant 7 : i32
    %235 = vector.broadcast %c7_i32_40 : i32 to vector<16x128xi32>
    %236 = arith.cmpi sge, %65, %235 : vector<16x128xi32>
    %237 = arith.select %236, %234, %66 : vector<16x128xi1>, vector<16x128xf32>
    %c14 = arith.constant 14 : index
    %238 = memref.load %arg7[%c14] : memref<36xf32, #tpu.memory_space<smem>>
    %239 = vector.broadcast %238 : f32 to vector<16x128xf32>
    %240 = arith.mulf %237, %239 : vector<16x128xf32>
    %241 = arith.addf %218, %240 : vector<16x128xf32>
    %c15 = arith.constant 15 : index
    %242 = memref.load %arg7[%c15] : memref<36xf32, #tpu.memory_space<smem>>
    %243 = vector.broadcast %242 : f32 to vector<16x128xf32>
    %244 = arith.mulf %237, %243 : vector<16x128xf32>
    %245 = arith.addf %222, %244 : vector<16x128xf32>
    %c32 = arith.constant 32 : index
    %246 = memref.load %arg7[%c32] : memref<36xf32, #tpu.memory_space<smem>>
    %247 = vector.broadcast %246 : f32 to vector<16x128xf32>
    %248 = arith.mulf %237, %247 : vector<16x128xf32>
    %249 = arith.addf %226, %248 : vector<16x128xf32>
    %c33 = arith.constant 33 : index
    %250 = memref.load %arg7[%c33] : memref<36xf32, #tpu.memory_space<smem>>
    %251 = vector.broadcast %250 : f32 to vector<16x128xf32>
    %252 = arith.mulf %237, %251 : vector<16x128xf32>
    %253 = arith.addf %230, %252 : vector<16x128xf32>
    %254 = arith.addf %231, %237 : vector<16x128xf32>
    %c0_41 = arith.constant 0 : index
    %c0_42 = arith.constant 0 : index
    %c0_43 = arith.constant 0 : index
    %c0_44 = arith.constant 0 : index
    %255 = vector.load %arg8[%c0_41, %c0_42, %c0_43, %c0_44] : memref<1x2x16x128xf32, #tpu.memory_space<vmem>>, vector<1x1x16x128xf32>
    %256 = vector.shape_cast %255 : vector<1x1x16x128xf32> to vector<16x128xf32>
    %257 = vector.shape_cast %241 : vector<16x128xf32> to vector<1x1x16x128xf32>
    tpu.vector_store %arg8[%c0_41, %c0_42, %c0_43, %c0_44], %257 {strides = array<i32>} : memref<1x2x16x128xf32, #tpu.memory_space<vmem>>, vector<1x1x16x128xf32>,
    %c0_45 = arith.constant 0 : index
    %c1_46 = arith.constant 1 : index
    %c0_47 = arith.constant 0 : index
    %c0_48 = arith.constant 0 : index
    %258 = vector.load %arg8[%c0_45, %c1_46, %c0_47, %c0_48] : memref<1x2x16x128xf32, #tpu.memory_space<vmem>>, vector<1x1x16x128xf32>
    %259 = vector.shape_cast %258 : vector<1x1x16x128xf32> to vector<16x128xf32>
    %260 = vector.shape_cast %245 : vector<16x128xf32> to vector<1x1x16x128xf32>
    tpu.vector_store %arg8[%c0_45, %c1_46, %c0_47, %c0_48], %260 {strides = array<i32>} : memref<1x2x16x128xf32, #tpu.memory_space<vmem>>, vector<1x1x16x128xf32>,
    %c0_49 = arith.constant 0 : index
    %c0_50 = arith.constant 0 : index
    %c0_51 = arith.constant 0 : index
    %c0_52 = arith.constant 0 : index
    %261 = vector.load %arg9[%c0_49, %c0_50, %c0_51, %c0_52] : memref<1x2x16x128xf32, #tpu.memory_space<vmem>>, vector<1x1x16x128xf32>
    %262 = vector.shape_cast %261 : vector<1x1x16x128xf32> to vector<16x128xf32>
    %263 = vector.shape_cast %249 : vector<16x128xf32> to vector<1x1x16x128xf32>
    tpu.vector_store %arg9[%c0_49, %c0_50, %c0_51, %c0_52], %263 {strides = array<i32>} : memref<1x2x16x128xf32, #tpu.memory_space<vmem>>, vector<1x1x16x128xf32>,
    %c0_53 = arith.constant 0 : index
    %c1_54 = arith.constant 1 : index
    %c0_55 = arith.constant 0 : index
    %c0_56 = arith.constant 0 : index
    %264 = vector.load %arg9[%c0_53, %c1_54, %c0_55, %c0_56] : memref<1x2x16x128xf32, #tpu.memory_space<vmem>>, vector<1x1x16x128xf32>
    %265 = vector.shape_cast %264 : vector<1x1x16x128xf32> to vector<16x128xf32>
    %266 = vector.shape_cast %253 : vector<16x128xf32> to vector<1x1x16x128xf32>
    tpu.vector_store %arg9[%c0_53, %c1_54, %c0_55, %c0_56], %266 {strides = array<i32>} : memref<1x2x16x128xf32, #tpu.memory_space<vmem>>, vector<1x1x16x128xf32>,
    %c0_57 = arith.constant 0 : index
    %c0_58 = arith.constant 0 : index
    %c0_59 = arith.constant 0 : index
    %c0_60 = arith.constant 0 : index
    %267 = vector.load %arg10[%c0_57, %c0_58, %c0_59, %c0_60] : memref<1x1x16x128xf32, #tpu.memory_space<vmem>>, vector<1x1x16x128xf32>
    %268 = vector.shape_cast %267 : vector<1x1x16x128xf32> to vector<16x128xf32>
    %269 = vector.shape_cast %249 : vector<16x128xf32> to vector<1x1x16x128xf32>
    tpu.vector_store %arg10[%c0_57, %c0_58, %c0_59, %c0_60], %269 {strides = array<i32>} : memref<1x1x16x128xf32, #tpu.memory_space<vmem>>, vector<1x1x16x128xf32>,
    %c0_61 = arith.constant 0 : index
    %c0_62 = arith.constant 0 : index
    %270 = vector.load %arg5[%c0_61, %c0_62] : memref<8x16xf32, #tpu.memory_space<vmem>>, vector<8x16xf32>
    %cst_63 = arith.constant dense<0.000000e+00> : vector<8x128xf32>
    %271 = tpu.matmul %270, %254, %cst_63 {dimension_numbers = #tpu.dot_dimension_numbers<[1], [0], [0], [1], [0, 0, 1, 1], [], []>} : vector<8x16xf32>, vector<16x128xf32>, vector<8x128xf32> -> vector<8x128xf32>
    %c0_64 = arith.constant 0 : index
    %c0_65 = arith.constant 0 : index
    %272 = vector.load %arg6[%c0_64, %c0_65] : memref<128x64xf32, #tpu.memory_space<vmem>>, vector<128x64xf32>
    %cst_66 = arith.constant dense<0.000000e+00> : vector<8x64xf32>
    %273 = tpu.matmul %271, %272, %cst_66 {dimension_numbers = #tpu.dot_dimension_numbers<[1], [0], [0], [1], [0, 0, 1, 1], [], []>} : vector<8x128xf32>, vector<128x64xf32>, vector<8x64xf32> -> vector<8x64xf32>
    %274 = arith.negf %273 : vector<8x64xf32>
    %275 = math.exp %274 : vector<8x64xf32>
    %cst_67 = arith.constant 1.000000e+00 : f32
    %276 = vector.broadcast %cst_67 : f32 to vector<8x64xf32>
    %277 = arith.addf %276, %275 : vector<8x64xf32>
    %278 = arith.divf %276, %277 : vector<8x64xf32>
    %c0_68 = arith.constant 0 : index
    %c0_69 = arith.constant 0 : index
    %c0_70 = arith.constant 0 : index
    %c0_71 = arith.constant 0 : index
    %279 = vector.load %arg11[%c0_68, %c0_69, %c0_70, %c0_71] : memref<1x1x8x64xf32, #tpu.memory_space<vmem>>, vector<1x1x8x64xf32>
    %280 = vector.shape_cast %279 : vector<1x1x8x64xf32> to vector<8x64xf32>
    %281 = vector.shape_cast %278 : vector<8x64xf32> to vector<1x1x8x64xf32>
    tpu.vector_store %arg11[%c0_68, %c0_69, %c0_70, %c0_71], %281 {strides = array<i32>} : memref<1x1x8x64xf32, #tpu.memory_space<vmem>>, vector<1x1x8x64xf32>,
    return
  }
  func.func @transform_0(%arg0: i32, %arg1: i32) -> (i32, i32, i32, i32) {
    %c0_i32 = arith.constant 0 : i32
    %c0_i32_0 = arith.constant 0 : i32
    %c0_i32_1 = arith.constant 0 : i32
    return %arg0, %c0_i32, %arg1, %c0_i32_0 : i32, i32, i32, i32
  }
  func.func @transform_1(%arg0: i32, %arg1: i32) -> (i32, i32, i32, i32) {
    %c0_i32 = arith.constant 0 : i32
    %c0_i32_0 = arith.constant 0 : i32
    %c0_i32_1 = arith.constant 0 : i32
    return %arg0, %c0_i32, %arg1, %c0_i32_0 : i32, i32, i32, i32
  }
  func.func @transform_2(%arg0: i32, %arg1: i32) -> (i32, i32) {
    %c0_i32 = arith.constant 0 : i32
    %c0_i32_0 = arith.constant 0 : i32
    %c0_i32_1 = arith.constant 0 : i32
    return %c0_i32, %c0_i32_0 : i32, i32
  }
  func.func @transform_3(%arg0: i32, %arg1: i32) -> (i32, i32) {
    %c0_i32 = arith.constant 0 : i32
    %c0_i32_0 = arith.constant 0 : i32
    %c0_i32_1 = arith.constant 0 : i32
    return %c0_i32, %c0_i32_0 : i32, i32
  }
  func.func @transform_4(%arg0: i32, %arg1: i32) -> (i32, i32) {
    %c0_i32 = arith.constant 0 : i32
    %c0_i32_0 = arith.constant 0 : i32
    %c0_i32_1 = arith.constant 0 : i32
    return %c0_i32, %c0_i32_0 : i32, i32
  }
  func.func @transform_5(%arg0: i32, %arg1: i32) -> i32 {
    %c0_i32 = arith.constant 0 : i32
    %c0_i32_0 = arith.constant 0 : i32
    return %c0_i32 : i32
  }
  func.func @transform_6(%arg0: i32, %arg1: i32) -> (i32, i32, i32, i32) {
    %c0_i32 = arith.constant 0 : i32
    %c0_i32_0 = arith.constant 0 : i32
    %c0_i32_1 = arith.constant 0 : i32
    return %arg0, %c0_i32, %arg1, %c0_i32_0 : i32, i32, i32, i32
  }
  func.func @transform_7(%arg0: i32, %arg1: i32) -> (i32, i32, i32, i32) {
    %c0_i32 = arith.constant 0 : i32
    %c0_i32_0 = arith.constant 0 : i32
    %c0_i32_1 = arith.constant 0 : i32
    return %arg0, %c0_i32, %arg1, %c0_i32_0 : i32, i32, i32, i32
  }
  func.func @transform_8(%arg0: i32, %arg1: i32) -> (i32, i32, i32, i32) {
    %c0_i32 = arith.constant 0 : i32
    %c0_i32_0 = arith.constant 0 : i32
    %c0_i32_1 = arith.constant 0 : i32
    return %arg0, %c0_i32, %arg1, %c0_i32_0 : i32, i32, i32, i32
  }
  func.func @transform_9(%arg0: i32, %arg1: i32) -> (i32, i32, i32, i32) {
    %c0_i32 = arith.constant 0 : i32
    %c0_i32_0 = arith.constant 0 : i32
    %c0_i32_1 = arith.constant 0 : i32
    return %arg0, %c0_i32, %arg1, %c0_i32_0 : i32, i32, i32, i32
  }
}

</mosaic_0001>

<llo_original>
// kernel: crestereo_mf_forward.1
$region0: #{crestereo_mf_forward.1}
  #allocation0 [shape = 'u32[]', space=smem, size = 0x4, offset = 0x4, fixed_abs, tag = 'smem constant byte address 0x4 - core index']
  #allocation1 [shape = 'u32[72,128]{1,0:T(1,128)}', space=vmem, size = 0x9000, scoped, tag = 'internal scratch']
  %s0 = inlined_call_operand.vmem [shape: f32[2,3,16,128], index: 0, kind: input, shape index: {}]
  %s1 = inlined_call_operand.vmem [shape: f32[2,3,16,128], index: 1, kind: input, shape index: {}]
  %s2 = inlined_call_operand.vmem [shape: f32[32,8], index: 2, kind: input, shape index: {}]
  %s3 = inlined_call_operand.vmem [shape: f32[8,16], index: 3, kind: input, shape index: {}]
  %s4 = inlined_call_operand.vmem [shape: f32[128,64], index: 4, kind: input, shape index: {}]
  %s5 = inlined_call_operand.vmem [shape: f32[36], index: 5, kind: input, shape index: {}]
  %s6 = inlined_call_operand.hbm [shape: f32[2,2,16,128], index: 6, kind: output, shape index: {0}]
  %s7 = inlined_call_operand.hbm [shape: f32[2,2,16,128], index: 7, kind: output, shape index: {1}]
  %s8 = inlined_call_operand.hbm [shape: f32[2,1,16,128], index: 8, kind: output, shape index: {2}]
  %s9 = inlined_call_operand.hbm [shape: f32[2,1,8,64], index: 9, kind: output, shape index: {3}]
  %10 = xla_tuple %s6, %s7, %s8, %s9
  %s11 = sld [smem:[#allocation0]]
  $region85: #{crestereo_mf_forward.1} parent=0
    _
  %s13 = ssub.s32 1, %s11
  %s14 = scalar_select 0, %s13, %s11
  $region1: #{crestereo_mf_forward.1} parent=0
    #allocation2 [shape = 'u8[512]{0}', space=smem, size = 0x200, scoped, tag = 'input window, operand 5, single buffered']
    #allocation3 [shape = 's32[2]{0}', space=sflag, size = 0x8, scoped, tag = 'scoped memory for crestereo_mf_forward.1']
    #allocation4 [shape = 's32[2]{0}', space=sflag, size = 0x8, scoped, tag = 'scoped memory for crestereo_mf_forward.1']
    #allocation5 [shape = 'u8[32768]{0}', space=vmem, size = 0x8000, scoped, tag = 'output window, operand 0']
    #allocation6 [shape = 'u8[32768]{0}', space=vmem, size = 0x8000, scoped, tag = 'output window, operand 1']
    #allocation7 [shape = 's32[2]{0}', space=sflag, size = 0x8, scoped, tag = 'scoped memory for crestereo_mf_forward.1']
    #allocation8 [shape = 'u8[16384]{0}', space=vmem, size = 0x4000, scoped, tag = 'output window, operand 2']
    #allocation9 [shape = 'u8[8192]{0}', space=vmem, size = 0x2000, scoped, tag = 'output window, operand 3']
    #allocation10 [shape = 's32[2]{0}', space=sflag, size = 0x8, scoped, tag = 'scoped memory for crestereo_mf_forward.1']
    %15 = vsyncpa [#allocation4], 0
    %16 = vsyncpa [#allocation3], 0
    %s17 = scalar_lea.sflag [#allocation3], 1
    %18 = vsyncpa %s17, 0
    %19 = vsyncpa [#allocation7], 0
    %s20 = scalar_lea.sflag [#allocation7], 1
    %21 = vsyncpa %s20, 0
    %22 = vsyncpa [#allocation10], 0
    %s23 = scalar_lea.sflag [#allocation10], 1
    %24 = vsyncpa %s23, 0
    loop: start=0, step=1, limit=4
    $region2: #{crestereo_mf_forward.1} parent=1 // loop_pre_header
      _
    $region3: #{crestereo_mf_forward.1} parent=1 // loop_header
      %s26 = sphi 0, %s30
      %p27 = scmp.ge.s32.totalorder %s26, 4
      %s33 = sphi 0, %s45
      %s34 = sphi 0, %s41
      %s35 = sphi 0, %s33
      %s36 = sphi 0, %s34
      %s37 = sphi 0, %s35
      %s38 = sphi 0, %s36
      %s50 = sphi 0, %s52
      %s53 = sphi 0, %s50
      %s54 = sphi 0, %s53
      %s70 = sphi 0, %s54
      %s78 = sphi 0, %s80
      %s81 = sphi 0, %s78
      %s82 = sphi 0, %s81
      %s98 = sphi 0, %s82
      %s102 = sphi 0, %s102
      %s104 = sphi 0, %s102
      %s105 = sphi 0, %s104
      %s119 = sphi 0, %s105
      %s123 = sphi 0, %s123
      %s125 = sphi 0, %s123
      %s126 = sphi 0, %s125
      %s140 = sphi 0, %s126
      %s144 = sphi 0, %s144
      %s146 = sphi 0, %s144
      %s147 = sphi 0, %s146
      %s161 = sphi 0, %s147
      %s165 = sphi 0, %s165
      %s167 = sphi 0, %s165
      %s168 = sphi 0, %s167
      %s182 = sphi 0, %s168
      %s190 = sphi 0, %s192
      %s193 = sphi 0, %s190
      %s194 = sphi 0, %s193
      %s210 = sphi 0, %s194
      %s218 = sphi 0, %s220
      %s221 = sphi 0, %s218
      %s222 = sphi 0, %s221
      %s238 = sphi 0, %s222
      %s246 = sphi 0, %s248
      %s249 = sphi 0, %s246
      %s250 = sphi 0, %s249
      %s266 = sphi 0, %s250
      %s274 = sphi 0, %s276
      %s277 = sphi 0, %s274
      %s278 = sphi 0, %s277
      %s294 = sphi 0, %s278
    $region4: #{crestereo_mf_forward.1} parent=1 // loop_header_branch
      %29 = sbr.rel (%p27) target = $region8
    $region5: #{crestereo_mf_forward.1} parent=1 // loop_body
      %s31 = ssub.s32 %s26, 1
      %s32 = ssub.s32 %s26, 2
      %s39 = sadd.s32 1, %s34
      %p40 = scmp.ge.s32.totalorder %s39, 1
      %s41 = scalar_select %p40, 0, %s39
      %s42 = sadd.s32 1, %s33
      %s43 = scalar_select %p40, %s42, %s33
      %p44 = scmp.ge.s32.totalorder %s43, 2
      %s45 = scalar_select %p44, 0, %s43
      %s46 = ssub.s32 %s33, %s45
      %s47 = ssub.s32 %s34, %s41
      %s48 = sor.u32 %s46, %s47
      %p49 = scmp.eq.s32.totalorder %s48, 0
      %s51 = sadd.s32 %s50, 1
      %s52 = scalar_select %p49, %s50, %s51
      %p55 = pneg %p49
      %p56 = scmp.eq.s32.totalorder %s26, 1
      %p57 = por %p55, %p56
      %p58 = scmp.ne.s32.totalorder %s50, %s53
      %p59 = scmp.eq.s32.totalorder %s26, 0
      %p60 = por %p58, %p59
      %p61 = scmp.ne.s32.totalorder %s50, %s53
      %p62 = scmp.eq.s32.totalorder %s31, 1
      %p63 = por %p61, %p62
      %p64 = scmp.ne.s32.totalorder %s53, %s54
      %p65 = scmp.eq.s32.totalorder %s31, 0
      %p66 = por %p64, %p65
      %p67 = scmp.ne.s32.totalorder %s53, %s54
      %p68 = scmp.eq.s32.totalorder %s32, 1
      %p69 = por %p67, %p68
      %p71 = scmp.ne.s32.totalorder %s54, %s70
      %p72 = scmp.eq.s32.totalorder %s32, 0
      %p73 = por %p71, %p72
      %s74 = ssub.s32 %s33, %s45
      %s75 = ssub.s32 %s34, %s41
      %s76 = sor.u32 %s74, %s75
      %p77 = scmp.eq.s32.totalorder %s76, 0
      %s79 = sadd.s32 %s78, 1
      %s80 = scalar_select %p77, %s78, %s79
      %p83 = pneg %p77
      %p84 = scmp.eq.s32.totalorder %s26, 1
      %p85 = por %p83, %p84
      %p86 = scmp.ne.s32.totalorder %s78, %s81
      %p87 = scmp.eq.s32.totalorder %s26, 0
      %p88 = por %p86, %p87
      %p89 = scmp.ne.s32.totalorder %s78, %s81
      %p90 = scmp.eq.s32.totalorder %s31, 1
      %p91 = por %p89, %p90
      %p92 = scmp.ne.s32.totalorder %s81, %s82
      %p93 = scmp.eq.s32.totalorder %s31, 0
      %p94 = por %p92, %p93
      %p95 = scmp.ne.s32.totalorder %s81, %s82
      %p96 = scmp.eq.s32.totalorder %s32, 1
      %p97 = por %p95, %p96
      %p99 = scmp.ne.s32.totalorder %s82, %s98
      %p100 = scmp.eq.s32.totalorder %s32, 0
      %p101 = por %p99, %p100
      %s103 = sadd.s32 %s102, 1
      %p106 = scmp.eq.s32.totalorder %s26, 1
      %p107 = scmp.ne.s32.totalorder %s102, %s104
      %p108 = scmp.eq.s32.totalorder %s26, 0
      %p109 = por %p107, %p108
      %p110 = scmp.ne.s32.totalorder %s102, %s104
      %p111 = scmp.eq.s32.totalorder %s31, 1
      %p112 = por %p110, %p111
      %p113 = scmp.ne.s32.totalorder %s104, %s105
      %p114 = scmp.eq.s32.totalorder %s31, 0
      %p115 = por %p113, %p114
      %p116 = scmp.ne.s32.totalorder %s104, %s105
      %p117 = scmp.eq.s32.totalorder %s32, 1
      %p118 = por %p116, %p117
      %p120 = scmp.ne.s32.totalorder %s105, %s119
      %p121 = scmp.eq.s32.totalorder %s32, 0
      %p122 = por %p120, %p121
      %s124 = sadd.s32 %s123, 1
      %p127 = scmp.eq.s32.totalorder %s26, 1
      %p128 = scmp.ne.s32.totalorder %s123, %s125
      %p129 = scmp.eq.s32.totalorder %s26, 0
      %p130 = por %p128, %p129
      %p131 = scmp.ne.s32.totalorder %s123, %s125
      %p132 = scmp.eq.s32.totalorder %s31, 1
      %p133 = por %p131, %p132
      %p134 = scmp.ne.s32.totalorder %s125, %s126
      %p135 = scmp.eq.s32.totalorder %s31, 0
      %p136 = por %p134, %p135
      %p137 = scmp.ne.s32.totalorder %s125, %s126
      %p138 = scmp.eq.s32.totalorder %s32, 1
      %p139 = por %p137, %p138
      %p141 = scmp.ne.s32.totalorder %s126, %s140
      %p142 = scmp.eq.s32.totalorder %s32, 0
      %p143 = por %p141, %p142
      %s145 = sadd.s32 %s144, 1
      %p148 = scmp.eq.s32.totalorder %s26, 1
      %p149 = scmp.ne.s32.totalorder %s144, %s146
      %p150 = scmp.eq.s32.totalorder %s26, 0
      %p151 = por %p149, %p150
      %p152 = scmp.ne.s32.totalorder %s144, %s146
      %p153 = scmp.eq.s32.totalorder %s31, 1
      %p154 = por %p152, %p153
      %p155 = scmp.ne.s32.totalorder %s146, %s147
      %p156 = scmp.eq.s32.totalorder %s31, 0
      %p157 = por %p155, %p156
      %p158 = scmp.ne.s32.totalorder %s146, %s147
      %p159 = scmp.eq.s32.totalorder %s32, 1
      %p160 = por %p158, %p159
      %p162 = scmp.ne.s32.totalorder %s147, %s161
      %p163 = scmp.eq.s32.totalorder %s32, 0
      %p164 = por %p162, %p163
      %s166 = sadd.s32 %s165, 1
      %p169 = scmp.eq.s32.totalorder %s26, 1
      %p170 = scmp.ne.s32.totalorder %s165, %s167
      %p171 = scmp.eq.s32.totalorder %s26, 0
      %p172 = por %p170, %p171
      %p173 = scmp.ne.s32.totalorder %s165, %s167
      %p174 = scmp.eq.s32.totalorder %s31, 1
      %p175 = por %p173, %p174
      %p176 = scmp.ne.s32.totalorder %s167, %s168
      %p177 = scmp.eq.s32.totalorder %s31, 0
      %p178 = por %p176, %p177
      %p179 = scmp.ne.s32.totalorder %s167, %s168
      %p180 = scmp.eq.s32.totalorder %s32, 1
      %p181 = por %p179, %p180
      %p183 = scmp.ne.s32.totalorder %s168, %s182
      %p184 = scmp.eq.s32.totalorder %s32, 0
      %p185 = por %p183, %p184
      %s186 = ssub.s32 %s33, %s45
      %s187 = ssub.s32 %s34, %s41
      %s188 = sor.u32 %s186, %s187
      %p189 = scmp.eq.s32.totalorder %s188, 0
      %s191 = sadd.s32 %s190, 1
      %s192 = scalar_select %p189, %s190, %s191
      %p195 = pneg %p189
      %p196 = scmp.eq.s32.totalorder %s26, 1
      %p197 = por %p195, %p196
      %p198 = scmp.ne.s32.totalorder %s190, %s193
      %p199 = scmp.eq.s32.totalorder %s26, 0
      %p200 = por %p198, %p199
      %p201 = scmp.ne.s32.totalorder %s190, %s193
      %p202 = scmp.eq.s32.totalorder %s31, 1
      %p203 = por %p201, %p202
      %p204 = scmp.ne.s32.totalorder %s193, %s194
      %p205 = scmp.eq.s32.totalorder %s31, 0
      %p206 = por %p204, %p205
      %p207 = scmp.ne.s32.totalorder %s193, %s194
      %p208 = scmp.eq.s32.totalorder %s32, 1
      %p209 = por %p207, %p208
      %p211 = scmp.ne.s32.totalorder %s194, %s210
      %p212 = scmp.eq.s32.totalorder %s32, 0
      %p213 = por %p211, %p212
      %s214 = ssub.s32 %s33, %s45
      %s215 = ssub.s32 %s34, %s41
      %s216 = sor.u32 %s214, %s215
      %p217 = scmp.eq.s32.totalorder %s216, 0
      %s219 = sadd.s32 %s218, 1
      %s220 = scalar_select %p217, %s218, %s219
      %p223 = pneg %p217
      %p224 = scmp.eq.s32.totalorder %s26, 1
      %p225 = por %p223, %p224
      %p226 = scmp.ne.s32.totalorder %s218, %s221
      %p227 = scmp.eq.s32.totalorder %s26, 0
      %p228 = por %p226, %p227
      %p229 = scmp.ne.s32.totalorder %s218, %s221
      %p230 = scmp.eq.s32.totalorder %s31, 1
      %p231 = por %p229, %p230
      %p232 = scmp.ne.s32.totalorder %s221, %s222
      %p233 = scmp.eq.s32.totalorder %s31, 0
      %p234 = por %p232, %p233
      %p235 = scmp.ne.s32.totalorder %s221, %s222
      %p236 = scmp.eq.s32.totalorder %s32, 1
      %p237 = por %p235, %p236
      %p239 = scmp.ne.s32.totalorder %s222, %s238
      %p240 = scmp.eq.s32.totalorder %s32, 0
      %p241 = por %p239, %p240
      %s242 = ssub.s32 %s33, %s45
      %s243 = ssub.s32 %s34, %s41
      %s244 = sor.u32 %s242, %s243
      %p245 = scmp.eq.s32.totalorder %s244, 0
      %s247 = sadd.s32 %s246, 1
      %s248 = scalar_select %p245, %s246, %s247
      %p251 = pneg %p245
      %p252 = scmp.eq.s32.totalorder %s26, 1
      %p253 = por %p251, %p252
      %p254 = scmp.ne.s32.totalorder %s246, %s249
      %p255 = scmp.eq.s32.totalorder %s26, 0
      %p256 = por %p254, %p255
      %p257 = scmp.ne.s32.totalorder %s246, %s249
      %p258 = scmp.eq.s32.totalorder %s31, 1
      %p259 = por %p257, %p258
      %p260 = scmp.ne.s32.totalorder %s249, %s250
      %p261 = scmp.eq.s32.totalorder %s31, 0
      %p262 = por %p260, %p261
      %p263 = scmp.ne.s32.totalorder %s249, %s250
      %p264 = scmp.eq.s32.totalorder %s32, 1
      %p265 = por %p263, %p264
      %p267 = scmp.ne.s32.totalorder %s250, %s266
      %p268 = scmp.eq.s32.totalorder %s32, 0
      %p269 = por %p267, %p268
      %s270 = ssub.s32 %s33, %s45
      %s271 = ssub.s32 %s34, %s41
      %s272 = sor.u32 %s270, %s271
      %p273 = scmp.eq.s32.totalorder %s272, 0
      %s275 = sadd.s32 %s274, 1
      %s276 = scalar_select %p273, %s274, %s275
      %p279 = pneg %p273
      %p280 = scmp.eq.s32.totalorder %s26, 1
      %p281 = por %p279, %p280
      %p282 = scmp.ne.s32.totalorder %s274, %s277
      %p283 = scmp.eq.s32.totalorder %s26, 0
      %p284 = por %p282, %p283
      %p285 = scmp.ne.s32.totalorder %s274, %s277
      %p286 = scmp.eq.s32.totalorder %s31, 1
      %p287 = por %p285, %p286
      %p288 = scmp.ne.s32.totalorder %s277, %s278
      %p289 = scmp.eq.s32.totalorder %s31, 0
      %p290 = por %p288, %p289
      %p291 = scmp.ne.s32.totalorder %s277, %s278
      %p292 = scmp.eq.s32.totalorder %s32, 1
      %p293 = por %p291, %p292
      %p295 = scmp.ne.s32.totalorder %s278, %s294
      %p296 = scmp.eq.s32.totalorder %s32, 0
      %p297 = por %p295, %p296
      %p298 = scmp.le.s32.totalorder 1, %s26
      %p299 = scmp.lt.s32.totalorder %s26, 3
      %p300 = pnand %p298, %p299
      %p301 = pneg %p300
      // Predicated region
      $region9: #{crestereo_mf_forward.1} parent=5 // pred_check
        _
      $region10: #{crestereo_mf_forward.1} parent=5 // pred_check_branch
        %303 = sbr.rel (%p300) target = $region12
      $region11: #{crestereo_mf_forward.1} parent=5 // pred_region
        %s304 = ssub.s32 %s26, 1
        // Predicated region
        $region13: #{crestereo_mf_forward.1} parent=11 // pred_check
          %p305 = pneg %p115
        $region14: #{crestereo_mf_forward.1} parent=11 // pred_check_branch
          %307 = sbr.rel (%p305) target = $region16
        $region15: #{crestereo_mf_forward.1} parent=11 // pred_region
          _
        $region16: #{crestereo_mf_forward.1} parent=11 // pred_fallthru
          _
        // Predicated region
        $region17: #{crestereo_mf_forward.1} parent=11 // pred_check
          %p308 = pneg %p136
        $region18: #{crestereo_mf_forward.1} parent=11 // pred_check_branch
          %310 = sbr.rel (%p308) target = $region20
        $region19: #{crestereo_mf_forward.1} parent=11 // pred_region
          _
        $region20: #{crestereo_mf_forward.1} parent=11 // pred_fallthru
          _
        // Predicated region
        $region21: #{crestereo_mf_forward.1} parent=11 // pred_check
          %p311 = pneg %p157
        $region22: #{crestereo_mf_forward.1} parent=11 // pred_check_branch
          %313 = sbr.rel (%p311) target = $region24
        $region23: #{crestereo_mf_forward.1} parent=11 // pred_region
          _
        $region24: #{crestereo_mf_forward.1} parent=11 // pred_fallthru
          _
        // Predicated region
        $region25: #{crestereo_mf_forward.1} parent=11 // pred_check
          %p314 = pneg %p178
        $region26: #{crestereo_mf_forward.1} parent=11 // pred_check_branch
          %316 = sbr.rel (%p314) target = $region28
        $region27: #{crestereo_mf_forward.1} parent=11 // pred_region
          %318 = vsyncadd [#allocation4], 0
          %s320 = sshll.u32 %s5, 4
          %s321 = int_to_ptr.vmem [resolvable:$true] %s320
          %323 = dma.vmem_to_smem %s321, 16, [#allocation2], [#allocation4]
        $region28: #{crestereo_mf_forward.1} parent=11 // pred_fallthru
          _
      $region12: #{crestereo_mf_forward.1} parent=5 // pred_fallthru
        _
      %p324 = scmp.lt.s32.totalorder %s26, 2
      // Predicated region
      $region29: #{crestereo_mf_forward.1} parent=5 // pred_check
        %p325 = pneg %p324
      $region30: #{crestereo_mf_forward.1} parent=5 // pred_check_branch
        %327 = sbr.rel (%p325) target = $region32
      $region31: #{crestereo_mf_forward.1} parent=5 // pred_region
        // Predicated region
        $region33: #{crestereo_mf_forward.1} parent=31 // pred_check
          %p328 = pneg %p60
        $region34: #{crestereo_mf_forward.1} parent=31 // pred_check_branch
          %330 = sbr.rel (%p328) target = $region36
        $region35: #{crestereo_mf_forward.1} parent=31 // pred_region
          %s331 = smul.u32 2, %s34
          %p332 = scmp.lt.s32.totalorder %s33, 1
          %s333 = scalar_select %p332, %s33, 1
          %p334 = scmp.lt.s32.totalorder %s331, 1
          %s335 = scalar_select %p334, %s331, 1
          %s336 = smul.addr %s333, 6
          %s337 = sadd.s32 %s335, %s336
          %s338 = smul.addr %s337, 8
          %s339 = scalar_lea.vmem %s0, %s338
          %s340 = smul.u32 2, %s34
        $region36: #{crestereo_mf_forward.1} parent=31 // pred_fallthru
          _
        // Predicated region
        $region37: #{crestereo_mf_forward.1} parent=31 // pred_check
          %p341 = pneg %p88
        $region38: #{crestereo_mf_forward.1} parent=31 // pred_check_branch
          %343 = sbr.rel (%p341) target = $region40
        $region39: #{crestereo_mf_forward.1} parent=31 // pred_region
          %s344 = smul.u32 2, %s34
          %p345 = scmp.lt.s32.totalorder %s33, 1
          %s346 = scalar_select %p345, %s33, 1
          %p347 = scmp.lt.s32.totalorder %s344, 1
          %s348 = scalar_select %p347, %s344, 1
          %s349 = smul.addr %s346, 6
          %s350 = sadd.s32 %s348, %s349
          %s351 = smul.addr %s350, 8
          %s352 = scalar_lea.vmem %s1, %s351
          %s353 = smul.u32 2, %s34
        $region40: #{crestereo_mf_forward.1} parent=31 // pred_fallthru
          _
      $region32: #{crestereo_mf_forward.1} parent=5 // pred_fallthru
        _
      %p354 = scmp.le.s32.totalorder 1, %s26
      %p355 = scmp.lt.s32.totalorder %s26, 3
      %p356 = pnand %p354, %p355
      %p357 = pneg %p356
      // Predicated region
      $region41: #{crestereo_mf_forward.1} parent=5 // pred_check
        _
      $region42: #{crestereo_mf_forward.1} parent=5 // pred_check_branch
        %359 = sbr.rel (%p356) target = $region44
      $region43: #{crestereo_mf_forward.1} parent=5 // pred_region
        %s360 = ssub.s32 %s26, 1
        // Predicated region
        $region45: #{crestereo_mf_forward.1} parent=43 // pred_check
          %p361 = pneg %p178
        $region46: #{crestereo_mf_forward.1} parent=43 // pred_check_branch
          %363 = sbr.rel (%p361) target = $region48
        $region47: #{crestereo_mf_forward.1} parent=43 // pred_region
          %365 = dma.done [#allocation4], 16
        $region48: #{crestereo_mf_forward.1} parent=43 // pred_fallthru
          _
        %366 = sfence
        %s367 = smul.u32 2, %s36
        %p368 = scmp.lt.s32.totalorder %s35, 1
        %s369 = scalar_select %p368, %s35, 1
        %p370 = scmp.lt.s32.totalorder %s367, 1
        %s371 = scalar_select %p370, %s367, 1
        %s372 = smul.addr %s369, 6
        %s373 = sadd.s32 %s371, %s372
        %s374 = smul.addr %s373, 8
        %s375 = scalar_lea.vmem %s0, %s374
        %p376 = pneg %p66
        %p377 = pneg %p63
        %s378 = smul.u32 2, %s36
        %p379 = scmp.lt.s32.totalorder %s35, 1
        %s380 = scalar_select %p379, %s35, 1
        %p381 = scmp.lt.s32.totalorder %s378, 1
        %s382 = scalar_select %p381, %s378, 1
        %s383 = smul.addr %s380, 6
        %s384 = sadd.s32 %s382, %s383
        %s385 = smul.addr %s384, 8
        %s386 = scalar_lea.vmem %s1, %s385
        %p387 = pneg %p94
        %p388 = pneg %p91
        %p389 = pneg %p115
        %p390 = pneg %p112
        %p391 = pneg %p136
        %p392 = pneg %p133
        %p393 = pneg %p157
        %p394 = pneg %p154
        %p395 = pneg %p178
        %p396 = pneg %p175
        %p397 = pneg %p206
        %p398 = pneg %p203
        %s399 = sand.u32 %s193, 1
        %s400 = scalar_lea.sflag [#allocation3], %s399
        %s401 = sand.u32 %s193, 1
        %s402 = smul.addr %s401, 32
        %s403 = scalar_lea.vmem [#allocation5], %s402
        %p404 = pneg %p234
        %p405 = pneg %p231
        %s406 = sand.u32 %s31, 1
        %s407 = scalar_lea.sflag [#allocation7], %s406
        %s408 = sand.u32 %s221, 1
        %s409 = smul.addr %s408, 32
        %s410 = scalar_lea.vmem [#allocation6], %s409
        %p411 = pneg %p262
        %p412 = pneg %p259
        %s413 = sand.u32 %s31, 1
        %s414 = scalar_lea.sflag [#allocation7], %s413
        %s415 = sand.u32 %s249, 1
        %s416 = smul.addr %s415, 16
        %s417 = scalar_lea.vmem [#allocation8], %s416
        %p418 = pneg %p290
        %p419 = pneg %p287
        %s420 = sand.u32 %s277, 1
        %s421 = scalar_lea.sflag [#allocation10], %s420
        %s422 = sand.u32 %s277, 1
        %s423 = smul.addr %s422, 8
        %s424 = scalar_lea.vmem [#allocation9], %s423
        %s425 = smul.u32 2, %s36
        %p426 = scmp.lt.s32.totalorder %s35, 1
        %s427 = scalar_select %p426, %s35, 1
        %p428 = scmp.lt.s32.totalorder %s425, 1
        %s429 = scalar_select %p428, %s425, 1
        %s430 = smul.addr %s427, 6
        %s431 = sadd.s32 %s429, %s430
        %s432 = smul.addr %s431, 8
        %s433 = scalar_lea.vmem %s0, %s432
        %s434 = smul.u32 2, %s36
        %s435 = smul.u32 2, %s36
        %p436 = scmp.lt.s32.totalorder %s35, 1
        %s437 = scalar_select %p436, %s35, 1
        %p438 = scmp.lt.s32.totalorder %s435, 1
        %s439 = scalar_select %p438, %s435, 1
        %s440 = smul.addr %s437, 6
        %s441 = sadd.s32 %s439, %s440
        %s442 = smul.addr %s441, 8
        %s443 = scalar_lea.vmem %s1, %s442
        %s444 = smul.u32 2, %s36
        %s445 = smul.u32 2, %s36
        %s446 = smul.u32 2, %s36
        %s447 = smul.u32 2, %s36
        %v448 = vld [vmem:[%s2] sm:$0xff]
        %v449 = vld [vmem:[%s2 + $0x8] sm:$0xff]
        %v450 = vld [vmem:[%s2 + $0x10] sm:$0xff]
        %v451 = vld [vmem:[%s2 + $0x18] sm:$0xff]
        %453 = vset.pattern.permute.xlu0 3
        %454 = vperm.xlu0 %453, %v448
        %v455 = vpop.permute.xlu0 %454
        %458 = vset.pattern.permute.xlu0 3
        %459 = vperm.xlu0 %458, %v449
        %v460 = vpop.permute.xlu0 %459
        %463 = vset.pattern.permute.xlu0 3
        %464 = vperm.xlu0 %463, %v450
        %v465 = vpop.permute.xlu0 %464
        %468 = vset.pattern.permute.xlu0 3
        %469 = vperm.xlu0 %468, %v451
        %v470 = vpop.permute.xlu0 %469
        %v472 = vld [vmem:[%s433] sm:$0xff]
        %v473 = vld [vmem:[%s433 + $0x8] sm:$0xff]
        %v476 = vrot.slane %v472, 1
        %v477 = vrot.slane %v472, 2
        %v478 = vrot.slane %v472, 3
        %v479 = vrot.slane %v472, 4
        %v480 = vrot.slane %v472, 5
        %v481 = vrot.slane %v472, 6
        %v482 = vrot.slane %v472, 7
        %v483 = vrot.slane %v473, 1
        %v484 = vrot.slane %v473, 2
        %v485 = vrot.slane %v473, 3
        %v486 = vrot.slane %v473, 4
        %v487 = vrot.slane %v473, 5
        %v488 = vrot.slane %v473, 6
        %v489 = vrot.slane %v473, 7
        %v490 = vperm.slane %v472, 0
        %v491 = vperm.slane %v476, 0
        %v492 = vperm.slane %v477, 0
        %v493 = vperm.slane %v478, 0
        %v494 = vperm.slane %v479, 0
        %v495 = vperm.slane %v480, 0
        %v496 = vperm.slane %v481, 0
        %v497 = vperm.slane %v482, 0
        %v498 = vperm.slane %v473, 0
        %v499 = vperm.slane %v483, 0
        %v500 = vperm.slane %v484, 0
        %v501 = vperm.slane %v485, 0
        %v502 = vperm.slane %v486, 0
        %v503 = vperm.slane %v487, 0
        %v504 = vperm.slane %v488, 0
        %v505 = vperm.slane %v489, 0
        %522 = vset.pattern.permute.xlu0 0
        %523 = vperm.xlu0 %522, %v448
        %v524 = vpop.permute.xlu0 %523
        %526 = vset.pattern.permute.xlu0 0
        %527 = vperm.xlu0 %526, %v449
        %v528 = vpop.permute.xlu0 %527
        %530 = vset.pattern.permute.xlu0 0
        %531 = vperm.xlu0 %530, %v450
        %v532 = vpop.permute.xlu0 %531
        %534 = vset.pattern.permute.xlu0 0
        %535 = vperm.xlu0 %534, %v451
        %v536 = vpop.permute.xlu0 %535
        %v538 = vmul.f32 %v490, %v524
        %v539 = vmul.f32 %v490, %v528
        %v540 = vmul.f32 %v490, %v532
        %v541 = vmul.f32 %v490, %v536
        %v542 = vmul.f32 %v491, %v524
        %v543 = vmul.f32 %v491, %v528
        %v544 = vmul.f32 %v491, %v532
        %v545 = vmul.f32 %v491, %v536
        %v546 = vmul.f32 %v492, %v524
        %v547 = vmul.f32 %v492, %v528
        %v548 = vmul.f32 %v492, %v532
        %v549 = vmul.f32 %v492, %v536
        %v550 = vmul.f32 %v493, %v524
        %v551 = vmul.f32 %v493, %v528
        %v552 = vmul.f32 %v493, %v532
        %v553 = vmul.f32 %v493, %v536
        %v554 = vmul.f32 %v494, %v524
        %v555 = vmul.f32 %v494, %v528
        %v556 = vmul.f32 %v494, %v532
        %v557 = vmul.f32 %v494, %v536
        %v558 = vmul.f32 %v495, %v524
        %v559 = vmul.f32 %v495, %v528
        %v560 = vmul.f32 %v495, %v532
        %v561 = vmul.f32 %v495, %v536
        %v562 = vmul.f32 %v496, %v524
        %v563 = vmul.f32 %v496, %v528
        %v564 = vmul.f32 %v496, %v532
        %v565 = vmul.f32 %v496, %v536
        %v566 = vmul.f32 %v497, %v524
        %v567 = vmul.f32 %v497, %v528
        %v568 = vmul.f32 %v497, %v532
        %v569 = vmul.f32 %v497, %v536
        %v570 = vmul.f32 %v498, %v524
        %v571 = vmul.f32 %v498, %v528
        %v572 = vmul.f32 %v498, %v532
        %v573 = vmul.f32 %v498, %v536
        %v574 = vmul.f32 %v499, %v524
        %v575 = vmul.f32 %v499, %v528
        %v576 = vmul.f32 %v499, %v532
        %v577 = vmul.f32 %v499, %v536
        %v578 = vmul.f32 %v500, %v524
        %v579 = vmul.f32 %v500, %v528
        %v580 = vmul.f32 %v500, %v532
        %v581 = vmul.f32 %v500, %v536
        %v582 = vmul.f32 %v501, %v524
        %v583 = vmul.f32 %v501, %v528
        %v584 = vmul.f32 %v501, %v532
        %v585 = vmul.f32 %v501, %v536
        %v586 = vmul.f32 %v502, %v524
        %v587 = vmul.f32 %v502, %v528
        %v588 = vmul.f32 %v502, %v532
        %v589 = vmul.f32 %v502, %v536
        %v590 = vmul.f32 %v503, %v524
        %v591 = vmul.f32 %v503, %v528
        %v592 = vmul.f32 %v503, %v532
        %v593 = vmul.f32 %v503, %v536
        %v594 = vmul.f32 %v504, %v524
        %v595 = vmul.f32 %v504, %v528
        %v596 = vmul.f32 %v504, %v532
        %v597 = vmul.f32 %v504, %v536
        %v598 = vmul.f32 %v505, %v524
        %v599 = vmul.f32 %v505, %v528
        %v600 = vmul.f32 %v505, %v532
        %v601 = vmul.f32 %v505, %v536
        %v602 = vadd.f32 %v455, %v538
        %v603 = vadd.f32 %v460, %v539
        %v604 = vadd.f32 %v465, %v540
        %v605 = vadd.f32 %v470, %v541
        %v606 = vadd.f32 %v455, %v542
        %v607 = vadd.f32 %v460, %v543
        %v608 = vadd.f32 %v465, %v544
        %v609 = vadd.f32 %v470, %v545
        %v610 = vadd.f32 %v455, %v546
        %v611 = vadd.f32 %v460, %v547
        %v612 = vadd.f32 %v465, %v548
        %v613 = vadd.f32 %v470, %v549
        %v614 = vadd.f32 %v455, %v550
        %v615 = vadd.f32 %v460, %v551
        %v616 = vadd.f32 %v465, %v552
        %v617 = vadd.f32 %v470, %v553
        %v618 = vadd.f32 %v455, %v554
        %v619 = vadd.f32 %v460, %v555
        %v620 = vadd.f32 %v465, %v556
        %v621 = vadd.f32 %v470, %v557
        %v622 = vadd.f32 %v455, %v558
        %v623 = vadd.f32 %v460, %v559
        %v624 = vadd.f32 %v465, %v560
        %v625 = vadd.f32 %v470, %v561
        %v626 = vadd.f32 %v455, %v562
        %v627 = vadd.f32 %v460, %v563
        %v628 = vadd.f32 %v465, %v564
        %v629 = vadd.f32 %v470, %v565
        %v630 = vadd.f32 %v455, %v566
        %v631 = vadd.f32 %v460, %v567
        %v632 = vadd.f32 %v465, %v568
        %v633 = vadd.f32 %v470, %v569
        %v634 = vadd.f32 %v455, %v570
        %v635 = vadd.f32 %v460, %v571
        %v636 = vadd.f32 %v465, %v572
        %v637 = vadd.f32 %v470, %v573
        %v638 = vadd.f32 %v455, %v574
        %v639 = vadd.f32 %v460, %v575
        %v640 = vadd.f32 %v465, %v576
        %v641 = vadd.f32 %v470, %v577
        %v642 = vadd.f32 %v455, %v578
        %v643 = vadd.f32 %v460, %v579
        %v644 = vadd.f32 %v465, %v580
        %v645 = vadd.f32 %v470, %v581
        %v646 = vadd.f32 %v455, %v582
        %v647 = vadd.f32 %v460, %v583
        %v648 = vadd.f32 %v465, %v584
        %v649 = vadd.f32 %v470, %v585
        %v650 = vadd.f32 %v455, %v586
        %v651 = vadd.f32 %v460, %v587
        %v652 = vadd.f32 %v465, %v588
        %v653 = vadd.f32 %v470, %v589
        %v654 = vadd.f32 %v455, %v590
        %v655 = vadd.f32 %v460, %v591
        %v656 = vadd.f32 %v465, %v592
        %v657 = vadd.f32 %v470, %v593
        %v658 = vadd.f32 %v455, %v594
        %v659 = vadd.f32 %v460, %v595
        %v660 = vadd.f32 %v465, %v596
        %v661 = vadd.f32 %v470, %v597
        %v662 = vadd.f32 %v455, %v598
        %v663 = vadd.f32 %v460, %v599
        %v664 = vadd.f32 %v465, %v600
        %v665 = vadd.f32 %v470, %v601
        %s666 = scalar_lea.vmem %s433, 16
        %v667 = vld [vmem:[%s666] sm:$0xff]
        %v668 = vld [vmem:[%s666 + $0x8] sm:$0xff]
        %v671 = vrot.slane %v667, 1
        %v672 = vrot.slane %v667, 2
        %v673 = vrot.slane %v667, 3
        %v674 = vrot.slane %v667, 4
        %v675 = vrot.slane %v667, 5
        %v676 = vrot.slane %v667, 6
        %v677 = vrot.slane %v667, 7
        %v678 = vrot.slane %v668, 1
        %v679 = vrot.slane %v668, 2
        %v680 = vrot.slane %v668, 3
        %v681 = vrot.slane %v668, 4
        %v682 = vrot.slane %v668, 5
        %v683 = vrot.slane %v668, 6
        %v684 = vrot.slane %v668, 7
        %v685 = vperm.slane %v667, 0
        %v686 = vperm.slane %v671, 0
        %v687 = vperm.slane %v672, 0
        %v688 = vperm.slane %v673, 0
        %v689 = vperm.slane %v674, 0
        %v690 = vperm.slane %v675, 0
        %v691 = vperm.slane %v676, 0
        %v692 = vperm.slane %v677, 0
        %v693 = vperm.slane %v668, 0
        %v694 = vperm.slane %v678, 0
        %v695 = vperm.slane %v679, 0
        %v696 = vperm.slane %v680, 0
        %v697 = vperm.slane %v681, 0
        %v698 = vperm.slane %v682, 0
        %v699 = vperm.slane %v683, 0
        %v700 = vperm.slane %v684, 0
        %717 = vset.pattern.permute.xlu0 1
        %718 = vperm.xlu0 %717, %v448
        %v719 = vpop.permute.xlu0 %718
        %721 = vset.pattern.permute.xlu0 1
        %722 = vperm.xlu0 %721, %v449
        %v723 = vpop.permute.xlu0 %722
        %725 = vset.pattern.permute.xlu0 1
        %726 = vperm.xlu0 %725, %v450
        %v727 = vpop.permute.xlu0 %726
        %729 = vset.pattern.permute.xlu0 1
        %730 = vperm.xlu0 %729, %v451
        %v731 = vpop.permute.xlu0 %730
        %v733 = vmul.f32 %v685, %v719
        %v734 = vmul.f32 %v685, %v723
        %v735 = vmul.f32 %v685, %v727
        %v736 = vmul.f32 %v685, %v731
        %v737 = vmul.f32 %v686, %v719
        %v738 = vmul.f32 %v686, %v723
        %v739 = vmul.f32 %v686, %v727
        %v740 = vmul.f32 %v686, %v731
        %v741 = vmul.f32 %v687, %v719
        %v742 = vmul.f32 %v687, %v723
        %v743 = vmul.f32 %v687, %v727
        %v744 = vmul.f32 %v687, %v731
        %v745 = vmul.f32 %v688, %v719
        %v746 = vmul.f32 %v688, %v723
        %v747 = vmul.f32 %v688, %v727
        %v748 = vmul.f32 %v688, %v731
        %v749 = vmul.f32 %v689, %v719
        %v750 = vmul.f32 %v689, %v723
        %v751 = vmul.f32 %v689, %v727
        %v752 = vmul.f32 %v689, %v731
        %v753 = vmul.f32 %v690, %v719
        %v754 = vmul.f32 %v690, %v723
        %v755 = vmul.f32 %v690, %v727
        %v756 = vmul.f32 %v690, %v731
        %v757 = vmul.f32 %v691, %v719
        %v758 = vmul.f32 %v691, %v723
        %v759 = vmul.f32 %v691, %v727
        %v760 = vmul.f32 %v691, %v731
        %v761 = vmul.f32 %v692, %v719
        %v762 = vmul.f32 %v692, %v723
        %v763 = vmul.f32 %v692, %v727
        %v764 = vmul.f32 %v692, %v731
        %v765 = vmul.f32 %v693, %v719
        %v766 = vmul.f32 %v693, %v723
        %v767 = vmul.f32 %v693, %v727
        %v768 = vmul.f32 %v693, %v731
        %v769 = vmul.f32 %v694, %v719
        %v770 = vmul.f32 %v694, %v723
        %v771 = vmul.f32 %v694, %v727
        %v772 = vmul.f32 %v694, %v731
        %v773 = vmul.f32 %v695, %v719
        %v774 = vmul.f32 %v695, %v723
        %v775 = vmul.f32 %v695, %v727
        %v776 = vmul.f32 %v695, %v731
        %v777 = vmul.f32 %v696, %v719
        %v778 = vmul.f32 %v696, %v723
        %v779 = vmul.f32 %v696, %v727
        %v780 = vmul.f32 %v696, %v731
        %v781 = vmul.f32 %v697, %v719
        %v782 = vmul.f32 %v697, %v723
        %v783 = vmul.f32 %v697, %v727
        %v784 = vmul.f32 %v697, %v731
        %v785 = vmul.f32 %v698, %v719
        %v786 = vmul.f32 %v698, %v723
        %v787 = vmul.f32 %v698, %v727
        %v788 = vmul.f32 %v698, %v731
        %v789 = vmul.f32 %v699, %v719
        %v790 = vmul.f32 %v699, %v723
        %v791 = vmul.f32 %v699, %v727
        %v792 = vmul.f32 %v699, %v731
        %v793 = vmul.f32 %v700, %v719
        %v794 = vmul.f32 %v700, %v723
        %v795 = vmul.f32 %v700, %v727
        %v796 = vmul.f32 %v700, %v731
        %v797 = vadd.f32 %v602, %v733
        %v798 = vadd.f32 %v603, %v734
        %v799 = vadd.f32 %v604, %v735
        %v800 = vadd.f32 %v605, %v736
        %v801 = vadd.f32 %v606, %v737
        %v802 = vadd.f32 %v607, %v738
        %v803 = vadd.f32 %v608, %v739
        %v804 = vadd.f32 %v609, %v740
        %v805 = vadd.f32 %v610, %v741
        %v806 = vadd.f32 %v611, %v742
        %v807 = vadd.f32 %v612, %v743
        %v808 = vadd.f32 %v613, %v744
        %v809 = vadd.f32 %v614, %v745
        %v810 = vadd.f32 %v615, %v746
        %v811 = vadd.f32 %v616, %v747
        %v812 = vadd.f32 %v617, %v748
        %v813 = vadd.f32 %v618, %v749
        %v814 = vadd.f32 %v619, %v750
        %v815 = vadd.f32 %v620, %v751
        %v816 = vadd.f32 %v621, %v752
        %v817 = vadd.f32 %v622, %v753
        %v818 = vadd.f32 %v623, %v754
        %v819 = vadd.f32 %v624, %v755
        %v820 = vadd.f32 %v625, %v756
        %v821 = vadd.f32 %v626, %v757
        %v822 = vadd.f32 %v627, %v758
        %v823 = vadd.f32 %v628, %v759
        %v824 = vadd.f32 %v629, %v760
        %v825 = vadd.f32 %v630, %v761
        %v826 = vadd.f32 %v631, %v762
        %v827 = vadd.f32 %v632, %v763
        %v828 = vadd.f32 %v633, %v764
        %v829 = vadd.f32 %v634, %v765
        %v830 = vadd.f32 %v635, %v766
        %v831 = vadd.f32 %v636, %v767
        %v832 = vadd.f32 %v637, %v768
        %v833 = vadd.f32 %v638, %v769
        %v834 = vadd.f32 %v639, %v770
        %v835 = vadd.f32 %v640, %v771
        %v836 = vadd.f32 %v641, %v772
        %v837 = vadd.f32 %v642, %v773
        %v838 = vadd.f32 %v643, %v774
        %v839 = vadd.f32 %v644, %v775
        %v840 = vadd.f32 %v645, %v776
        %v841 = vadd.f32 %v646, %v777
        %v842 = vadd.f32 %v647, %v778
        %v843 = vadd.f32 %v648, %v779
        %v844 = vadd.f32 %v649, %v780
        %v845 = vadd.f32 %v650, %v781
        %v846 = vadd.f32 %v651, %v782
        %v847 = vadd.f32 %v652, %v783
        %v848 = vadd.f32 %v653, %v784
        %v849 = vadd.f32 %v654, %v785
        %v850 = vadd.f32 %v655, %v786
        %v851 = vadd.f32 %v656, %v787
        %v852 = vadd.f32 %v657, %v788
        %v853 = vadd.f32 %v658, %v789
        %v854 = vadd.f32 %v659, %v790
        %v855 = vadd.f32 %v660, %v791
        %v856 = vadd.f32 %v661, %v792
        %v857 = vadd.f32 %v662, %v793
        %v858 = vadd.f32 %v663, %v794
        %v859 = vadd.f32 %v664, %v795
        %v860 = vadd.f32 %v665, %v796
        %s861 = scalar_lea.vmem %s433, 32
        %v862 = vld [vmem:[%s861] sm:$0xff]
        %v863 = vld [vmem:[%s861 + $0x8] sm:$0xff]
        %v866 = vrot.slane %v862, 1
        %v867 = vrot.slane %v862, 2
        %v868 = vrot.slane %v862, 3
        %v869 = vrot.slane %v862, 4
        %v870 = vrot.slane %v862, 5
        %v871 = vrot.slane %v862, 6
        %v872 = vrot.slane %v862, 7
        %v873 = vrot.slane %v863, 1
        %v874 = vrot.slane %v863, 2
        %v875 = vrot.slane %v863, 3
        %v876 = vrot.slane %v863, 4
        %v877 = vrot.slane %v863, 5
        %v878 = vrot.slane %v863, 6
        %v879 = vrot.slane %v863, 7
        %v880 = vperm.slane %v862, 0
        %v881 = vperm.slane %v866, 0
        %v882 = vperm.slane %v867, 0
        %v883 = vperm.slane %v868, 0
        %v884 = vperm.slane %v869, 0
        %v885 = vperm.slane %v870, 0
        %v886 = vperm.slane %v871, 0
        %v887 = vperm.slane %v872, 0
        %v888 = vperm.slane %v863, 0
        %v889 = vperm.slane %v873, 0
        %v890 = vperm.slane %v874, 0
        %v891 = vperm.slane %v875, 0
        %v892 = vperm.slane %v876, 0
        %v893 = vperm.slane %v877, 0
        %v894 = vperm.slane %v878, 0
        %v895 = vperm.slane %v879, 0
        %912 = vset.pattern.permute.xlu0 2
        %913 = vperm.xlu0 %912, %v448
        %v914 = vpop.permute.xlu0 %913
        %916 = vset.pattern.permute.xlu0 2
        %917 = vperm.xlu0 %916, %v449
        %v918 = vpop.permute.xlu0 %917
        %920 = vset.pattern.permute.xlu0 2
        %921 = vperm.xlu0 %920, %v450
        %v922 = vpop.permute.xlu0 %921
        %924 = vset.pattern.permute.xlu0 2
        %925 = vperm.xlu0 %924, %v451
        %v926 = vpop.permute.xlu0 %925
        %v928 = vmul.f32 %v880, %v914
        %v929 = vmul.f32 %v880, %v918
        %v930 = vmul.f32 %v880, %v922
        %v931 = vmul.f32 %v880, %v926
        %v932 = vmul.f32 %v881, %v914
        %v933 = vmul.f32 %v881, %v918
        %v934 = vmul.f32 %v881, %v922
        %v935 = vmul.f32 %v881, %v926
        %v936 = vmul.f32 %v882, %v914
        %v937 = vmul.f32 %v882, %v918
        %v938 = vmul.f32 %v882, %v922
        %v939 = vmul.f32 %v882, %v926
        %v940 = vmul.f32 %v883, %v914
        %v941 = vmul.f32 %v883, %v918
        %v942 = vmul.f32 %v883, %v922
        %v943 = vmul.f32 %v883, %v926
        %v944 = vmul.f32 %v884, %v914
        %v945 = vmul.f32 %v884, %v918
        %v946 = vmul.f32 %v884, %v922
        %v947 = vmul.f32 %v884, %v926
        %v948 = vmul.f32 %v885, %v914
        %v949 = vmul.f32 %v885, %v918
        %v950 = vmul.f32 %v885, %v922
        %v951 = vmul.f32 %v885, %v926
        %v952 = vmul.f32 %v886, %v914
        %v953 = vmul.f32 %v886, %v918
        %v954 = vmul.f32 %v886, %v922
        %v955 = vmul.f32 %v886, %v926
        %v956 = vmul.f32 %v887, %v914
        %v957 = vmul.f32 %v887, %v918
        %v958 = vmul.f32 %v887, %v922
        %v959 = vmul.f32 %v887, %v926
        %v960 = vmul.f32 %v888, %v914
        %v961 = vmul.f32 %v888, %v918
        %v962 = vmul.f32 %v888, %v922
        %v963 = vmul.f32 %v888, %v926
        %v964 = vmul.f32 %v889, %v914
        %v965 = vmul.f32 %v889, %v918
        %v966 = vmul.f32 %v889, %v922
        %v967 = vmul.f32 %v889, %v926
        %v968 = vmul.f32 %v890, %v914
        %v969 = vmul.f32 %v890, %v918
        %v970 = vmul.f32 %v890, %v922
        %v971 = vmul.f32 %v890, %v926
        %v972 = vmul.f32 %v891, %v914
        %v973 = vmul.f32 %v891, %v918
        %v974 = vmul.f32 %v891, %v922
        %v975 = vmul.f32 %v891, %v926
        %v976 = vmul.f32 %v892, %v914
        %v977 = vmul.f32 %v892, %v918
        %v978 = vmul.f32 %v892, %v922
        %v979 = vmul.f32 %v892, %v926
        %v980 = vmul.f32 %v893, %v914
        %v981 = vmul.f32 %v893, %v918
        %v982 = vmul.f32 %v893, %v922
        %v983 = vmul.f32 %v893, %v926
        %v984 = vmul.f32 %v894, %v914
        %v985 = vmul.f32 %v894, %v918
        %v986 = vmul.f32 %v894, %v922
        %v987 = vmul.f32 %v894, %v926
        %v988 = vmul.f32 %v895, %v914
        %v989 = vmul.f32 %v895, %v918
        %v990 = vmul.f32 %v895, %v922
        %v991 = vmul.f32 %v895, %v926
        %v992 = vadd.f32 %v797, %v928
        %v993 = vadd.f32 %v798, %v929
        %v994 = vadd.f32 %v799, %v930
        %v995 = vadd.f32 %v800, %v931
        %v996 = vadd.f32 %v801, %v932
        %v997 = vadd.f32 %v802, %v933
        %v998 = vadd.f32 %v803, %v934
        %v999 = vadd.f32 %v804, %v935
        %v1000 = vadd.f32 %v805, %v936
        %v1001 = vadd.f32 %v806, %v937
        %v1002 = vadd.f32 %v807, %v938
        %v1003 = vadd.f32 %v808, %v939
        %v1004 = vadd.f32 %v809, %v940
        %v1005 = vadd.f32 %v810, %v941
        %v1006 = vadd.f32 %v811, %v942
        %v1007 = vadd.f32 %v812, %v943
        %v1008 = vadd.f32 %v813, %v944
        %v1009 = vadd.f32 %v814, %v945
        %v1010 = vadd.f32 %v815, %v946
        %v1011 = vadd.f32 %v816, %v947
        %v1012 = vadd.f32 %v817, %v948
        %v1013 = vadd.f32 %v818, %v949
        %v1014 = vadd.f32 %v819, %v950
        %v1015 = vadd.f32 %v820, %v951
        %v1016 = vadd.f32 %v821, %v952
        %v1017 = vadd.f32 %v822, %v953
        %v1018 = vadd.f32 %v823, %v954
        %v1019 = vadd.f32 %v824, %v955
        %v1020 = vadd.f32 %v825, %v956
        %v1021 = vadd.f32 %v826, %v957
        %v1022 = vadd.f32 %v827, %v958
        %v1023 = vadd.f32 %v828, %v959
        %v1024 = vadd.f32 %v829, %v960
        %v1025 = vadd.f32 %v830, %v961
        %v1026 = vadd.f32 %v831, %v962
        %v1027 = vadd.f32 %v832, %v963
        %v1028 = vadd.f32 %v833, %v964
        %v1029 = vadd.f32 %v834, %v965
        %v1030 = vadd.f32 %v835, %v966
        %v1031 = vadd.f32 %v836, %v967
        %v1032 = vadd.f32 %v837, %v968
        %v1033 = vadd.f32 %v838, %v969
        %v1034 = vadd.f32 %v839, %v970
        %v1035 = vadd.f32 %v840, %v971
        %v1036 = vadd.f32 %v841, %v972
        %v1037 = vadd.f32 %v842, %v973
        %v1038 = vadd.f32 %v843, %v974
        %v1039 = vadd.f32 %v844, %v975
        %v1040 = vadd.f32 %v845, %v976
        %v1041 = vadd.f32 %v846, %v977
        %v1042 = vadd.f32 %v847, %v978
        %v1043 = vadd.f32 %v848, %v979
        %v1044 = vadd.f32 %v849, %v980
        %v1045 = vadd.f32 %v850, %v981
        %v1046 = vadd.f32 %v851, %v982
        %v1047 = vadd.f32 %v852, %v983
        %v1048 = vadd.f32 %v853, %v984
        %v1049 = vadd.f32 %v854, %v985
        %v1050 = vadd.f32 %v855, %v986
        %v1051 = vadd.f32 %v856, %v987
        %v1052 = vadd.f32 %v857, %v988
        %v1053 = vadd.f32 %v858, %v989
        %v1054 = vadd.f32 %v859, %v990
        %v1055 = vadd.f32 %v860, %v991
        %1056 = vset.pattern.permute.xlu0 7
        %1057 = vperm.xlu0 %1056, %v448
        %v1058 = vpop.permute.xlu0 %1057
        %1060 = vset.pattern.permute.xlu0 7
        %1061 = vperm.xlu0 %1060, %v449
        %v1062 = vpop.permute.xlu0 %1061
        %1064 = vset.pattern.permute.xlu0 7
        %1065 = vperm.xlu0 %1064, %v450
        %v1066 = vpop.permute.xlu0 %1065
        %1068 = vset.pattern.permute.xlu0 7
        %1069 = vperm.xlu0 %1068, %v451
        %v1070 = vpop.permute.xlu0 %1069
        %v1072 = vld [vmem:[%s443] sm:$0xff]
        %v1073 = vld [vmem:[%s443 + $0x8] sm:$0xff]
        %v1076 = vrot.slane %v1072, 1
        %v1077 = vrot.slane %v1072, 2
        %v1078 = vrot.slane %v1072, 3
        %v1079 = vrot.slane %v1072, 4
        %v1080 = vrot.slane %v1072, 5
        %v1081 = vrot.slane %v1072, 6
        %v1082 = vrot.slane %v1072, 7
        %v1083 = vrot.slane %v1073, 1
        %v1084 = vrot.slane %v1073, 2
        %v1085 = vrot.slane %v1073, 3
        %v1086 = vrot.slane %v1073, 4
        %v1087 = vrot.slane %v1073, 5
        %v1088 = vrot.slane %v1073, 6
        %v1089 = vrot.slane %v1073, 7
        %v1090 = vperm.slane %v1072, 0
        %v1091 = vperm.slane %v1076, 0
        %v1092 = vperm.slane %v1077, 0
        %v1093 = vperm.slane %v1078, 0
        %v1094 = vperm.slane %v1079, 0
        %v1095 = vperm.slane %v1080, 0
        %v1096 = vperm.slane %v1081, 0
        %v1097 = vperm.slane %v1082, 0
        %v1098 = vperm.slane %v1073, 0
        %v1099 = vperm.slane %v1083, 0
        %v1100 = vperm.slane %v1084, 0
        %v1101 = vperm.slane %v1085, 0
        %v1102 = vperm.slane %v1086, 0
        %v1103 = vperm.slane %v1087, 0
        %v1104 = vperm.slane %v1088, 0
        %v1105 = vperm.slane %v1089, 0
        %1122 = vset.pattern.permute.xlu0 4
        %1123 = vperm.xlu0 %1122, %v448
        %v1124 = vpop.permute.xlu0 %1123
        %1126 = vset.pattern.permute.xlu0 4
        %1127 = vperm.xlu0 %1126, %v449
        %v1128 = vpop.permute.xlu0 %1127
        %1130 = vset.pattern.permute.xlu0 4
        %1131 = vperm.xlu0 %1130, %v450
        %v1132 = vpop.permute.xlu0 %1131
        %1134 = vset.pattern.permute.xlu0 4
        %1135 = vperm.xlu0 %1134, %v451
        %v1136 = vpop.permute.xlu0 %1135
        %v1138 = vmul.f32 %v1090, %v1124
        %v1139 = vmul.f32 %v1090, %v1128
        %v1140 = vmul.f32 %v1090, %v1132
        %v1141 = vmul.f32 %v1090, %v1136
        %v1142 = vmul.f32 %v1091, %v1124
        %v1143 = vmul.f32 %v1091, %v1128
        %v1144 = vmul.f32 %v1091, %v1132
        %v1145 = vmul.f32 %v1091, %v1136
        %v1146 = vmul.f32 %v1092, %v1124
        %v1147 = vmul.f32 %v1092, %v1128
        %v1148 = vmul.f32 %v1092, %v1132
        %v1149 = vmul.f32 %v1092, %v1136
        %v1150 = vmul.f32 %v1093, %v1124
        %v1151 = vmul.f32 %v1093, %v1128
        %v1152 = vmul.f32 %v1093, %v1132
        %v1153 = vmul.f32 %v1093, %v1136
        %v1154 = vmul.f32 %v1094, %v1124
        %v1155 = vmul.f32 %v1094, %v1128
        %v1156 = vmul.f32 %v1094, %v1132
        %v1157 = vmul.f32 %v1094, %v1136
        %v1158 = vmul.f32 %v1095, %v1124
        %v1159 = vmul.f32 %v1095, %v1128
        %v1160 = vmul.f32 %v1095, %v1132
        %v1161 = vmul.f32 %v1095, %v1136
        %v1162 = vmul.f32 %v1096, %v1124
        %v1163 = vmul.f32 %v1096, %v1128
        %v1164 = vmul.f32 %v1096, %v1132
        %v1165 = vmul.f32 %v1096, %v1136
        %v1166 = vmul.f32 %v1097, %v1124
        %v1167 = vmul.f32 %v1097, %v1128
        %v1168 = vmul.f32 %v1097, %v1132
        %v1169 = vmul.f32 %v1097, %v1136
        %v1170 = vmul.f32 %v1098, %v1124
        %v1171 = vmul.f32 %v1098, %v1128
        %v1172 = vmul.f32 %v1098, %v1132
        %v1173 = vmul.f32 %v1098, %v1136
        %v1174 = vmul.f32 %v1099, %v1124
        %v1175 = vmul.f32 %v1099, %v1128
        %v1176 = vmul.f32 %v1099, %v1132
        %v1177 = vmul.f32 %v1099, %v1136
        %v1178 = vmul.f32 %v1100, %v1124
        %v1179 = vmul.f32 %v1100, %v1128
        %v1180 = vmul.f32 %v1100, %v1132
        %v1181 = vmul.f32 %v1100, %v1136
        %v1182 = vmul.f32 %v1101, %v1124
        %v1183 = vmul.f32 %v1101, %v1128
        %v1184 = vmul.f32 %v1101, %v1132
        %v1185 = vmul.f32 %v1101, %v1136
        %v1186 = vmul.f32 %v1102, %v1124
        %v1187 = vmul.f32 %v1102, %v1128
        %v1188 = vmul.f32 %v1102, %v1132
        %v1189 = vmul.f32 %v1102, %v1136
        %v1190 = vmul.f32 %v1103, %v1124
        %v1191 = vmul.f32 %v1103, %v1128
        %v1192 = vmul.f32 %v1103, %v1132
        %v1193 = vmul.f32 %v1103, %v1136
        %v1194 = vmul.f32 %v1104, %v1124
        %v1195 = vmul.f32 %v1104, %v1128
        %v1196 = vmul.f32 %v1104, %v1132
        %v1197 = vmul.f32 %v1104, %v1136
        %v1198 = vmul.f32 %v1105, %v1124
        %v1199 = vmul.f32 %v1105, %v1128
        %v1200 = vmul.f32 %v1105, %v1132
        %v1201 = vmul.f32 %v1105, %v1136
        %v1202 = vadd.f32 %v1058, %v1138
        %v1203 = vadd.f32 %v1062, %v1139
        %v1204 = vadd.f32 %v1066, %v1140
        %v1205 = vadd.f32 %v1070, %v1141
        %v1206 = vadd.f32 %v1058, %v1142
        %v1207 = vadd.f32 %v1062, %v1143
        %v1208 = vadd.f32 %v1066, %v1144
        %v1209 = vadd.f32 %v1070, %v1145
        %v1210 = vadd.f32 %v1058, %v1146
        %v1211 = vadd.f32 %v1062, %v1147
        %v1212 = vadd.f32 %v1066, %v1148
        %v1213 = vadd.f32 %v1070, %v1149
        %v1214 = vadd.f32 %v1058, %v1150
        %v1215 = vadd.f32 %v1062, %v1151
        %v1216 = vadd.f32 %v1066, %v1152
        %v1217 = vadd.f32 %v1070, %v1153
        %v1218 = vadd.f32 %v1058, %v1154
        %v1219 = vadd.f32 %v1062, %v1155
        %v1220 = vadd.f32 %v1066, %v1156
        %v1221 = vadd.f32 %v1070, %v1157
        %v1222 = vadd.f32 %v1058, %v1158
        %v1223 = vadd.f32 %v1062, %v1159
        %v1224 = vadd.f32 %v1066, %v1160
        %v1225 = vadd.f32 %v1070, %v1161
        %v1226 = vadd.f32 %v1058, %v1162
        %v1227 = vadd.f32 %v1062, %v1163
        %v1228 = vadd.f32 %v1066, %v1164
        %v1229 = vadd.f32 %v1070, %v1165
        %v1230 = vadd.f32 %v1058, %v1166
        %v1231 = vadd.f32 %v1062, %v1167
        %v1232 = vadd.f32 %v1066, %v1168
        %v1233 = vadd.f32 %v1070, %v1169
        %v1234 = vadd.f32 %v1058, %v1170
        %v1235 = vadd.f32 %v1062, %v1171
        %v1236 = vadd.f32 %v1066, %v1172
        %v1237 = vadd.f32 %v1070, %v1173
        %v1238 = vadd.f32 %v1058, %v1174
        %v1239 = vadd.f32 %v1062, %v1175
        %v1240 = vadd.f32 %v1066, %v1176
        %v1241 = vadd.f32 %v1070, %v1177
        %v1242 = vadd.f32 %v1058, %v1178
        %v1243 = vadd.f32 %v1062, %v1179
        %v1244 = vadd.f32 %v1066, %v1180
        %v1245 = vadd.f32 %v1070, %v1181
        %v1246 = vadd.f32 %v1058, %v1182
        %v1247 = vadd.f32 %v1062, %v1183
        %v1248 = vadd.f32 %v1066, %v1184
        %v1249 = vadd.f32 %v1070, %v1185
        %v1250 = vadd.f32 %v1058, %v1186
        %v1251 = vadd.f32 %v1062, %v1187
        %v1252 = vadd.f32 %v1066, %v1188
        %v1253 = vadd.f32 %v1070, %v1189
        %v1254 = vadd.f32 %v1058, %v1190
        %v1255 = vadd.f32 %v1062, %v1191
        %v1256 = vadd.f32 %v1066, %v1192
        %v1257 = vadd.f32 %v1070, %v1193
        %v1258 = vadd.f32 %v1058, %v1194
        %v1259 = vadd.f32 %v1062, %v1195
        %v1260 = vadd.f32 %v1066, %v1196
        %v1261 = vadd.f32 %v1070, %v1197
        %v1262 = vadd.f32 %v1058, %v1198
        %v1263 = vadd.f32 %v1062, %v1199
        %v1264 = vadd.f32 %v1066, %v1200
        %v1265 = vadd.f32 %v1070, %v1201
        %s1266 = scalar_lea.vmem %s443, 16
        %v1267 = vld [vmem:[%s1266] sm:$0xff]
        %v1268 = vld [vmem:[%s1266 + $0x8] sm:$0xff]
        %v1271 = vrot.slane %v1267, 1
        %v1272 = vrot.slane %v1267, 2
        %v1273 = vrot.slane %v1267, 3
        %v1274 = vrot.slane %v1267, 4
        %v1275 = vrot.slane %v1267, 5
        %v1276 = vrot.slane %v1267, 6
        %v1277 = vrot.slane %v1267, 7
        %v1278 = vrot.slane %v1268, 1
        %v1279 = vrot.slane %v1268, 2
        %v1280 = vrot.slane %v1268, 3
        %v1281 = vrot.slane %v1268, 4
        %v1282 = vrot.slane %v1268, 5
        %v1283 = vrot.slane %v1268, 6
        %v1284 = vrot.slane %v1268, 7
        %v1285 = vperm.slane %v1267, 0
        %v1286 = vperm.slane %v1271, 0
        %v1287 = vperm.slane %v1272, 0
        %v1288 = vperm.slane %v1273, 0
        %v1289 = vperm.slane %v1274, 0
        %v1290 = vperm.slane %v1275, 0
        %v1291 = vperm.slane %v1276, 0
        %v1292 = vperm.slane %v1277, 0
        %v1293 = vperm.slane %v1268, 0
        %v1294 = vperm.slane %v1278, 0
        %v1295 = vperm.slane %v1279, 0
        %v1296 = vperm.slane %v1280, 0
        %v1297 = vperm.slane %v1281, 0
        %v1298 = vperm.slane %v1282, 0
        %v1299 = vperm.slane %v1283, 0
        %v1300 = vperm.slane %v1284, 0
        %1317 = vset.pattern.permute.xlu0 5
        %1318 = vperm.xlu0 %1317, %v448
        %v1319 = vpop.permute.xlu0 %1318
        %1321 = vset.pattern.permute.xlu0 5
        %1322 = vperm.xlu0 %1321, %v449
        %v1323 = vpop.permute.xlu0 %1322
        %1325 = vset.pattern.permute.xlu0 5
        %1326 = vperm.xlu0 %1325, %v450
        %v1327 = vpop.permute.xlu0 %1326
        %1329 = vset.pattern.permute.xlu0 5
        %1330 = vperm.xlu0 %1329, %v451
        %v1331 = vpop.permute.xlu0 %1330
        %v1333 = vmul.f32 %v1285, %v1319
        %v1334 = vmul.f32 %v1285, %v1323
        %v1335 = vmul.f32 %v1285, %v1327
        %v1336 = vmul.f32 %v1285, %v1331
        %v1337 = vmul.f32 %v1286, %v1319
        %v1338 = vmul.f32 %v1286, %v1323
        %v1339 = vmul.f32 %v1286, %v1327
        %v1340 = vmul.f32 %v1286, %v1331
        %v1341 = vmul.f32 %v1287, %v1319
        %v1342 = vmul.f32 %v1287, %v1323
        %v1343 = vmul.f32 %v1287, %v1327
        %v1344 = vmul.f32 %v1287, %v1331
        %v1345 = vmul.f32 %v1288, %v1319
        %v1346 = vmul.f32 %v1288, %v1323
        %v1347 = vmul.f32 %v1288, %v1327
        %v1348 = vmul.f32 %v1288, %v1331
        %v1349 = vmul.f32 %v1289, %v1319
        %v1350 = vmul.f32 %v1289, %v1323
        %v1351 = vmul.f32 %v1289, %v1327
        %v1352 = vmul.f32 %v1289, %v1331
        %v1353 = vmul.f32 %v1290, %v1319
        %v1354 = vmul.f32 %v1290, %v1323
        %v1355 = vmul.f32 %v1290, %v1327
        %v1356 = vmul.f32 %v1290, %v1331
        %v1357 = vmul.f32 %v1291, %v1319
        %v1358 = vmul.f32 %v1291, %v1323
        %v1359 = vmul.f32 %v1291, %v1327
        %v1360 = vmul.f32 %v1291, %v1331
        %v1361 = vmul.f32 %v1292, %v1319
        %v1362 = vmul.f32 %v1292, %v1323
        %v1363 = vmul.f32 %v1292, %v1327
        %v1364 = vmul.f32 %v1292, %v1331
        %v1365 = vmul.f32 %v1293, %v1319
        %v1366 = vmul.f32 %v1293, %v1323
        %v1367 = vmul.f32 %v1293, %v1327
        %v1368 = vmul.f32 %v1293, %v1331
        %v1369 = vmul.f32 %v1294, %v1319
        %v1370 = vmul.f32 %v1294, %v1323
        %v1371 = vmul.f32 %v1294, %v1327
        %v1372 = vmul.f32 %v1294, %v1331
        %v1373 = vmul.f32 %v1295, %v1319
        %v1374 = vmul.f32 %v1295, %v1323
        %v1375 = vmul.f32 %v1295, %v1327
        %v1376 = vmul.f32 %v1295, %v1331
        %v1377 = vmul.f32 %v1296, %v1319
        %v1378 = vmul.f32 %v1296, %v1323
        %v1379 = vmul.f32 %v1296, %v1327
        %v1380 = vmul.f32 %v1296, %v1331
        %v1381 = vmul.f32 %v1297, %v1319
        %v1382 = vmul.f32 %v1297, %v1323
        %v1383 = vmul.f32 %v1297, %v1327
        %v1384 = vmul.f32 %v1297, %v1331
        %v1385 = vmul.f32 %v1298, %v1319
        %v1386 = vmul.f32 %v1298, %v1323
        %v1387 = vmul.f32 %v1298, %v1327
        %v1388 = vmul.f32 %v1298, %v1331
        %v1389 = vmul.f32 %v1299, %v1319
        %v1390 = vmul.f32 %v1299, %v1323
        %v1391 = vmul.f32 %v1299, %v1327
        %v1392 = vmul.f32 %v1299, %v1331
        %v1393 = vmul.f32 %v1300, %v1319
        %v1394 = vmul.f32 %v1300, %v1323
        %v1395 = vmul.f32 %v1300, %v1327
        %v1396 = vmul.f32 %v1300, %v1331
        %v1397 = vadd.f32 %v1202, %v1333
        %v1398 = vadd.f32 %v1203, %v1334
        %v1399 = vadd.f32 %v1204, %v1335
        %v1400 = vadd.f32 %v1205, %v1336
        %v1401 = vadd.f32 %v1206, %v1337
        %v1402 = vadd.f32 %v1207, %v1338
        %v1403 = vadd.f32 %v1208, %v1339
        %v1404 = vadd.f32 %v1209, %v1340
        %v1405 = vadd.f32 %v1210, %v1341
        %v1406 = vadd.f32 %v1211, %v1342
        %v1407 = vadd.f32 %v1212, %v1343
        %v1408 = vadd.f32 %v1213, %v1344
        %v1409 = vadd.f32 %v1214, %v1345
        %v1410 = vadd.f32 %v1215, %v1346
        %v1411 = vadd.f32 %v1216, %v1347
        %v1412 = vadd.f32 %v1217, %v1348
        %v1413 = vadd.f32 %v1218, %v1349
        %v1414 = vadd.f32 %v1219, %v1350
        %v1415 = vadd.f32 %v1220, %v1351
        %v1416 = vadd.f32 %v1221, %v1352
        %v1417 = vadd.f32 %v1222, %v1353
        %v1418 = vadd.f32 %v1223, %v1354
        %v1419 = vadd.f32 %v1224, %v1355
        %v1420 = vadd.f32 %v1225, %v1356
        %v1421 = vadd.f32 %v1226, %v1357
        %v1422 = vadd.f32 %v1227, %v1358
        %v1423 = vadd.f32 %v1228, %v1359
        %v1424 = vadd.f32 %v1229, %v1360
        %v1425 = vadd.f32 %v1230, %v1361
        %v1426 = vadd.f32 %v1231, %v1362
        %v1427 = vadd.f32 %v1232, %v1363
        %v1428 = vadd.f32 %v1233, %v1364
        %v1429 = vadd.f32 %v1234, %v1365
        %v1430 = vadd.f32 %v1235, %v1366
        %v1431 = vadd.f32 %v1236, %v1367
        %v1432 = vadd.f32 %v1237, %v1368
        %v1433 = vadd.f32 %v1238, %v1369
        %v1434 = vadd.f32 %v1239, %v1370
        %v1435 = vadd.f32 %v1240, %v1371
        %v1436 = vadd.f32 %v1241, %v1372
        %v1437 = vadd.f32 %v1242, %v1373
        %v1438 = vadd.f32 %v1243, %v1374
        %v1439 = vadd.f32 %v1244, %v1375
        %v1440 = vadd.f32 %v1245, %v1376
        %v1441 = vadd.f32 %v1246, %v1377
        %v1442 = vadd.f32 %v1247, %v1378
        %v1443 = vadd.f32 %v1248, %v1379
        %v1444 = vadd.f32 %v1249, %v1380
        %v1445 = vadd.f32 %v1250, %v1381
        %v1446 = vadd.f32 %v1251, %v1382
        %v1447 = vadd.f32 %v1252, %v1383
        %v1448 = vadd.f32 %v1253, %v1384
        %v1449 = vadd.f32 %v1254, %v1385
        %v1450 = vadd.f32 %v1255, %v1386
        %v1451 = vadd.f32 %v1256, %v1387
        %v1452 = vadd.f32 %v1257, %v1388
        %v1453 = vadd.f32 %v1258, %v1389
        %v1454 = vadd.f32 %v1259, %v1390
        %v1455 = vadd.f32 %v1260, %v1391
        %v1456 = vadd.f32 %v1261, %v1392
        %v1457 = vadd.f32 %v1262, %v1393
        %v1458 = vadd.f32 %v1263, %v1394
        %v1459 = vadd.f32 %v1264, %v1395
        %v1460 = vadd.f32 %v1265, %v1396
        %s1461 = scalar_lea.vmem %s443, 32
        %v1462 = vld [vmem:[%s1461] sm:$0xff]
        %v1463 = vld [vmem:[%s1461 + $0x8] sm:$0xff]
        %v1466 = vrot.slane %v1462, 1
        %v1467 = vrot.slane %v1462, 2
        %v1468 = vrot.slane %v1462, 3
        %v1469 = vrot.slane %v1462, 4
        %v1470 = vrot.slane %v1462, 5
        %v1471 = vrot.slane %v1462, 6
        %v1472 = vrot.slane %v1462, 7
        %v1473 = vrot.slane %v1463, 1
        %v1474 = vrot.slane %v1463, 2
        %v1475 = vrot.slane %v1463, 3
        %v1476 = vrot.slane %v1463, 4
        %v1477 = vrot.slane %v1463, 5
        %v1478 = vrot.slane %v1463, 6
        %v1479 = vrot.slane %v1463, 7
        %v1480 = vperm.slane %v1462, 0
        %v1481 = vperm.slane %v1466, 0
        %v1482 = vperm.slane %v1467, 0
        %v1483 = vperm.slane %v1468, 0
        %v1484 = vperm.slane %v1469, 0
        %v1485 = vperm.slane %v1470, 0
        %v1486 = vperm.slane %v1471, 0
        %v1487 = vperm.slane %v1472, 0
        %v1488 = vperm.slane %v1463, 0
        %v1489 = vperm.slane %v1473, 0
        %v1490 = vperm.slane %v1474, 0
        %v1491 = vperm.slane %v1475, 0
        %v1492 = vperm.slane %v1476, 0
        %v1493 = vperm.slane %v1477, 0
        %v1494 = vperm.slane %v1478, 0
        %v1495 = vperm.slane %v1479, 0
        %1512 = vset.pattern.permute.xlu0 6
        %1513 = vperm.xlu0 %1512, %v448
        %v1514 = vpop.permute.xlu0 %1513
        %1516 = vset.pattern.permute.xlu0 6
        %1517 = vperm.xlu0 %1516, %v449
        %v1518 = vpop.permute.xlu0 %1517
        %1520 = vset.pattern.permute.xlu0 6
        %1521 = vperm.xlu0 %1520, %v450
        %v1522 = vpop.permute.xlu0 %1521
        %1524 = vset.pattern.permute.xlu0 6
        %1525 = vperm.xlu0 %1524, %v451
        %v1526 = vpop.permute.xlu0 %1525
        %v1528 = vmul.f32 %v1480, %v1514
        %v1529 = vmul.f32 %v1480, %v1518
        %v1530 = vmul.f32 %v1480, %v1522
        %v1531 = vmul.f32 %v1480, %v1526
        %v1532 = vmul.f32 %v1481, %v1514
        %v1533 = vmul.f32 %v1481, %v1518
        %v1534 = vmul.f32 %v1481, %v1522
        %v1535 = vmul.f32 %v1481, %v1526
        %v1536 = vmul.f32 %v1482, %v1514
        %v1537 = vmul.f32 %v1482, %v1518
        %v1538 = vmul.f32 %v1482, %v1522
        %v1539 = vmul.f32 %v1482, %v1526
        %v1540 = vmul.f32 %v1483, %v1514
        %v1541 = vmul.f32 %v1483, %v1518
        %v1542 = vmul.f32 %v1483, %v1522
        %v1543 = vmul.f32 %v1483, %v1526
        %v1544 = vmul.f32 %v1484, %v1514
        %v1545 = vmul.f32 %v1484, %v1518
        %v1546 = vmul.f32 %v1484, %v1522
        %v1547 = vmul.f32 %v1484, %v1526
        %v1548 = vmul.f32 %v1485, %v1514
        %v1549 = vmul.f32 %v1485, %v1518
        %v1550 = vmul.f32 %v1485, %v1522
        %v1551 = vmul.f32 %v1485, %v1526
        %v1552 = vmul.f32 %v1486, %v1514
        %v1553 = vmul.f32 %v1486, %v1518
        %v1554 = vmul.f32 %v1486, %v1522
        %v1555 = vmul.f32 %v1486, %v1526
        %v1556 = vmul.f32 %v1487, %v1514
        %v1557 = vmul.f32 %v1487, %v1518
        %v1558 = vmul.f32 %v1487, %v1522
        %v1559 = vmul.f32 %v1487, %v1526
        %v1560 = vmul.f32 %v1488, %v1514
        %v1561 = vmul.f32 %v1488, %v1518
        %v1562 = vmul.f32 %v1488, %v1522
        %v1563 = vmul.f32 %v1488, %v1526
        %v1564 = vmul.f32 %v1489, %v1514
        %v1565 = vmul.f32 %v1489, %v1518
        %v1566 = vmul.f32 %v1489, %v1522
        %v1567 = vmul.f32 %v1489, %v1526
        %v1568 = vmul.f32 %v1490, %v1514
        %v1569 = vmul.f32 %v1490, %v1518
        %v1570 = vmul.f32 %v1490, %v1522
        %v1571 = vmul.f32 %v1490, %v1526
        %v1572 = vmul.f32 %v1491, %v1514
        %v1573 = vmul.f32 %v1491, %v1518
        %v1574 = vmul.f32 %v1491, %v1522
        %v1575 = vmul.f32 %v1491, %v1526
        %v1576 = vmul.f32 %v1492, %v1514
        %v1577 = vmul.f32 %v1492, %v1518
        %v1578 = vmul.f32 %v1492, %v1522
        %v1579 = vmul.f32 %v1492, %v1526
        %v1580 = vmul.f32 %v1493, %v1514
        %v1581 = vmul.f32 %v1493, %v1518
        %v1582 = vmul.f32 %v1493, %v1522
        %v1583 = vmul.f32 %v1493, %v1526
        %v1584 = vmul.f32 %v1494, %v1514
        %v1585 = vmul.f32 %v1494, %v1518
        %v1586 = vmul.f32 %v1494, %v1522
        %v1587 = vmul.f32 %v1494, %v1526
        %v1588 = vmul.f32 %v1495, %v1514
        %v1589 = vmul.f32 %v1495, %v1518
        %v1590 = vmul.f32 %v1495, %v1522
        %v1591 = vmul.f32 %v1495, %v1526
        %v1592 = vadd.f32 %v1397, %v1528
        %v1593 = vadd.f32 %v1398, %v1529
        %v1594 = vadd.f32 %v1399, %v1530
        %v1595 = vadd.f32 %v1400, %v1531
        %v1596 = vadd.f32 %v1401, %v1532
        %v1597 = vadd.f32 %v1402, %v1533
        %v1598 = vadd.f32 %v1403, %v1534
        %v1599 = vadd.f32 %v1404, %v1535
        %v1600 = vadd.f32 %v1405, %v1536
        %v1601 = vadd.f32 %v1406, %v1537
        %v1602 = vadd.f32 %v1407, %v1538
        %v1603 = vadd.f32 %v1408, %v1539
        %v1604 = vadd.f32 %v1409, %v1540
        %v1605 = vadd.f32 %v1410, %v1541
        %v1606 = vadd.f32 %v1411, %v1542
        %v1607 = vadd.f32 %v1412, %v1543
        %v1608 = vadd.f32 %v1413, %v1544
        %v1609 = vadd.f32 %v1414, %v1545
        %v1610 = vadd.f32 %v1415, %v1546
        %v1611 = vadd.f32 %v1416, %v1547
        %v1612 = vadd.f32 %v1417, %v1548
        %v1613 = vadd.f32 %v1418, %v1549
        %v1614 = vadd.f32 %v1419, %v1550
        %v1615 = vadd.f32 %v1420, %v1551
        %v1616 = vadd.f32 %v1421, %v1552
        %v1617 = vadd.f32 %v1422, %v1553
        %v1618 = vadd.f32 %v1423, %v1554
        %v1619 = vadd.f32 %v1424, %v1555
        %v1620 = vadd.f32 %v1425, %v1556
        %v1621 = vadd.f32 %v1426, %v1557
        %v1622 = vadd.f32 %v1427, %v1558
        %v1623 = vadd.f32 %v1428, %v1559
        %v1624 = vadd.f32 %v1429, %v1560
        %v1625 = vadd.f32 %v1430, %v1561
        %v1626 = vadd.f32 %v1431, %v1562
        %v1627 = vadd.f32 %v1432, %v1563
        %v1628 = vadd.f32 %v1433, %v1564
        %v1629 = vadd.f32 %v1434, %v1565
        %v1630 = vadd.f32 %v1435, %v1566
        %v1631 = vadd.f32 %v1436, %v1567
        %v1632 = vadd.f32 %v1437, %v1568
        %v1633 = vadd.f32 %v1438, %v1569
        %v1634 = vadd.f32 %v1439, %v1570
        %v1635 = vadd.f32 %v1440, %v1571
        %v1636 = vadd.f32 %v1441, %v1572
        %v1637 = vadd.f32 %v1442, %v1573
        %v1638 = vadd.f32 %v1443, %v1574
        %v1639 = vadd.f32 %v1444, %v1575
        %v1640 = vadd.f32 %v1445, %v1576
        %v1641 = vadd.f32 %v1446, %v1577
        %v1642 = vadd.f32 %v1447, %v1578
        %v1643 = vadd.f32 %v1448, %v1579
        %v1644 = vadd.f32 %v1449, %v1580
        %v1645 = vadd.f32 %v1450, %v1581
        %v1646 = vadd.f32 %v1451, %v1582
        %v1647 = vadd.f32 %v1452, %v1583
        %v1648 = vadd.f32 %v1453, %v1584
        %v1649 = vadd.f32 %v1454, %v1585
        %v1650 = vadd.f32 %v1455, %v1586
        %v1651 = vadd.f32 %v1456, %v1587
        %v1652 = vadd.f32 %v1457, %v1588
        %v1653 = vadd.f32 %v1458, %v1589
        %v1654 = vadd.f32 %v1459, %v1590
        %v1655 = vadd.f32 %v1460, %v1591
        %v1656 = vlaneseq
        %v1657 = vand.u32 %v1656, 127
        %s1658 = sld [smem:[#allocation2 + $0x10]]
        %v1659 = vstv %s1658
        %s1660 = sld [smem:[#allocation2 + $0x11]]
        %v1661 = vstv %s1660
        %s1662 = sld [smem:[#allocation2 + $0x22]]
        %v1663 = vstv %s1662
        %s1664 = sld [smem:[#allocation2 + $0x23]]
        %v1665 = vstv %s1664
        %v1666 = vmul.f32 %v992, %v1592
        %v1667 = vmul.f32 %v993, %v1593
        %v1668 = vmul.f32 %v994, %v1594
        %v1669 = vmul.f32 %v995, %v1595
        %v1670 = vmul.f32 %v996, %v1596
        %v1671 = vmul.f32 %v997, %v1597
        %v1672 = vmul.f32 %v998, %v1598
        %v1673 = vmul.f32 %v999, %v1599
        %v1674 = vmul.f32 %v1000, %v1600
        %v1675 = vmul.f32 %v1001, %v1601
        %v1676 = vmul.f32 %v1002, %v1602
        %v1677 = vmul.f32 %v1003, %v1603
        %v1678 = vmul.f32 %v1004, %v1604
        %v1679 = vmul.f32 %v1005, %v1605
        %v1680 = vmul.f32 %v1006, %v1606
        %v1681 = vmul.f32 %v1007, %v1607
        %v1682 = vmul.f32 %v1008, %v1608
        %v1683 = vmul.f32 %v1009, %v1609
        %v1684 = vmul.f32 %v1010, %v1610
        %v1685 = vmul.f32 %v1011, %v1611
        %v1686 = vmul.f32 %v1012, %v1612
        %v1687 = vmul.f32 %v1013, %v1613
        %v1688 = vmul.f32 %v1014, %v1614
        %v1689 = vmul.f32 %v1015, %v1615
        %v1690 = vmul.f32 %v1016, %v1616
        %v1691 = vmul.f32 %v1017, %v1617
        %v1692 = vmul.f32 %v1018, %v1618
        %v1693 = vmul.f32 %v1019, %v1619
        %v1694 = vmul.f32 %v1020, %v1620
        %v1695 = vmul.f32 %v1021, %v1621
        %v1696 = vmul.f32 %v1022, %v1622
        %v1697 = vmul.f32 %v1023, %v1623
        %v1698 = vmul.f32 %v1024, %v1624
        %v1699 = vmul.f32 %v1025, %v1625
        %v1700 = vmul.f32 %v1026, %v1626
        %v1701 = vmul.f32 %v1027, %v1627
        %v1702 = vmul.f32 %v1028, %v1628
        %v1703 = vmul.f32 %v1029, %v1629
        %v1704 = vmul.f32 %v1030, %v1630
        %v1705 = vmul.f32 %v1031, %v1631
        %v1706 = vmul.f32 %v1032, %v1632
        %v1707 = vmul.f32 %v1033, %v1633
        %v1708 = vmul.f32 %v1034, %v1634
        %v1709 = vmul.f32 %v1035, %v1635
        %v1710 = vmul.f32 %v1036, %v1636
        %v1711 = vmul.f32 %v1037, %v1637
        %v1712 = vmul.f32 %v1038, %v1638
        %v1713 = vmul.f32 %v1039, %v1639
        %v1714 = vmul.f32 %v1040, %v1640
        %v1715 = vmul.f32 %v1041, %v1641
        %v1716 = vmul.f32 %v1042, %v1642
        %v1717 = vmul.f32 %v1043, %v1643
        %v1718 = vmul.f32 %v1044, %v1644
        %v1719 = vmul.f32 %v1045, %v1645
        %v1720 = vmul.f32 %v1046, %v1646
        %v1721 = vmul.f32 %v1047, %v1647
        %v1722 = vmul.f32 %v1048, %v1648
        %v1723 = vmul.f32 %v1049, %v1649
        %v1724 = vmul.f32 %v1050, %v1650
        %v1725 = vmul.f32 %v1051, %v1651
        %v1726 = vmul.f32 %v1052, %v1652
        %v1727 = vmul.f32 %v1053, %v1653
        %v1728 = vmul.f32 %v1054, %v1654
        %v1729 = vmul.f32 %v1055, %v1655
        %v1730 = vadd.f32 %v1666, %v1667
        %v1731 = vadd.f32 %v1730, %v1668
        %v1732 = vadd.f32 %v1731, %v1669
        %v1733 = vrot.slane %v1732, 4
        %v1734 = vadd.f32 %v1732, %v1733
        %v1735 = vrot.slane %v1734, 2
        %v1736 = vadd.f32 %v1734, %v1735
        %v1737 = vrot.slane %v1736, 1
        %v1738 = vadd.f32 %v1736, %v1737
        %v1739 = vadd.f32 %v1670, %v1671
        %v1740 = vadd.f32 %v1739, %v1672
        %v1741 = vadd.f32 %v1740, %v1673
        %v1742 = vrot.slane %v1741, 4
        %v1743 = vadd.f32 %v1741, %v1742
        %v1744 = vrot.slane %v1743, 2
        %v1745 = vadd.f32 %v1743, %v1744
        %v1746 = vrot.slane %v1745, 1
        %v1747 = vadd.f32 %v1745, %v1746
        %v1748 = vadd.f32 %v1674, %v1675
        %v1749 = vadd.f32 %v1748, %v1676
        %v1750 = vadd.f32 %v1749, %v1677
        %v1751 = vrot.slane %v1750, 4
        %v1752 = vadd.f32 %v1750, %v1751
        %v1753 = vrot.slane %v1752, 2
        %v1754 = vadd.f32 %v1752, %v1753
        %v1755 = vrot.slane %v1754, 1
        %v1756 = vadd.f32 %v1754, %v1755
        %v1757 = vadd.f32 %v1678, %v1679
        %v1758 = vadd.f32 %v1757, %v1680
        %v1759 = vadd.f32 %v1758, %v1681
        %v1760 = vrot.slane %v1759, 4
        %v1761 = vadd.f32 %v1759, %v1760
        %v1762 = vrot.slane %v1761, 2
        %v1763 = vadd.f32 %v1761, %v1762
        %v1764 = vrot.slane %v1763, 1
        %v1765 = vadd.f32 %v1763, %v1764
        %v1766 = vadd.f32 %v1682, %v1683
        %v1767 = vadd.f32 %v1766, %v1684
        %v1768 = vadd.f32 %v1767, %v1685
        %v1769 = vrot.slane %v1768, 4
        %v1770 = vadd.f32 %v1768, %v1769
        %v1771 = vrot.slane %v1770, 2
        %v1772 = vadd.f32 %v1770, %v1771
        %v1773 = vrot.slane %v1772, 1
        %v1774 = vadd.f32 %v1772, %v1773
        %v1775 = vadd.f32 %v1686, %v1687
        %v1776 = vadd.f32 %v1775, %v1688
        %v1777 = vadd.f32 %v1776, %v1689
        %v1778 = vrot.slane %v1777, 4
        %v1779 = vadd.f32 %v1777, %v1778
        %v1780 = vrot.slane %v1779, 2
        %v1781 = vadd.f32 %v1779, %v1780
        %v1782 = vrot.slane %v1781, 1
        %v1783 = vadd.f32 %v1781, %v1782
        %v1784 = vadd.f32 %v1690, %v1691
        %v1785 = vadd.f32 %v1784, %v1692
        %v1786 = vadd.f32 %v1785, %v1693
        %v1787 = vrot.slane %v1786, 4
        %v1788 = vadd.f32 %v1786, %v1787
        %v1789 = vrot.slane %v1788, 2
        %v1790 = vadd.f32 %v1788, %v1789
        %v1791 = vrot.slane %v1790, 1
        %v1792 = vadd.f32 %v1790, %v1791
        %v1793 = vadd.f32 %v1694, %v1695
        %v1794 = vadd.f32 %v1793, %v1696
        %v1795 = vadd.f32 %v1794, %v1697
        %v1796 = vrot.slane %v1795, 4
        %v1797 = vadd.f32 %v1795, %v1796
        %v1798 = vrot.slane %v1797, 2
        %v1799 = vadd.f32 %v1797, %v1798
        %v1800 = vrot.slane %v1799, 1
        %v1801 = vadd.f32 %v1799, %v1800
        %v1802 = vadd.f32 %v1698, %v1699
        %v1803 = vadd.f32 %v1802, %v1700
        %v1804 = vadd.f32 %v1803, %v1701
        %v1805 = vrot.slane %v1804, 4
        %v1806 = vadd.f32 %v1804, %v1805
        %v1807 = vrot.slane %v1806, 2
        %v1808 = vadd.f32 %v1806, %v1807
        %v1809 = vrot.slane %v1808, 1
        %v1810 = vadd.f32 %v1808, %v1809
        %v1811 = vadd.f32 %v1702, %v1703
        %v1812 = vadd.f32 %v1811, %v1704
        %v1813 = vadd.f32 %v1812, %v1705
        %v1814 = vrot.slane %v1813, 4
        %v1815 = vadd.f32 %v1813, %v1814
        %v1816 = vrot.slane %v1815, 2
        %v1817 = vadd.f32 %v1815, %v1816
        %v1818 = vrot.slane %v1817, 1
        %v1819 = vadd.f32 %v1817, %v1818
        %v1820 = vadd.f32 %v1706, %v1707
        %v1821 = vadd.f32 %v1820, %v1708
        %v1822 = vadd.f32 %v1821, %v1709
        %v1823 = vrot.slane %v1822, 4
        %v1824 = vadd.f32 %v1822, %v1823
        %v1825 = vrot.slane %v1824, 2
        %v1826 = vadd.f32 %v1824, %v1825
        %v1827 = vrot.slane %v1826, 1
        %v1828 = vadd.f32 %v1826, %v1827
        %v1829 = vadd.f32 %v1710, %v1711
        %v1830 = vadd.f32 %v1829, %v1712
        %v1831 = vadd.f32 %v1830, %v1713
        %v1832 = vrot.slane %v1831, 4
        %v1833 = vadd.f32 %v1831, %v1832
        %v1834 = vrot.slane %v1833, 2
        %v1835 = vadd.f32 %v1833, %v1834
        %v1836 = vrot.slane %v1835, 1
        %v1837 = vadd.f32 %v1835, %v1836
        %v1838 = vadd.f32 %v1714, %v1715
        %v1839 = vadd.f32 %v1838, %v1716
        %v1840 = vadd.f32 %v1839, %v1717
        %v1841 = vrot.slane %v1840, 4
        %v1842 = vadd.f32 %v1840, %v1841
        %v1843 = vrot.slane %v1842, 2
        %v1844 = vadd.f32 %v1842, %v1843
        %v1845 = vrot.slane %v1844, 1
        %v1846 = vadd.f32 %v1844, %v1845
        %v1847 = vadd.f32 %v1718, %v1719
        %v1848 = vadd.f32 %v1847, %v1720
        %v1849 = vadd.f32 %v1848, %v1721
        %v1850 = vrot.slane %v1849, 4
        %v1851 = vadd.f32 %v1849, %v1850
        %v1852 = vrot.slane %v1851, 2
        %v1853 = vadd.f32 %v1851, %v1852
        %v1854 = vrot.slane %v1853, 1
        %v1855 = vadd.f32 %v1853, %v1854
        %v1856 = vadd.f32 %v1722, %v1723
        %v1857 = vadd.f32 %v1856, %v1724
        %v1858 = vadd.f32 %v1857, %v1725
        %v1859 = vrot.slane %v1858, 4
        %v1860 = vadd.f32 %v1858, %v1859
        %v1861 = vrot.slane %v1860, 2
        %v1862 = vadd.f32 %v1860, %v1861
        %v1863 = vrot.slane %v1862, 1
        %v1864 = vadd.f32 %v1862, %v1863
        %v1865 = vadd.f32 %v1726, %v1727
        %v1866 = vadd.f32 %v1865, %v1728
        %v1867 = vadd.f32 %v1866, %v1729
        %v1868 = vrot.slane %v1867, 4
        %v1869 = vadd.f32 %v1867, %v1868
        %v1870 = vrot.slane %v1869, 2
        %v1871 = vadd.f32 %v1869, %v1870
        %v1872 = vrot.slane %v1871, 1
        %v1873 = vadd.f32 %v1871, %v1872
        %s1874 = sld [smem:[#allocation2]]
        %v1875 = vstv %s1874
        %v1876 = vmul.f32 %v1738, %v1875
        %v1877 = vmul.f32 %v1747, %v1875
        %v1878 = vmul.f32 %v1756, %v1875
        %v1879 = vmul.f32 %v1765, %v1875
        %v1880 = vmul.f32 %v1774, %v1875
        %v1881 = vmul.f32 %v1783, %v1875
        %v1882 = vmul.f32 %v1792, %v1875
        %v1883 = vmul.f32 %v1801, %v1875
        %v1884 = vmul.f32 %v1810, %v1875
        %v1885 = vmul.f32 %v1819, %v1875
        %v1886 = vmul.f32 %v1828, %v1875
        %v1887 = vmul.f32 %v1837, %v1875
        %v1888 = vmul.f32 %v1846, %v1875
        %v1889 = vmul.f32 %v1855, %v1875
        %v1890 = vmul.f32 %v1864, %v1875
        %v1891 = vmul.f32 %v1873, %v1875
        %v1892 = vadd.f32 %v1659, %v1876
        %v1893 = vadd.f32 %v1659, %v1877
        %v1894 = vadd.f32 %v1659, %v1878
        %v1895 = vadd.f32 %v1659, %v1879
        %v1896 = vadd.f32 %v1659, %v1880
        %v1897 = vadd.f32 %v1659, %v1881
        %v1898 = vadd.f32 %v1659, %v1882
        %v1899 = vadd.f32 %v1659, %v1883
        %v1900 = vadd.f32 %v1659, %v1884
        %v1901 = vadd.f32 %v1659, %v1885
        %v1902 = vadd.f32 %v1659, %v1886
        %v1903 = vadd.f32 %v1659, %v1887
        %v1904 = vadd.f32 %v1659, %v1888
        %v1905 = vadd.f32 %v1659, %v1889
        %v1906 = vadd.f32 %v1659, %v1890
        %v1907 = vadd.f32 %v1659, %v1891
        %s1908 = sld [smem:[#allocation2 + $0x1]]
        %v1909 = vstv %s1908
        %v1910 = vmul.f32 %v1738, %v1909
        %v1911 = vmul.f32 %v1747, %v1909
        %v1912 = vmul.f32 %v1756, %v1909
        %v1913 = vmul.f32 %v1765, %v1909
        %v1914 = vmul.f32 %v1774, %v1909
        %v1915 = vmul.f32 %v1783, %v1909
        %v1916 = vmul.f32 %v1792, %v1909
        %v1917 = vmul.f32 %v1801, %v1909
        %v1918 = vmul.f32 %v1810, %v1909
        %v1919 = vmul.f32 %v1819, %v1909
        %v1920 = vmul.f32 %v1828, %v1909
        %v1921 = vmul.f32 %v1837, %v1909
        %v1922 = vmul.f32 %v1846, %v1909
        %v1923 = vmul.f32 %v1855, %v1909
        %v1924 = vmul.f32 %v1864, %v1909
        %v1925 = vmul.f32 %v1873, %v1909
        %v1926 = vadd.f32 %v1661, %v1910
        %v1927 = vadd.f32 %v1661, %v1911
        %v1928 = vadd.f32 %v1661, %v1912
        %v1929 = vadd.f32 %v1661, %v1913
        %v1930 = vadd.f32 %v1661, %v1914
        %v1931 = vadd.f32 %v1661, %v1915
        %v1932 = vadd.f32 %v1661, %v1916
        %v1933 = vadd.f32 %v1661, %v1917
        %v1934 = vadd.f32 %v1661, %v1918
        %v1935 = vadd.f32 %v1661, %v1919
        %v1936 = vadd.f32 %v1661, %v1920
        %v1937 = vadd.f32 %v1661, %v1921
        %v1938 = vadd.f32 %v1661, %v1922
        %v1939 = vadd.f32 %v1661, %v1923
        %v1940 = vadd.f32 %v1661, %v1924
        %v1941 = vadd.f32 %v1661, %v1925
        %s1942 = sld [smem:[#allocation2 + $0x12]]
        %v1943 = vstv %s1942
        %v1944 = vmul.f32 %v1738, %v1943
        %v1945 = vmul.f32 %v1747, %v1943
        %v1946 = vmul.f32 %v1756, %v1943
        %v1947 = vmul.f32 %v1765, %v1943
        %v1948 = vmul.f32 %v1774, %v1943
        %v1949 = vmul.f32 %v1783, %v1943
        %v1950 = vmul.f32 %v1792, %v1943
        %v1951 = vmul.f32 %v1801, %v1943
        %v1952 = vmul.f32 %v1810, %v1943
        %v1953 = vmul.f32 %v1819, %v1943
        %v1954 = vmul.f32 %v1828, %v1943
        %v1955 = vmul.f32 %v1837, %v1943
        %v1956 = vmul.f32 %v1846, %v1943
        %v1957 = vmul.f32 %v1855, %v1943
        %v1958 = vmul.f32 %v1864, %v1943
        %v1959 = vmul.f32 %v1873, %v1943
        %v1960 = vadd.f32 %v1663, %v1944
        %v1961 = vadd.f32 %v1663, %v1945
        %v1962 = vadd.f32 %v1663, %v1946
        %v1963 = vadd.f32 %v1663, %v1947
        %v1964 = vadd.f32 %v1663, %v1948
        %v1965 = vadd.f32 %v1663, %v1949
        %v1966 = vadd.f32 %v1663, %v1950
        %v1967 = vadd.f32 %v1663, %v1951
        %v1968 = vadd.f32 %v1663, %v1952
        %v1969 = vadd.f32 %v1663, %v1953
        %v1970 = vadd.f32 %v1663, %v1954
        %v1971 = vadd.f32 %v1663, %v1955
        %v1972 = vadd.f32 %v1663, %v1956
        %v1973 = vadd.f32 %v1663, %v1957
        %v1974 = vadd.f32 %v1663, %v1958
        %v1975 = vadd.f32 %v1663, %v1959
        %s1976 = sld [smem:[#allocation2 + $0x13]]
        %v1977 = vstv %s1976
        %v1978 = vmul.f32 %v1738, %v1977
        %v1979 = vmul.f32 %v1747, %v1977
        %v1980 = vmul.f32 %v1756, %v1977
        %v1981 = vmul.f32 %v1765, %v1977
        %v1982 = vmul.f32 %v1774, %v1977
        %v1983 = vmul.f32 %v1783, %v1977
        %v1984 = vmul.f32 %v1792, %v1977
        %v1985 = vmul.f32 %v1801, %v1977
        %v1986 = vmul.f32 %v1810, %v1977
        %v1987 = vmul.f32 %v1819, %v1977
        %v1988 = vmul.f32 %v1828, %v1977
        %v1989 = vmul.f32 %v1837, %v1977
        %v1990 = vmul.f32 %v1846, %v1977
        %v1991 = vmul.f32 %v1855, %v1977
        %v1992 = vmul.f32 %v1864, %v1977
        %v1993 = vmul.f32 %v1873, %v1977
        %v1994 = vadd.f32 %v1665, %v1978
        %v1995 = vadd.f32 %v1665, %v1979
        %v1996 = vadd.f32 %v1665, %v1980
        %v1997 = vadd.f32 %v1665, %v1981
        %v1998 = vadd.f32 %v1665, %v1982
        %v1999 = vadd.f32 %v1665, %v1983
        %v2000 = vadd.f32 %v1665, %v1984
        %v2001 = vadd.f32 %v1665, %v1985
        %v2002 = vadd.f32 %v1665, %v1986
        %v2003 = vadd.f32 %v1665, %v1987
        %v2004 = vadd.f32 %v1665, %v1988
        %v2005 = vadd.f32 %v1665, %v1989
        %v2006 = vadd.f32 %v1665, %v1990
        %v2007 = vadd.f32 %v1665, %v1991
        %v2008 = vadd.f32 %v1665, %v1992
        %v2009 = vadd.f32 %v1665, %v1993
        %v2010 = vadd.f32 %v1738, 0.0
        %v2011 = vadd.f32 %v1747, 0.0
        %v2012 = vadd.f32 %v1756, 0.0
        %v2013 = vadd.f32 %v1765, 0.0
        %v2014 = vadd.f32 %v1774, 0.0
        %v2015 = vadd.f32 %v1783, 0.0
        %v2016 = vadd.f32 %v1792, 0.0
        %v2017 = vadd.f32 %v1801, 0.0
        %v2018 = vadd.f32 %v1810, 0.0
        %v2019 = vadd.f32 %v1819, 0.0
        %v2020 = vadd.f32 %v1828, 0.0
        %v2021 = vadd.f32 %v1837, 0.0
        %v2022 = vadd.f32 %v1846, 0.0
        %v2023 = vadd.f32 %v1855, 0.0
        %v2024 = vadd.f32 %v1864, 0.0
        %v2025 = vadd.f32 %v1873, 0.0
        %2026 = vrot.lane.b32.xlu0 %v1592, 1
        %v2027 = vpop.permute.xlu0 %2026
        %2028 = vrot.lane.b32.xlu0 %v1593, 1
        %v2029 = vpop.permute.xlu0 %2028
        %2030 = vrot.lane.b32.xlu0 %v1594, 1
        %v2031 = vpop.permute.xlu0 %2030
        %2032 = vrot.lane.b32.xlu0 %v1595, 1
        %v2033 = vpop.permute.xlu0 %2032
        %2034 = vrot.lane.b32.xlu0 %v1596, 1
        %v2035 = vpop.permute.xlu0 %2034
        %2036 = vrot.lane.b32.xlu0 %v1597, 1
        %v2037 = vpop.permute.xlu0 %2036
        %2038 = vrot.lane.b32.xlu0 %v1598, 1
        %v2039 = vpop.permute.xlu0 %2038
        %2040 = vrot.lane.b32.xlu0 %v1599, 1
        %v2041 = vpop.permute.xlu0 %2040
        %2042 = vrot.lane.b32.xlu0 %v1600, 1
        %v2043 = vpop.permute.xlu0 %2042
        %2044 = vrot.lane.b32.xlu0 %v1601, 1
        %v2045 = vpop.permute.xlu0 %2044
        %2046 = vrot.lane.b32.xlu0 %v1602, 1
        %v2047 = vpop.permute.xlu0 %2046
        %2048 = vrot.lane.b32.xlu0 %v1603, 1
        %v2049 = vpop.permute.xlu0 %2048
        %2050 = vrot.lane.b32.xlu0 %v1604, 1
        %v2051 = vpop.permute.xlu0 %2050
        %2052 = vrot.lane.b32.xlu0 %v1605, 1
        %v2053 = vpop.permute.xlu0 %2052
        %2054 = vrot.lane.b32.xlu0 %v1606, 1
        %v2055 = vpop.permute.xlu0 %2054
        %2056 = vrot.lane.b32.xlu0 %v1607, 1
        %v2057 = vpop.permute.xlu0 %2056
        %2058 = vrot.lane.b32.xlu0 %v1608, 1
        %v2059 = vpop.permute.xlu0 %2058
        %2060 = vrot.lane.b32.xlu0 %v1609, 1
        %v2061 = vpop.permute.xlu0 %2060
        %2062 = vrot.lane.b32.xlu0 %v1610, 1
        %v2063 = vpop.permute.xlu0 %2062
        %2064 = vrot.lane.b32.xlu0 %v1611, 1
        %v2065 = vpop.permute.xlu0 %2064
        %2066 = vrot.lane.b32.xlu0 %v1612, 1
        %v2067 = vpop.permute.xlu0 %2066
        %2068 = vrot.lane.b32.xlu0 %v1613, 1
        %v2069 = vpop.permute.xlu0 %2068
        %2070 = vrot.lane.b32.xlu0 %v1614, 1
        %v2071 = vpop.permute.xlu0 %2070
        %2072 = vrot.lane.b32.xlu0 %v1615, 1
        %v2073 = vpop.permute.xlu0 %2072
        %2074 = vrot.lane.b32.xlu0 %v1616, 1
        %v2075 = vpop.permute.xlu0 %2074
        %2076 = vrot.lane.b32.xlu0 %v1617, 1
        %v2077 = vpop.permute.xlu0 %2076
        %2078 = vrot.lane.b32.xlu0 %v1618, 1
        %v2079 = vpop.permute.xlu0 %2078
        %2080 = vrot.lane.b32.xlu0 %v1619, 1
        %v2081 = vpop.permute.xlu0 %2080
        %2082 = vrot.lane.b32.xlu0 %v1620, 1
        %v2083 = vpop.permute.xlu0 %2082
        %2084 = vrot.lane.b32.xlu0 %v1621, 1
        %v2085 = vpop.permute.xlu0 %2084
        %2086 = vrot.lane.b32.xlu0 %v1622, 1
        %v2087 = vpop.permute.xlu0 %2086
        %2088 = vrot.lane.b32.xlu0 %v1623, 1
        %v2089 = vpop.permute.xlu0 %2088
        %2090 = vrot.lane.b32.xlu0 %v1624, 1
        %v2091 = vpop.permute.xlu0 %2090
        %2092 = vrot.lane.b32.xlu0 %v1625, 1
        %v2093 = vpop.permute.xlu0 %2092
        %2094 = vrot.lane.b32.xlu0 %v1626, 1
        %v2095 = vpop.permute.xlu0 %2094
        %2096 = vrot.lane.b32.xlu0 %v1627, 1
        %v2097 = vpop.permute.xlu0 %2096
        %2098 = vrot.lane.b32.xlu0 %v1628, 1
        %v2099 = vpop.permute.xlu0 %2098
        %2100 = vrot.lane.b32.xlu0 %v1629, 1
        %v2101 = vpop.permute.xlu0 %2100
        %2102 = vrot.lane.b32.xlu0 %v1630, 1
        %v2103 = vpop.permute.xlu0 %2102
        %2104 = vrot.lane.b32.xlu0 %v1631, 1
        %v2105 = vpop.permute.xlu0 %2104
        %2106 = vrot.lane.b32.xlu0 %v1632, 1
        %v2107 = vpop.permute.xlu0 %2106
        %2108 = vrot.lane.b32.xlu0 %v1633, 1
        %v2109 = vpop.permute.xlu0 %2108
        %2110 = vrot.lane.b32.xlu0 %v1634, 1
        %v2111 = vpop.permute.xlu0 %2110
        %2112 = vrot.lane.b32.xlu0 %v1635, 1
        %v2113 = vpop.permute.xlu0 %2112
        %2114 = vrot.lane.b32.xlu0 %v1636, 1
        %v2115 = vpop.permute.xlu0 %2114
        %2116 = vrot.lane.b32.xlu0 %v1637, 1
        %v2117 = vpop.permute.xlu0 %2116
        %2118 = vrot.lane.b32.xlu0 %v1638, 1
        %v2119 = vpop.permute.xlu0 %2118
        %2120 = vrot.lane.b32.xlu0 %v1639, 1
        %v2121 = vpop.permute.xlu0 %2120
        %2122 = vrot.lane.b32.xlu0 %v1640, 1
        %v2123 = vpop.permute.xlu0 %2122
        %2124 = vrot.lane.b32.xlu0 %v1641, 1
        %v2125 = vpop.permute.xlu0 %2124
        %2126 = vrot.lane.b32.xlu0 %v1642, 1
        %v2127 = vpop.permute.xlu0 %2126
        %2128 = vrot.lane.b32.xlu0 %v1643, 1
        %v2129 = vpop.permute.xlu0 %2128
        %2130 = vrot.lane.b32.xlu0 %v1644, 1
        %v2131 = vpop.permute.xlu0 %2130
        %2132 = vrot.lane.b32.xlu0 %v1645, 1
        %v2133 = vpop.permute.xlu0 %2132
        %2134 = vrot.lane.b32.xlu0 %v1646, 1
        %v2135 = vpop.permute.xlu0 %2134
        %2136 = vrot.lane.b32.xlu0 %v1647, 1
        %v2137 = vpop.permute.xlu0 %2136
        %2138 = vrot.lane.b32.xlu0 %v1648, 1
        %v2139 = vpop.permute.xlu0 %2138
        %2140 = vrot.lane.b32.xlu0 %v1649, 1
        %v2141 = vpop.permute.xlu0 %2140
        %2142 = vrot.lane.b32.xlu0 %v1650, 1
        %v2143 = vpop.permute.xlu0 %2142
        %2144 = vrot.lane.b32.xlu0 %v1651, 1
        %v2145 = vpop.permute.xlu0 %2144
        %2146 = vrot.lane.b32.xlu0 %v1652, 1
        %v2147 = vpop.permute.xlu0 %2146
        %2148 = vrot.lane.b32.xlu0 %v1653, 1
        %v2149 = vpop.permute.xlu0 %2148
        %2150 = vrot.lane.b32.xlu0 %v1654, 1
        %v2151 = vpop.permute.xlu0 %2150
        %2152 = vrot.lane.b32.xlu0 %v1655, 1
        %v2153 = vpop.permute.xlu0 %2152
        %v2154 = vmul.f32 %v992, %v2027
        %v2155 = vmul.f32 %v993, %v2029
        %v2156 = vmul.f32 %v994, %v2031
        %v2157 = vmul.f32 %v995, %v2033
        %v2158 = vmul.f32 %v996, %v2035
        %v2159 = vmul.f32 %v997, %v2037
        %v2160 = vmul.f32 %v998, %v2039
        %v2161 = vmul.f32 %v999, %v2041
        %v2162 = vmul.f32 %v1000, %v2043
        %v2163 = vmul.f32 %v1001, %v2045
        %v2164 = vmul.f32 %v1002, %v2047
        %v2165 = vmul.f32 %v1003, %v2049
        %v2166 = vmul.f32 %v1004, %v2051
        %v2167 = vmul.f32 %v1005, %v2053
        %v2168 = vmul.f32 %v1006, %v2055
        %v2169 = vmul.f32 %v1007, %v2057
        %v2170 = vmul.f32 %v1008, %v2059
        %v2171 = vmul.f32 %v1009, %v2061
        %v2172 = vmul.f32 %v1010, %v2063
        %v2173 = vmul.f32 %v1011, %v2065
        %v2174 = vmul.f32 %v1012, %v2067
        %v2175 = vmul.f32 %v1013, %v2069
        %v2176 = vmul.f32 %v1014, %v2071
        %v2177 = vmul.f32 %v1015, %v2073
        %v2178 = vmul.f32 %v1016, %v2075
        %v2179 = vmul.f32 %v1017, %v2077
        %v2180 = vmul.f32 %v1018, %v2079
        %v2181 = vmul.f32 %v1019, %v2081
        %v2182 = vmul.f32 %v1020, %v2083
        %v2183 = vmul.f32 %v1021, %v2085
        %v2184 = vmul.f32 %v1022, %v2087
        %v2185 = vmul.f32 %v1023, %v2089
        %v2186 = vmul.f32 %v1024, %v2091
        %v2187 = vmul.f32 %v1025, %v2093
        %v2188 = vmul.f32 %v1026, %v2095
        %v2189 = vmul.f32 %v1027, %v2097
        %v2190 = vmul.f32 %v1028, %v2099
        %v2191 = vmul.f32 %v1029, %v2101
        %v2192 = vmul.f32 %v1030, %v2103
        %v2193 = vmul.f32 %v1031, %v2105
        %v2194 = vmul.f32 %v1032, %v2107
        %v2195 = vmul.f32 %v1033, %v2109
        %v2196 = vmul.f32 %v1034, %v2111
        %v2197 = vmul.f32 %v1035, %v2113
        %v2198 = vmul.f32 %v1036, %v2115
        %v2199 = vmul.f32 %v1037, %v2117
        %v2200 = vmul.f32 %v1038, %v2119
        %v2201 = vmul.f32 %v1039, %v2121
        %v2202 = vmul.f32 %v1040, %v2123
        %v2203 = vmul.f32 %v1041, %v2125
        %v2204 = vmul.f32 %v1042, %v2127
        %v2205 = vmul.f32 %v1043, %v2129
        %v2206 = vmul.f32 %v1044, %v2131
        %v2207 = vmul.f32 %v1045, %v2133
        %v2208 = vmul.f32 %v1046, %v2135
        %v2209 = vmul.f32 %v1047, %v2137
        %v2210 = vmul.f32 %v1048, %v2139
        %v2211 = vmul.f32 %v1049, %v2141
        %v2212 = vmul.f32 %v1050, %v2143
        %v2213 = vmul.f32 %v1051, %v2145
        %v2214 = vmul.f32 %v1052, %v2147
        %v2215 = vmul.f32 %v1053, %v2149
        %v2216 = vmul.f32 %v1054, %v2151
        %v2217 = vmul.f32 %v1055, %v2153
        %v2218 = vadd.f32 %v2154, %v2155
        %v2219 = vadd.f32 %v2218, %v2156
        %v2220 = vadd.f32 %v2219, %v2157
        %v2221 = vrot.slane %v2220, 4
        %v2222 = vadd.f32 %v2220, %v2221
        %v2223 = vrot.slane %v2222, 2
        %v2224 = vadd.f32 %v2222, %v2223
        %v2225 = vrot.slane %v2224, 1
        %v2226 = vadd.f32 %v2224, %v2225
        %v2227 = vadd.f32 %v2158, %v2159
        %v2228 = vadd.f32 %v2227, %v2160
        %v2229 = vadd.f32 %v2228, %v2161
        %v2230 = vrot.slane %v2229, 4
        %v2231 = vadd.f32 %v2229, %v2230
        %v2232 = vrot.slane %v2231, 2
        %v2233 = vadd.f32 %v2231, %v2232
        %v2234 = vrot.slane %v2233, 1
        %v2235 = vadd.f32 %v2233, %v2234
        %v2236 = vadd.f32 %v2162, %v2163
        %v2237 = vadd.f32 %v2236, %v2164
        %v2238 = vadd.f32 %v2237, %v2165
        %v2239 = vrot.slane %v2238, 4
        %v2240 = vadd.f32 %v2238, %v2239
        %v2241 = vrot.slane %v2240, 2
        %v2242 = vadd.f32 %v2240, %v2241
        %v2243 = vrot.slane %v2242, 1
        %v2244 = vadd.f32 %v2242, %v2243
        %v2245 = vadd.f32 %v2166, %v2167
        %v2246 = vadd.f32 %v2245, %v2168
        %v2247 = vadd.f32 %v2246, %v2169
        %v2248 = vrot.slane %v2247, 4
        %v2249 = vadd.f32 %v2247, %v2248
        %v2250 = vrot.slane %v2249, 2
        %v2251 = vadd.f32 %v2249, %v2250
        %v2252 = vrot.slane %v2251, 1
        %v2253 = vadd.f32 %v2251, %v2252
        %v2254 = vadd.f32 %v2170, %v2171
        %v2255 = vadd.f32 %v2254, %v2172
        %v2256 = vadd.f32 %v2255, %v2173
        %v2257 = vrot.slane %v2256, 4
        %v2258 = vadd.f32 %v2256, %v2257
        %v2259 = vrot.slane %v2258, 2
        %v2260 = vadd.f32 %v2258, %v2259
        %v2261 = vrot.slane %v2260, 1
        %v2262 = vadd.f32 %v2260, %v2261
        %v2263 = vadd.f32 %v2174, %v2175
        %v2264 = vadd.f32 %v2263, %v2176
        %v2265 = vadd.f32 %v2264, %v2177
        %v2266 = vrot.slane %v2265, 4
        %v2267 = vadd.f32 %v2265, %v2266
        %v2268 = vrot.slane %v2267, 2
        %v2269 = vadd.f32 %v2267, %v2268
        %v2270 = vrot.slane %v2269, 1
        %v2271 = vadd.f32 %v2269, %v2270
        %v2272 = vadd.f32 %v2178, %v2179
        %v2273 = vadd.f32 %v2272, %v2180
        %v2274 = vadd.f32 %v2273, %v2181
        %v2275 = vrot.slane %v2274, 4
        %v2276 = vadd.f32 %v2274, %v2275
        %v2277 = vrot.slane %v2276, 2
        %v2278 = vadd.f32 %v2276, %v2277
        %v2279 = vrot.slane %v2278, 1
        %v2280 = vadd.f32 %v2278, %v2279
        %v2281 = vadd.f32 %v2182, %v2183
        %v2282 = vadd.f32 %v2281, %v2184
        %v2283 = vadd.f32 %v2282, %v2185
        %v2284 = vrot.slane %v2283, 4
        %v2285 = vadd.f32 %v2283, %v2284
        %v2286 = vrot.slane %v2285, 2
        %v2287 = vadd.f32 %v2285, %v2286
        %v2288 = vrot.slane %v2287, 1
        %v2289 = vadd.f32 %v2287, %v2288
        %v2290 = vadd.f32 %v2186, %v2187
        %v2291 = vadd.f32 %v2290, %v2188
        %v2292 = vadd.f32 %v2291, %v2189
        %v2293 = vrot.slane %v2292, 4
        %v2294 = vadd.f32 %v2292, %v2293
        %v2295 = vrot.slane %v2294, 2
        %v2296 = vadd.f32 %v2294, %v2295
        %v2297 = vrot.slane %v2296, 1
        %v2298 = vadd.f32 %v2296, %v2297
        %v2299 = vadd.f32 %v2190, %v2191
        %v2300 = vadd.f32 %v2299, %v2192
        %v2301 = vadd.f32 %v2300, %v2193
        %v2302 = vrot.slane %v2301, 4
        %v2303 = vadd.f32 %v2301, %v2302
        %v2304 = vrot.slane %v2303, 2
        %v2305 = vadd.f32 %v2303, %v2304
        %v2306 = vrot.slane %v2305, 1
        %v2307 = vadd.f32 %v2305, %v2306
        %v2308 = vadd.f32 %v2194, %v2195
        %v2309 = vadd.f32 %v2308, %v2196
        %v2310 = vadd.f32 %v2309, %v2197
        %v2311 = vrot.slane %v2310, 4
        %v2312 = vadd.f32 %v2310, %v2311
        %v2313 = vrot.slane %v2312, 2
        %v2314 = vadd.f32 %v2312, %v2313
        %v2315 = vrot.slane %v2314, 1
        %v2316 = vadd.f32 %v2314, %v2315
        %v2317 = vadd.f32 %v2198, %v2199
        %v2318 = vadd.f32 %v2317, %v2200
        %v2319 = vadd.f32 %v2318, %v2201
        %v2320 = vrot.slane %v2319, 4
        %v2321 = vadd.f32 %v2319, %v2320
        %v2322 = vrot.slane %v2321, 2
        %v2323 = vadd.f32 %v2321, %v2322
        %v2324 = vrot.slane %v2323, 1
        %v2325 = vadd.f32 %v2323, %v2324
        %v2326 = vadd.f32 %v2202, %v2203
        %v2327 = vadd.f32 %v2326, %v2204
        %v2328 = vadd.f32 %v2327, %v2205
        %v2329 = vrot.slane %v2328, 4
        %v2330 = vadd.f32 %v2328, %v2329
        %v2331 = vrot.slane %v2330, 2
        %v2332 = vadd.f32 %v2330, %v2331
        %v2333 = vrot.slane %v2332, 1
        %v2334 = vadd.f32 %v2332, %v2333
        %v2335 = vadd.f32 %v2206, %v2207
        %v2336 = vadd.f32 %v2335, %v2208
        %v2337 = vadd.f32 %v2336, %v2209
        %v2338 = vrot.slane %v2337, 4
        %v2339 = vadd.f32 %v2337, %v2338
        %v2340 = vrot.slane %v2339, 2
        %v2341 = vadd.f32 %v2339, %v2340
        %v2342 = vrot.slane %v2341, 1
        %v2343 = vadd.f32 %v2341, %v2342
        %v2344 = vadd.f32 %v2210, %v2211
        %v2345 = vadd.f32 %v2344, %v2212
        %v2346 = vadd.f32 %v2345, %v2213
        %v2347 = vrot.slane %v2346, 4
        %v2348 = vadd.f32 %v2346, %v2347
        %v2349 = vrot.slane %v2348, 2
        %v2350 = vadd.f32 %v2348, %v2349
        %v2351 = vrot.slane %v2350, 1
        %v2352 = vadd.f32 %v2350, %v2351
        %v2353 = vadd.f32 %v2214, %v2215
        %v2354 = vadd.f32 %v2353, %v2216
        %v2355 = vadd.f32 %v2354, %v2217
        %v2356 = vrot.slane %v2355, 4
        %v2357 = vadd.f32 %v2355, %v2356
        %v2358 = vrot.slane %v2357, 2
        %v2359 = vadd.f32 %v2357, %v2358
        %v2360 = vrot.slane %v2359, 1
        %v2361 = vadd.f32 %v2359, %v2360
        %vm2362 = vcmp.ge.s32.totalorder %v1657, 1
        %vm2379 = vcmask 1041409
        %v2380 = vsel %vm2379, %v2235, %v2226
        %vm2381 = vcmask 1042434
        %v2382 = vsel %vm2381, %v2244, %v2380
        %vm2383 = vcmask 1043459
        %v2384 = vsel %vm2383, %v2253, %v2382
        %vm2385 = vcmask 1044484
        %v2386 = vsel %vm2385, %v2262, %v2384
        %vm2387 = vcmask 1045509
        %v2388 = vsel %vm2387, %v2271, %v2386
        %vm2389 = vcmask 1046534
        %v2390 = vsel %vm2389, %v2280, %v2388
        %vm2391 = vcmask 1047559
        %v2392 = vsel %vm2391, %v2289, %v2390
        %v2393 = vsel %vm2379, %v2307, %v2298
        %v2394 = vsel %vm2381, %v2316, %v2393
        %v2395 = vsel %vm2383, %v2325, %v2394
        %v2396 = vsel %vm2385, %v2334, %v2395
        %v2397 = vsel %vm2387, %v2343, %v2396
        %v2398 = vsel %vm2389, %v2352, %v2397
        %v2399 = vsel %vm2391, %v2361, %v2398
        %v2402 = vsel %vm2362, %v2392, 0.0
        %v2403 = vsel %vm2362, %v2399, 0.0
        %s2404 = sld [smem:[#allocation2 + $0x2]]
        %v2405 = vstv %s2404
        %v2406 = vmul.f32 %v2402, %v2405
        %v2407 = vmul.f32 %v2403, %v2405
        %v2410 = vrot.slane %v2406, 1
        %v2411 = vrot.slane %v2406, 2
        %v2412 = vrot.slane %v2406, 3
        %v2413 = vrot.slane %v2406, 4
        %v2414 = vrot.slane %v2406, 5
        %v2415 = vrot.slane %v2406, 6
        %v2416 = vrot.slane %v2406, 7
        %v2417 = vrot.slane %v2407, 1
        %v2418 = vrot.slane %v2407, 2
        %v2419 = vrot.slane %v2407, 3
        %v2420 = vrot.slane %v2407, 4
        %v2421 = vrot.slane %v2407, 5
        %v2422 = vrot.slane %v2407, 6
        %v2423 = vrot.slane %v2407, 7
        %v2440 = vadd.f32 %v1892, %v2406
        %v2441 = vadd.f32 %v1893, %v2410
        %v2442 = vadd.f32 %v1894, %v2411
        %v2443 = vadd.f32 %v1895, %v2412
        %v2444 = vadd.f32 %v1896, %v2413
        %v2445 = vadd.f32 %v1897, %v2414
        %v2446 = vadd.f32 %v1898, %v2415
        %v2447 = vadd.f32 %v1899, %v2416
        %v2448 = vadd.f32 %v1900, %v2407
        %v2449 = vadd.f32 %v1901, %v2417
        %v2450 = vadd.f32 %v1902, %v2418
        %v2451 = vadd.f32 %v1903, %v2419
        %v2452 = vadd.f32 %v1904, %v2420
        %v2453 = vadd.f32 %v1905, %v2421
        %v2454 = vadd.f32 %v1906, %v2422
        %v2455 = vadd.f32 %v1907, %v2423
        %s2456 = sld [smem:[#allocation2 + $0x3]]
        %v2457 = vstv %s2456
        %v2458 = vmul.f32 %v2402, %v2457
        %v2459 = vmul.f32 %v2403, %v2457
        %v2462 = vrot.slane %v2458, 1
        %v2463 = vrot.slane %v2458, 2
        %v2464 = vrot.slane %v2458, 3
        %v2465 = vrot.slane %v2458, 4
        %v2466 = vrot.slane %v2458, 5
        %v2467 = vrot.slane %v2458, 6
        %v2468 = vrot.slane %v2458, 7
        %v2469 = vrot.slane %v2459, 1
        %v2470 = vrot.slane %v2459, 2
        %v2471 = vrot.slane %v2459, 3
        %v2472 = vrot.slane %v2459, 4
        %v2473 = vrot.slane %v2459, 5
        %v2474 = vrot.slane %v2459, 6
        %v2475 = vrot.slane %v2459, 7
        %v2492 = vadd.f32 %v1926, %v2458
        %v2493 = vadd.f32 %v1927, %v2462
        %v2494 = vadd.f32 %v1928, %v2463
        %v2495 = vadd.f32 %v1929, %v2464
        %v2496 = vadd.f32 %v1930, %v2465
        %v2497 = vadd.f32 %v1931, %v2466
        %v2498 = vadd.f32 %v1932, %v2467
        %v2499 = vadd.f32 %v1933, %v2468
        %v2500 = vadd.f32 %v1934, %v2459
        %v2501 = vadd.f32 %v1935, %v2469
        %v2502 = vadd.f32 %v1936, %v2470
        %v2503 = vadd.f32 %v1937, %v2471
        %v2504 = vadd.f32 %v1938, %v2472
        %v2505 = vadd.f32 %v1939, %v2473
        %v2506 = vadd.f32 %v1940, %v2474
        %v2507 = vadd.f32 %v1941, %v2475
        %s2508 = sld [smem:[#allocation2 + $0x14]]
        %v2509 = vstv %s2508
        %v2510 = vmul.f32 %v2402, %v2509
        %v2511 = vmul.f32 %v2403, %v2509
        %v2514 = vrot.slane %v2510, 1
        %v2515 = vrot.slane %v2510, 2
        %v2516 = vrot.slane %v2510, 3
        %v2517 = vrot.slane %v2510, 4
        %v2518 = vrot.slane %v2510, 5
        %v2519 = vrot.slane %v2510, 6
        %v2520 = vrot.slane %v2510, 7
        %v2521 = vrot.slane %v2511, 1
        %v2522 = vrot.slane %v2511, 2
        %v2523 = vrot.slane %v2511, 3
        %v2524 = vrot.slane %v2511, 4
        %v2525 = vrot.slane %v2511, 5
        %v2526 = vrot.slane %v2511, 6
        %v2527 = vrot.slane %v2511, 7
        %v2544 = vadd.f32 %v1960, %v2510
        %v2545 = vadd.f32 %v1961, %v2514
        %v2546 = vadd.f32 %v1962, %v2515
        %v2547 = vadd.f32 %v1963, %v2516
        %v2548 = vadd.f32 %v1964, %v2517
        %v2549 = vadd.f32 %v1965, %v2518
        %v2550 = vadd.f32 %v1966, %v2519
        %v2551 = vadd.f32 %v1967, %v2520
        %v2552 = vadd.f32 %v1968, %v2511
        %v2553 = vadd.f32 %v1969, %v2521
        %v2554 = vadd.f32 %v1970, %v2522
        %v2555 = vadd.f32 %v1971, %v2523
        %v2556 = vadd.f32 %v1972, %v2524
        %v2557 = vadd.f32 %v1973, %v2525
        %v2558 = vadd.f32 %v1974, %v2526
        %v2559 = vadd.f32 %v1975, %v2527
        %s2560 = sld [smem:[#allocation2 + $0x15]]
        %v2561 = vstv %s2560
        %v2562 = vmul.f32 %v2402, %v2561
        %v2563 = vmul.f32 %v2403, %v2561
        %v2566 = vrot.slane %v2562, 1
        %v2567 = vrot.slane %v2562, 2
        %v2568 = vrot.slane %v2562, 3
        %v2569 = vrot.slane %v2562, 4
        %v2570 = vrot.slane %v2562, 5
        %v2571 = vrot.slane %v2562, 6
        %v2572 = vrot.slane %v2562, 7
        %v2573 = vrot.slane %v2563, 1
        %v2574 = vrot.slane %v2563, 2
        %v2575 = vrot.slane %v2563, 3
        %v2576 = vrot.slane %v2563, 4
        %v2577 = vrot.slane %v2563, 5
        %v2578 = vrot.slane %v2563, 6
        %v2579 = vrot.slane %v2563, 7
        %v2596 = vadd.f32 %v1994, %v2562
        %v2597 = vadd.f32 %v1995, %v2566
        %v2598 = vadd.f32 %v1996, %v2567
        %v2599 = vadd.f32 %v1997, %v2568
        %v2600 = vadd.f32 %v1998, %v2569
        %v2601 = vadd.f32 %v1999, %v2570
        %v2602 = vadd.f32 %v2000, %v2571
        %v2603 = vadd.f32 %v2001, %v2572
        %v2604 = vadd.f32 %v2002, %v2563
        %v2605 = vadd.f32 %v2003, %v2573
        %v2606 = vadd.f32 %v2004, %v2574
        %v2607 = vadd.f32 %v2005, %v2575
        %v2608 = vadd.f32 %v2006, %v2576
        %v2609 = vadd.f32 %v2007, %v2577
        %v2610 = vadd.f32 %v2008, %v2578
        %v2611 = vadd.f32 %v2009, %v2579
        %v2614 = vrot.slane %v2402, 1
        %v2615 = vrot.slane %v2402, 2
        %v2616 = vrot.slane %v2402, 3
        %v2617 = vrot.slane %v2402, 4
        %v2618 = vrot.slane %v2402, 5
        %v2619 = vrot.slane %v2402, 6
        %v2620 = vrot.slane %v2402, 7
        %v2621 = vrot.slane %v2403, 1
        %v2622 = vrot.slane %v2403, 2
        %v2623 = vrot.slane %v2403, 3
        %v2624 = vrot.slane %v2403, 4
        %v2625 = vrot.slane %v2403, 5
        %v2626 = vrot.slane %v2403, 6
        %v2627 = vrot.slane %v2403, 7
        %v2644 = vadd.f32 %v2010, %v2402
        %v2645 = vadd.f32 %v2011, %v2614
        %v2646 = vadd.f32 %v2012, %v2615
        %v2647 = vadd.f32 %v2013, %v2616
        %v2648 = vadd.f32 %v2014, %v2617
        %v2649 = vadd.f32 %v2015, %v2618
        %v2650 = vadd.f32 %v2016, %v2619
        %v2651 = vadd.f32 %v2017, %v2620
        %v2652 = vadd.f32 %v2018, %v2403
        %v2653 = vadd.f32 %v2019, %v2621
        %v2654 = vadd.f32 %v2020, %v2622
        %v2655 = vadd.f32 %v2021, %v2623
        %v2656 = vadd.f32 %v2022, %v2624
        %v2657 = vadd.f32 %v2023, %v2625
        %v2658 = vadd.f32 %v2024, %v2626
        %v2659 = vadd.f32 %v2025, %v2627
        %2660 = vrot.lane.b32.xlu0 %v1592, 2
        %v2661 = vpop.permute.xlu0 %2660
        %2662 = vrot.lane.b32.xlu0 %v1593, 2
        %v2663 = vpop.permute.xlu0 %2662
        %2664 = vrot.lane.b32.xlu0 %v1594, 2
        %v2665 = vpop.permute.xlu0 %2664
        %2666 = vrot.lane.b32.xlu0 %v1595, 2
        %v2667 = vpop.permute.xlu0 %2666
        %2668 = vrot.lane.b32.xlu0 %v1596, 2
        %v2669 = vpop.permute.xlu0 %2668
        %2670 = vrot.lane.b32.xlu0 %v1597, 2
        %v2671 = vpop.permute.xlu0 %2670
        %2672 = vrot.lane.b32.xlu0 %v1598, 2
        %v2673 = vpop.permute.xlu0 %2672
        %2674 = vrot.lane.b32.xlu0 %v1599, 2
        %v2675 = vpop.permute.xlu0 %2674
        %2676 = vrot.lane.b32.xlu0 %v1600, 2
        %v2677 = vpop.permute.xlu0 %2676
        %2678 = vrot.lane.b32.xlu0 %v1601, 2
        %v2679 = vpop.permute.xlu0 %2678
        %2680 = vrot.lane.b32.xlu0 %v1602, 2
        %v2681 = vpop.permute.xlu0 %2680
        %2682 = vrot.lane.b32.xlu0 %v1603, 2
        %v2683 = vpop.permute.xlu0 %2682
        %2684 = vrot.lane.b32.xlu0 %v1604, 2
        %v2685 = vpop.permute.xlu0 %2684
        %2686 = vrot.lane.b32.xlu0 %v1605, 2
        %v2687 = vpop.permute.xlu0 %2686
        %2688 = vrot.lane.b32.xlu0 %v1606, 2
        %v2689 = vpop.permute.xlu0 %2688
        %2690 = vrot.lane.b32.xlu0 %v1607, 2
        %v2691 = vpop.permute.xlu0 %2690
        %2692 = vrot.lane.b32.xlu0 %v1608, 2
        %v2693 = vpop.permute.xlu0 %2692
        %2694 = vrot.lane.b32.xlu0 %v1609, 2
        %v2695 = vpop.permute.xlu0 %2694
        %2696 = vrot.lane.b32.xlu0 %v1610, 2
        %v2697 = vpop.permute.xlu0 %2696
        %2698 = vrot.lane.b32.xlu0 %v1611, 2
        %v2699 = vpop.permute.xlu0 %2698
        %2700 = vrot.lane.b32.xlu0 %v1612, 2
        %v2701 = vpop.permute.xlu0 %2700
        %2702 = vrot.lane.b32.xlu0 %v1613, 2
        %v2703 = vpop.permute.xlu0 %2702
        %2704 = vrot.lane.b32.xlu0 %v1614, 2
        %v2705 = vpop.permute.xlu0 %2704
        %2706 = vrot.lane.b32.xlu0 %v1615, 2
        %v2707 = vpop.permute.xlu0 %2706
        %2708 = vrot.lane.b32.xlu0 %v1616, 2
        %v2709 = vpop.permute.xlu0 %2708
        %2710 = vrot.lane.b32.xlu0 %v1617, 2
        %v2711 = vpop.permute.xlu0 %2710
        %2712 = vrot.lane.b32.xlu0 %v1618, 2
        %v2713 = vpop.permute.xlu0 %2712
        %2714 = vrot.lane.b32.xlu0 %v1619, 2
        %v2715 = vpop.permute.xlu0 %2714
        %2716 = vrot.lane.b32.xlu0 %v1620, 2
        %v2717 = vpop.permute.xlu0 %2716
        %2718 = vrot.lane.b32.xlu0 %v1621, 2
        %v2719 = vpop.permute.xlu0 %2718
        %2720 = vrot.lane.b32.xlu0 %v1622, 2
        %v2721 = vpop.permute.xlu0 %2720
        %2722 = vrot.lane.b32.xlu0 %v1623, 2
        %v2723 = vpop.permute.xlu0 %2722
        %2724 = vrot.lane.b32.xlu0 %v1624, 2
        %v2725 = vpop.permute.xlu0 %2724
        %2726 = vrot.lane.b32.xlu0 %v1625, 2
        %v2727 = vpop.permute.xlu0 %2726
        %2728 = vrot.lane.b32.xlu0 %v1626, 2
        %v2729 = vpop.permute.xlu0 %2728
        %2730 = vrot.lane.b32.xlu0 %v1627, 2
        %v2731 = vpop.permute.xlu0 %2730
        %2732 = vrot.lane.b32.xlu0 %v1628, 2
        %v2733 = vpop.permute.xlu0 %2732
        %2734 = vrot.lane.b32.xlu0 %v1629, 2
        %v2735 = vpop.permute.xlu0 %2734
        %2736 = vrot.lane.b32.xlu0 %v1630, 2
        %v2737 = vpop.permute.xlu0 %2736
        %2738 = vrot.lane.b32.xlu0 %v1631, 2
        %v2739 = vpop.permute.xlu0 %2738
        %2740 = vrot.lane.b32.xlu0 %v1632, 2
        %v2741 = vpop.permute.xlu0 %2740
        %2742 = vrot.lane.b32.xlu0 %v1633, 2
        %v2743 = vpop.permute.xlu0 %2742
        %2744 = vrot.lane.b32.xlu0 %v1634, 2
        %v2745 = vpop.permute.xlu0 %2744
        %2746 = vrot.lane.b32.xlu0 %v1635, 2
        %v2747 = vpop.permute.xlu0 %2746
        %2748 = vrot.lane.b32.xlu0 %v1636, 2
        %v2749 = vpop.permute.xlu0 %2748
        %2750 = vrot.lane.b32.xlu0 %v1637, 2
        %v2751 = vpop.permute.xlu0 %2750
        %2752 = vrot.lane.b32.xlu0 %v1638, 2
        %v2753 = vpop.permute.xlu0 %2752
        %2754 = vrot.lane.b32.xlu0 %v1639, 2
        %v2755 = vpop.permute.xlu0 %2754
        %2756 = vrot.lane.b32.xlu0 %v1640, 2
        %v2757 = vpop.permute.xlu0 %2756
        %2758 = vrot.lane.b32.xlu0 %v1641, 2
        %v2759 = vpop.permute.xlu0 %2758
        %2760 = vrot.lane.b32.xlu0 %v1642, 2
        %v2761 = vpop.permute.xlu0 %2760
        %2762 = vrot.lane.b32.xlu0 %v1643, 2
        %v2763 = vpop.permute.xlu0 %2762
        %2764 = vrot.lane.b32.xlu0 %v1644, 2
        %v2765 = vpop.permute.xlu0 %2764
        %2766 = vrot.lane.b32.xlu0 %v1645, 2
        %v2767 = vpop.permute.xlu0 %2766
        %2768 = vrot.lane.b32.xlu0 %v1646, 2
        %v2769 = vpop.permute.xlu0 %2768
        %2770 = vrot.lane.b32.xlu0 %v1647, 2
        %v2771 = vpop.permute.xlu0 %2770
        %2772 = vrot.lane.b32.xlu0 %v1648, 2
        %v2773 = vpop.permute.xlu0 %2772
        %2774 = vrot.lane.b32.xlu0 %v1649, 2
        %v2775 = vpop.permute.xlu0 %2774
        %2776 = vrot.lane.b32.xlu0 %v1650, 2
        %v2777 = vpop.permute.xlu0 %2776
        %2778 = vrot.lane.b32.xlu0 %v1651, 2
        %v2779 = vpop.permute.xlu0 %2778
        %2780 = vrot.lane.b32.xlu0 %v1652, 2
        %v2781 = vpop.permute.xlu0 %2780
        %2782 = vrot.lane.b32.xlu0 %v1653, 2
        %v2783 = vpop.permute.xlu0 %2782
        %2784 = vrot.lane.b32.xlu0 %v1654, 2
        %v2785 = vpop.permute.xlu0 %2784
        %2786 = vrot.lane.b32.xlu0 %v1655, 2
        %v2787 = vpop.permute.xlu0 %2786
        %v2788 = vmul.f32 %v992, %v2661
        %v2789 = vmul.f32 %v993, %v2663
        %v2790 = vmul.f32 %v994, %v2665
        %v2791 = vmul.f32 %v995, %v2667
        %v2792 = vmul.f32 %v996, %v2669
        %v2793 = vmul.f32 %v997, %v2671
        %v2794 = vmul.f32 %v998, %v2673
        %v2795 = vmul.f32 %v999, %v2675
        %v2796 = vmul.f32 %v1000, %v2677
        %v2797 = vmul.f32 %v1001, %v2679
        %v2798 = vmul.f32 %v1002, %v2681
        %v2799 = vmul.f32 %v1003, %v2683
        %v2800 = vmul.f32 %v1004, %v2685
        %v2801 = vmul.f32 %v1005, %v2687
        %v2802 = vmul.f32 %v1006, %v2689
        %v2803 = vmul.f32 %v1007, %v2691
        %v2804 = vmul.f32 %v1008, %v2693
        %v2805 = vmul.f32 %v1009, %v2695
        %v2806 = vmul.f32 %v1010, %v2697
        %v2807 = vmul.f32 %v1011, %v2699
        %v2808 = vmul.f32 %v1012, %v2701
        %v2809 = vmul.f32 %v1013, %v2703
        %v2810 = vmul.f32 %v1014, %v2705
        %v2811 = vmul.f32 %v1015, %v2707
        %v2812 = vmul.f32 %v1016, %v2709
        %v2813 = vmul.f32 %v1017, %v2711
        %v2814 = vmul.f32 %v1018, %v2713
        %v2815 = vmul.f32 %v1019, %v2715
        %v2816 = vmul.f32 %v1020, %v2717
        %v2817 = vmul.f32 %v1021, %v2719
        %v2818 = vmul.f32 %v1022, %v2721
        %v2819 = vmul.f32 %v1023, %v2723
        %v2820 = vmul.f32 %v1024, %v2725
        %v2821 = vmul.f32 %v1025, %v2727
        %v2822 = vmul.f32 %v1026, %v2729
        %v2823 = vmul.f32 %v1027, %v2731
        %v2824 = vmul.f32 %v1028, %v2733
        %v2825 = vmul.f32 %v1029, %v2735
        %v2826 = vmul.f32 %v1030, %v2737
        %v2827 = vmul.f32 %v1031, %v2739
        %v2828 = vmul.f32 %v1032, %v2741
        %v2829 = vmul.f32 %v1033, %v2743
        %v2830 = vmul.f32 %v1034, %v2745
        %v2831 = vmul.f32 %v1035, %v2747
        %v2832 = vmul.f32 %v1036, %v2749
        %v2833 = vmul.f32 %v1037, %v2751
        %v2834 = vmul.f32 %v1038, %v2753
        %v2835 = vmul.f32 %v1039, %v2755
        %v2836 = vmul.f32 %v1040, %v2757
        %v2837 = vmul.f32 %v1041, %v2759
        %v2838 = vmul.f32 %v1042, %v2761
        %v2839 = vmul.f32 %v1043, %v2763
        %v2840 = vmul.f32 %v1044, %v2765
        %v2841 = vmul.f32 %v1045, %v2767
        %v2842 = vmul.f32 %v1046, %v2769
        %v2843 = vmul.f32 %v1047, %v2771
        %v2844 = vmul.f32 %v1048, %v2773
        %v2845 = vmul.f32 %v1049, %v2775
        %v2846 = vmul.f32 %v1050, %v2777
        %v2847 = vmul.f32 %v1051, %v2779
        %v2848 = vmul.f32 %v1052, %v2781
        %v2849 = vmul.f32 %v1053, %v2783
        %v2850 = vmul.f32 %v1054, %v2785
        %v2851 = vmul.f32 %v1055, %v2787
        %v2852 = vadd.f32 %v2788, %v2789
        %v2853 = vadd.f32 %v2852, %v2790
        %v2854 = vadd.f32 %v2853, %v2791
        %v2855 = vrot.slane %v2854, 4
        %v2856 = vadd.f32 %v2854, %v2855
        %v2857 = vrot.slane %v2856, 2
        %v2858 = vadd.f32 %v2856, %v2857
        %v2859 = vrot.slane %v2858, 1
        %v2860 = vadd.f32 %v2858, %v2859
        %v2861 = vadd.f32 %v2792, %v2793
        %v2862 = vadd.f32 %v2861, %v2794
        %v2863 = vadd.f32 %v2862, %v2795
        %v2864 = vrot.slane %v2863, 4
        %v2865 = vadd.f32 %v2863, %v2864
        %v2866 = vrot.slane %v2865, 2
        %v2867 = vadd.f32 %v2865, %v2866
        %v2868 = vrot.slane %v2867, 1
        %v2869 = vadd.f32 %v2867, %v2868
        %v2870 = vadd.f32 %v2796, %v2797
        %v2871 = vadd.f32 %v2870, %v2798
        %v2872 = vadd.f32 %v2871, %v2799
        %v2873 = vrot.slane %v2872, 4
        %v2874 = vadd.f32 %v2872, %v2873
        %v2875 = vrot.slane %v2874, 2
        %v2876 = vadd.f32 %v2874, %v2875
        %v2877 = vrot.slane %v2876, 1
        %v2878 = vadd.f32 %v2876, %v2877
        %v2879 = vadd.f32 %v2800, %v2801
        %v2880 = vadd.f32 %v2879, %v2802
        %v2881 = vadd.f32 %v2880, %v2803
        %v2882 = vrot.slane %v2881, 4
        %v2883 = vadd.f32 %v2881, %v2882
        %v2884 = vrot.slane %v2883, 2
        %v2885 = vadd.f32 %v2883, %v2884
        %v2886 = vrot.slane %v2885, 1
        %v2887 = vadd.f32 %v2885, %v2886
        %v2888 = vadd.f32 %v2804, %v2805
        %v2889 = vadd.f32 %v2888, %v2806
        %v2890 = vadd.f32 %v2889, %v2807
        %v2891 = vrot.slane %v2890, 4
        %v2892 = vadd.f32 %v2890, %v2891
        %v2893 = vrot.slane %v2892, 2
        %v2894 = vadd.f32 %v2892, %v2893
        %v2895 = vrot.slane %v2894, 1
        %v2896 = vadd.f32 %v2894, %v2895
        %v2897 = vadd.f32 %v2808, %v2809
        %v2898 = vadd.f32 %v2897, %v2810
        %v2899 = vadd.f32 %v2898, %v2811
        %v2900 = vrot.slane %v2899, 4
        %v2901 = vadd.f32 %v2899, %v2900
        %v2902 = vrot.slane %v2901, 2
        %v2903 = vadd.f32 %v2901, %v2902
        %v2904 = vrot.slane %v2903, 1
        %v2905 = vadd.f32 %v2903, %v2904
        %v2906 = vadd.f32 %v2812, %v2813
        %v2907 = vadd.f32 %v2906, %v2814
        %v2908 = vadd.f32 %v2907, %v2815
        %v2909 = vrot.slane %v2908, 4
        %v2910 = vadd.f32 %v2908, %v2909
        %v2911 = vrot.slane %v2910, 2
        %v2912 = vadd.f32 %v2910, %v2911
        %v2913 = vrot.slane %v2912, 1
        %v2914 = vadd.f32 %v2912, %v2913
        %v2915 = vadd.f32 %v2816, %v2817
        %v2916 = vadd.f32 %v2915, %v2818
        %v2917 = vadd.f32 %v2916, %v2819
        %v2918 = vrot.slane %v2917, 4
        %v2919 = vadd.f32 %v2917, %v2918
        %v2920 = vrot.slane %v2919, 2
        %v2921 = vadd.f32 %v2919, %v2920
        %v2922 = vrot.slane %v2921, 1
        %v2923 = vadd.f32 %v2921, %v2922
        %v2924 = vadd.f32 %v2820, %v2821
        %v2925 = vadd.f32 %v2924, %v2822
        %v2926 = vadd.f32 %v2925, %v2823
        %v2927 = vrot.slane %v2926, 4
        %v2928 = vadd.f32 %v2926, %v2927
        %v2929 = vrot.slane %v2928, 2
        %v2930 = vadd.f32 %v2928, %v2929
        %v2931 = vrot.slane %v2930, 1
        %v2932 = vadd.f32 %v2930, %v2931
        %v2933 = vadd.f32 %v2824, %v2825
        %v2934 = vadd.f32 %v2933, %v2826
        %v2935 = vadd.f32 %v2934, %v2827
        %v2936 = vrot.slane %v2935, 4
        %v2937 = vadd.f32 %v2935, %v2936
        %v2938 = vrot.slane %v2937, 2
        %v2939 = vadd.f32 %v2937, %v2938
        %v2940 = vrot.slane %v2939, 1
        %v2941 = vadd.f32 %v2939, %v2940
        %v2942 = vadd.f32 %v2828, %v2829
        %v2943 = vadd.f32 %v2942, %v2830
        %v2944 = vadd.f32 %v2943, %v2831
        %v2945 = vrot.slane %v2944, 4
        %v2946 = vadd.f32 %v2944, %v2945
        %v2947 = vrot.slane %v2946, 2
        %v2948 = vadd.f32 %v2946, %v2947
        %v2949 = vrot.slane %v2948, 1
        %v2950 = vadd.f32 %v2948, %v2949
        %v2951 = vadd.f32 %v2832, %v2833
        %v2952 = vadd.f32 %v2951, %v2834
        %v2953 = vadd.f32 %v2952, %v2835
        %v2954 = vrot.slane %v2953, 4
        %v2955 = vadd.f32 %v2953, %v2954
        %v2956 = vrot.slane %v2955, 2
        %v2957 = vadd.f32 %v2955, %v2956
        %v2958 = vrot.slane %v2957, 1
        %v2959 = vadd.f32 %v2957, %v2958
        %v2960 = vadd.f32 %v2836, %v2837
        %v2961 = vadd.f32 %v2960, %v2838
        %v2962 = vadd.f32 %v2961, %v2839
        %v2963 = vrot.slane %v2962, 4
        %v2964 = vadd.f32 %v2962, %v2963
        %v2965 = vrot.slane %v2964, 2
        %v2966 = vadd.f32 %v2964, %v2965
        %v2967 = vrot.slane %v2966, 1
        %v2968 = vadd.f32 %v2966, %v2967
        %v2969 = vadd.f32 %v2840, %v2841
        %v2970 = vadd.f32 %v2969, %v2842
        %v2971 = vadd.f32 %v2970, %v2843
        %v2972 = vrot.slane %v2971, 4
        %v2973 = vadd.f32 %v2971, %v2972
        %v2974 = vrot.slane %v2973, 2
        %v2975 = vadd.f32 %v2973, %v2974
        %v2976 = vrot.slane %v2975, 1
        %v2977 = vadd.f32 %v2975, %v2976
        %v2978 = vadd.f32 %v2844, %v2845
        %v2979 = vadd.f32 %v2978, %v2846
        %v2980 = vadd.f32 %v2979, %v2847
        %v2981 = vrot.slane %v2980, 4
        %v2982 = vadd.f32 %v2980, %v2981
        %v2983 = vrot.slane %v2982, 2
        %v2984 = vadd.f32 %v2982, %v2983
        %v2985 = vrot.slane %v2984, 1
        %v2986 = vadd.f32 %v2984, %v2985
        %v2987 = vadd.f32 %v2848, %v2849
        %v2988 = vadd.f32 %v2987, %v2850
        %v2989 = vadd.f32 %v2988, %v2851
        %v2990 = vrot.slane %v2989, 4
        %v2991 = vadd.f32 %v2989, %v2990
        %v2992 = vrot.slane %v2991, 2
        %v2993 = vadd.f32 %v2991, %v2992
        %v2994 = vrot.slane %v2993, 1
        %v2995 = vadd.f32 %v2993, %v2994
        %vm2996 = vcmp.ge.s32.totalorder %v1657, 2
        %v3013 = vsel %vm2379, %v2869, %v2860
        %v3014 = vsel %vm2381, %v2878, %v3013
        %v3015 = vsel %vm2383, %v2887, %v3014
        %v3016 = vsel %vm2385, %v2896, %v3015
        %v3017 = vsel %vm2387, %v2905, %v3016
        %v3018 = vsel %vm2389, %v2914, %v3017
        %v3019 = vsel %vm2391, %v2923, %v3018
        %v3020 = vsel %vm2379, %v2941, %v2932
        %v3021 = vsel %vm2381, %v2950, %v3020
        %v3022 = vsel %vm2383, %v2959, %v3021
        %v3023 = vsel %vm2385, %v2968, %v3022
        %v3024 = vsel %vm2387, %v2977, %v3023
        %v3025 = vsel %vm2389, %v2986, %v3024
        %v3026 = vsel %vm2391, %v2995, %v3025
        %v3029 = vsel %vm2996, %v3019, 0.0
        %v3030 = vsel %vm2996, %v3026, 0.0
        %s3031 = sld [smem:[#allocation2 + $0x4]]
        %v3032 = vstv %s3031
        %v3033 = vmul.f32 %v3029, %v3032
        %v3034 = vmul.f32 %v3030, %v3032
        %v3037 = vrot.slane %v3033, 1
        %v3038 = vrot.slane %v3033, 2
        %v3039 = vrot.slane %v3033, 3
        %v3040 = vrot.slane %v3033, 4
        %v3041 = vrot.slane %v3033, 5
        %v3042 = vrot.slane %v3033, 6
        %v3043 = vrot.slane %v3033, 7
        %v3044 = vrot.slane %v3034, 1
        %v3045 = vrot.slane %v3034, 2
        %v3046 = vrot.slane %v3034, 3
        %v3047 = vrot.slane %v3034, 4
        %v3048 = vrot.slane %v3034, 5
        %v3049 = vrot.slane %v3034, 6
        %v3050 = vrot.slane %v3034, 7
        %v3067 = vadd.f32 %v2440, %v3033
        %v3068 = vadd.f32 %v2441, %v3037
        %v3069 = vadd.f32 %v2442, %v3038
        %v3070 = vadd.f32 %v2443, %v3039
        %v3071 = vadd.f32 %v2444, %v3040
        %v3072 = vadd.f32 %v2445, %v3041
        %v3073 = vadd.f32 %v2446, %v3042
        %v3074 = vadd.f32 %v2447, %v3043
        %v3075 = vadd.f32 %v2448, %v3034
        %v3076 = vadd.f32 %v2449, %v3044
        %v3077 = vadd.f32 %v2450, %v3045
        %v3078 = vadd.f32 %v2451, %v3046
        %v3079 = vadd.f32 %v2452, %v3047
        %v3080 = vadd.f32 %v2453, %v3048
        %v3081 = vadd.f32 %v2454, %v3049
        %v3082 = vadd.f32 %v2455, %v3050
        %s3083 = sld [smem:[#allocation2 + $0x5]]
        %v3084 = vstv %s3083
        %v3085 = vmul.f32 %v3029, %v3084
        %v3086 = vmul.f32 %v3030, %v3084
        %v3089 = vrot.slane %v3085, 1
        %v3090 = vrot.slane %v3085, 2
        %v3091 = vrot.slane %v3085, 3
        %v3092 = vrot.slane %v3085, 4
        %v3093 = vrot.slane %v3085, 5
        %v3094 = vrot.slane %v3085, 6
        %v3095 = vrot.slane %v3085, 7
        %v3096 = vrot.slane %v3086, 1
        %v3097 = vrot.slane %v3086, 2
        %v3098 = vrot.slane %v3086, 3
        %v3099 = vrot.slane %v3086, 4
        %v3100 = vrot.slane %v3086, 5
        %v3101 = vrot.slane %v3086, 6
        %v3102 = vrot.slane %v3086, 7
        %v3119 = vadd.f32 %v2492, %v3085
        %v3120 = vadd.f32 %v2493, %v3089
        %v3121 = vadd.f32 %v2494, %v3090
        %v3122 = vadd.f32 %v2495, %v3091
        %v3123 = vadd.f32 %v2496, %v3092
        %v3124 = vadd.f32 %v2497, %v3093
        %v3125 = vadd.f32 %v2498, %v3094
        %v3126 = vadd.f32 %v2499, %v3095
        %v3127 = vadd.f32 %v2500, %v3086
        %v3128 = vadd.f32 %v2501, %v3096
        %v3129 = vadd.f32 %v2502, %v3097
        %v3130 = vadd.f32 %v2503, %v3098
        %v3131 = vadd.f32 %v2504, %v3099
        %v3132 = vadd.f32 %v2505, %v3100
        %v3133 = vadd.f32 %v2506, %v3101
        %v3134 = vadd.f32 %v2507, %v3102
        %s3135 = sld [smem:[#allocation2 + $0x16]]
        %v3136 = vstv %s3135
        %v3137 = vmul.f32 %v3029, %v3136
        %v3138 = vmul.f32 %v3030, %v3136
        %v3141 = vrot.slane %v3137, 1
        %v3142 = vrot.slane %v3137, 2
        %v3143 = vrot.slane %v3137, 3
        %v3144 = vrot.slane %v3137, 4
        %v3145 = vrot.slane %v3137, 5
        %v3146 = vrot.slane %v3137, 6
        %v3147 = vrot.slane %v3137, 7
        %v3148 = vrot.slane %v3138, 1
        %v3149 = vrot.slane %v3138, 2
        %v3150 = vrot.slane %v3138, 3
        %v3151 = vrot.slane %v3138, 4
        %v3152 = vrot.slane %v3138, 5
        %v3153 = vrot.slane %v3138, 6
        %v3154 = vrot.slane %v3138, 7
        %v3171 = vadd.f32 %v2544, %v3137
        %v3172 = vadd.f32 %v2545, %v3141
        %v3173 = vadd.f32 %v2546, %v3142
        %v3174 = vadd.f32 %v2547, %v3143
        %v3175 = vadd.f32 %v2548, %v3144
        %v3176 = vadd.f32 %v2549, %v3145
        %v3177 = vadd.f32 %v2550, %v3146
        %v3178 = vadd.f32 %v2551, %v3147
        %v3179 = vadd.f32 %v2552, %v3138
        %v3180 = vadd.f32 %v2553, %v3148
        %v3181 = vadd.f32 %v2554, %v3149
        %v3182 = vadd.f32 %v2555, %v3150
        %v3183 = vadd.f32 %v2556, %v3151
        %v3184 = vadd.f32 %v2557, %v3152
        %v3185 = vadd.f32 %v2558, %v3153
        %v3186 = vadd.f32 %v2559, %v3154
        %s3187 = sld [smem:[#allocation2 + $0x17]]
        %v3188 = vstv %s3187
        %v3189 = vmul.f32 %v3029, %v3188
        %v3190 = vmul.f32 %v3030, %v3188
        %v3193 = vrot.slane %v3189, 1
        %v3194 = vrot.slane %v3189, 2
        %v3195 = vrot.slane %v3189, 3
        %v3196 = vrot.slane %v3189, 4
        %v3197 = vrot.slane %v3189, 5
        %v3198 = vrot.slane %v3189, 6
        %v3199 = vrot.slane %v3189, 7
        %v3200 = vrot.slane %v3190, 1
        %v3201 = vrot.slane %v3190, 2
        %v3202 = vrot.slane %v3190, 3
        %v3203 = vrot.slane %v3190, 4
        %v3204 = vrot.slane %v3190, 5
        %v3205 = vrot.slane %v3190, 6
        %v3206 = vrot.slane %v3190, 7
        %v3223 = vadd.f32 %v2596, %v3189
        %v3224 = vadd.f32 %v2597, %v3193
        %v3225 = vadd.f32 %v2598, %v3194
        %v3226 = vadd.f32 %v2599, %v3195
        %v3227 = vadd.f32 %v2600, %v3196
        %v3228 = vadd.f32 %v2601, %v3197
        %v3229 = vadd.f32 %v2602, %v3198
        %v3230 = vadd.f32 %v2603, %v3199
        %v3231 = vadd.f32 %v2604, %v3190
        %v3232 = vadd.f32 %v2605, %v3200
        %v3233 = vadd.f32 %v2606, %v3201
        %v3234 = vadd.f32 %v2607, %v3202
        %v3235 = vadd.f32 %v2608, %v3203
        %v3236 = vadd.f32 %v2609, %v3204
        %v3237 = vadd.f32 %v2610, %v3205
        %v3238 = vadd.f32 %v2611, %v3206
        %v3241 = vrot.slane %v3029, 1
        %v3242 = vrot.slane %v3029, 2
        %v3243 = vrot.slane %v3029, 3
        %v3244 = vrot.slane %v3029, 4
        %v3245 = vrot.slane %v3029, 5
        %v3246 = vrot.slane %v3029, 6
        %v3247 = vrot.slane %v3029, 7
        %v3248 = vrot.slane %v3030, 1
        %v3249 = vrot.slane %v3030, 2
        %v3250 = vrot.slane %v3030, 3
        %v3251 = vrot.slane %v3030, 4
        %v3252 = vrot.slane %v3030, 5
        %v3253 = vrot.slane %v3030, 6
        %v3254 = vrot.slane %v3030, 7
        %v3271 = vadd.f32 %v2644, %v3029
        %v3272 = vadd.f32 %v2645, %v3241
        %v3273 = vadd.f32 %v2646, %v3242
        %v3274 = vadd.f32 %v2647, %v3243
        %v3275 = vadd.f32 %v2648, %v3244
        %v3276 = vadd.f32 %v2649, %v3245
        %v3277 = vadd.f32 %v2650, %v3246
        %v3278 = vadd.f32 %v2651, %v3247
        %v3279 = vadd.f32 %v2652, %v3030
        %v3280 = vadd.f32 %v2653, %v3248
        %v3281 = vadd.f32 %v2654, %v3249
        %v3282 = vadd.f32 %v2655, %v3250
        %v3283 = vadd.f32 %v2656, %v3251
        %v3284 = vadd.f32 %v2657, %v3252
        %v3285 = vadd.f32 %v2658, %v3253
        %v3286 = vadd.f32 %v2659, %v3254
        %3287 = vrot.lane.b32.xlu0 %v1592, 3
        %v3288 = vpop.permute.xlu0 %3287
        %3289 = vrot.lane.b32.xlu0 %v1593, 3
        %v3290 = vpop.permute.xlu0 %3289
        %3291 = vrot.lane.b32.xlu0 %v1594, 3
        %v3292 = vpop.permute.xlu0 %3291
        %3293 = vrot.lane.b32.xlu0 %v1595, 3
        %v3294 = vpop.permute.xlu0 %3293
        %3295 = vrot.lane.b32.xlu0 %v1596, 3
        %v3296 = vpop.permute.xlu0 %3295
        %3297 = vrot.lane.b32.xlu0 %v1597, 3
        %v3298 = vpop.permute.xlu0 %3297
        %3299 = vrot.lane.b32.xlu0 %v1598, 3
        %v3300 = vpop.permute.xlu0 %3299
        %3301 = vrot.lane.b32.xlu0 %v1599, 3
        %v3302 = vpop.permute.xlu0 %3301
        %3303 = vrot.lane.b32.xlu0 %v1600, 3
        %v3304 = vpop.permute.xlu0 %3303
        %3305 = vrot.lane.b32.xlu0 %v1601, 3
        %v3306 = vpop.permute.xlu0 %3305
        %3307 = vrot.lane.b32.xlu0 %v1602, 3
        %v3308 = vpop.permute.xlu0 %3307
        %3309 = vrot.lane.b32.xlu0 %v1603, 3
        %v3310 = vpop.permute.xlu0 %3309
        %3311 = vrot.lane.b32.xlu0 %v1604, 3
        %v3312 = vpop.permute.xlu0 %3311
        %3313 = vrot.lane.b32.xlu0 %v1605, 3
        %v3314 = vpop.permute.xlu0 %3313
        %3315 = vrot.lane.b32.xlu0 %v1606, 3
        %v3316 = vpop.permute.xlu0 %3315
        %3317 = vrot.lane.b32.xlu0 %v1607, 3
        %v3318 = vpop.permute.xlu0 %3317
        %3319 = vrot.lane.b32.xlu0 %v1608, 3
        %v3320 = vpop.permute.xlu0 %3319
        %3321 = vrot.lane.b32.xlu0 %v1609, 3
        %v3322 = vpop.permute.xlu0 %3321
        %3323 = vrot.lane.b32.xlu0 %v1610, 3
        %v3324 = vpop.permute.xlu0 %3323
        %3325 = vrot.lane.b32.xlu0 %v1611, 3
        %v3326 = vpop.permute.xlu0 %3325
        %3327 = vrot.lane.b32.xlu0 %v1612, 3
        %v3328 = vpop.permute.xlu0 %3327
        %3329 = vrot.lane.b32.xlu0 %v1613, 3
        %v3330 = vpop.permute.xlu0 %3329
        %3331 = vrot.lane.b32.xlu0 %v1614, 3
        %v3332 = vpop.permute.xlu0 %3331
        %3333 = vrot.lane.b32.xlu0 %v1615, 3
        %v3334 = vpop.permute.xlu0 %3333
        %3335 = vrot.lane.b32.xlu0 %v1616, 3
        %v3336 = vpop.permute.xlu0 %3335
        %3337 = vrot.lane.b32.xlu0 %v1617, 3
        %v3338 = vpop.permute.xlu0 %3337
        %3339 = vrot.lane.b32.xlu0 %v1618, 3
        %v3340 = vpop.permute.xlu0 %3339
        %3341 = vrot.lane.b32.xlu0 %v1619, 3
        %v3342 = vpop.permute.xlu0 %3341
        %3343 = vrot.lane.b32.xlu0 %v1620, 3
        %v3344 = vpop.permute.xlu0 %3343
        %3345 = vrot.lane.b32.xlu0 %v1621, 3
        %v3346 = vpop.permute.xlu0 %3345
        %3347 = vrot.lane.b32.xlu0 %v1622, 3
        %v3348 = vpop.permute.xlu0 %3347
        %3349 = vrot.lane.b32.xlu0 %v1623, 3
        %v3350 = vpop.permute.xlu0 %3349
        %3351 = vrot.lane.b32.xlu0 %v1624, 3
        %v3352 = vpop.permute.xlu0 %3351
        %3353 = vrot.lane.b32.xlu0 %v1625, 3
        %v3354 = vpop.permute.xlu0 %3353
        %3355 = vrot.lane.b32.xlu0 %v1626, 3
        %v3356 = vpop.permute.xlu0 %3355
        %3357 = vrot.lane.b32.xlu0 %v1627, 3
        %v3358 = vpop.permute.xlu0 %3357
        %3359 = vrot.lane.b32.xlu0 %v1628, 3
        %v3360 = vpop.permute.xlu0 %3359
        %3361 = vrot.lane.b32.xlu0 %v1629, 3
        %v3362 = vpop.permute.xlu0 %3361
        %3363 = vrot.lane.b32.xlu0 %v1630, 3
        %v3364 = vpop.permute.xlu0 %3363
        %3365 = vrot.lane.b32.xlu0 %v1631, 3
        %v3366 = vpop.permute.xlu0 %3365
        %3367 = vrot.lane.b32.xlu0 %v1632, 3
        %v3368 = vpop.permute.xlu0 %3367
        %3369 = vrot.lane.b32.xlu0 %v1633, 3
        %v3370 = vpop.permute.xlu0 %3369
        %3371 = vrot.lane.b32.xlu0 %v1634, 3
        %v3372 = vpop.permute.xlu0 %3371
        %3373 = vrot.lane.b32.xlu0 %v1635, 3
        %v3374 = vpop.permute.xlu0 %3373
        %3375 = vrot.lane.b32.xlu0 %v1636, 3
        %v3376 = vpop.permute.xlu0 %3375
        %3377 = vrot.lane.b32.xlu0 %v1637, 3
        %v3378 = vpop.permute.xlu0 %3377
        %3379 = vrot.lane.b32.xlu0 %v1638, 3
        %v3380 = vpop.permute.xlu0 %3379
        %3381 = vrot.lane.b32.xlu0 %v1639, 3
        %v3382 = vpop.permute.xlu0 %3381
        %3383 = vrot.lane.b32.xlu0 %v1640, 3
        %v3384 = vpop.permute.xlu0 %3383
        %3385 = vrot.lane.b32.xlu0 %v1641, 3
        %v3386 = vpop.permute.xlu0 %3385
        %3387 = vrot.lane.b32.xlu0 %v1642, 3
        %v3388 = vpop.permute.xlu0 %3387
        %3389 = vrot.lane.b32.xlu0 %v1643, 3
        %v3390 = vpop.permute.xlu0 %3389
        %3391 = vrot.lane.b32.xlu0 %v1644, 3
        %v3392 = vpop.permute.xlu0 %3391
        %3393 = vrot.lane.b32.xlu0 %v1645, 3
        %v3394 = vpop.permute.xlu0 %3393
        %3395 = vrot.lane.b32.xlu0 %v1646, 3
        %v3396 = vpop.permute.xlu0 %3395
        %3397 = vrot.lane.b32.xlu0 %v1647, 3
        %v3398 = vpop.permute.xlu0 %3397
        %3399 = vrot.lane.b32.xlu0 %v1648, 3
        %v3400 = vpop.permute.xlu0 %3399
        %3401 = vrot.lane.b32.xlu0 %v1649, 3
        %v3402 = vpop.permute.xlu0 %3401
        %3403 = vrot.lane.b32.xlu0 %v1650, 3
        %v3404 = vpop.permute.xlu0 %3403
        %3405 = vrot.lane.b32.xlu0 %v1651, 3
        %v3406 = vpop.permute.xlu0 %3405
        %3407 = vrot.lane.b32.xlu0 %v1652, 3
        %v3408 = vpop.permute.xlu0 %3407
        %3409 = vrot.lane.b32.xlu0 %v1653, 3
        %v3410 = vpop.permute.xlu0 %3409
        %3411 = vrot.lane.b32.xlu0 %v1654, 3
        %v3412 = vpop.permute.xlu0 %3411
        %3413 = vrot.lane.b32.xlu0 %v1655, 3
        %v3414 = vpop.permute.xlu0 %3413
        %v3415 = vmul.f32 %v992, %v3288
        %v3416 = vmul.f32 %v993, %v3290
        %v3417 = vmul.f32 %v994, %v3292
        %v3418 = vmul.f32 %v995, %v3294
        %v3419 = vmul.f32 %v996, %v3296
        %v3420 = vmul.f32 %v997, %v3298
        %v3421 = vmul.f32 %v998, %v3300
        %v3422 = vmul.f32 %v999, %v3302
        %v3423 = vmul.f32 %v1000, %v3304
        %v3424 = vmul.f32 %v1001, %v3306
        %v3425 = vmul.f32 %v1002, %v3308
        %v3426 = vmul.f32 %v1003, %v3310
        %v3427 = vmul.f32 %v1004, %v3312
        %v3428 = vmul.f32 %v1005, %v3314
        %v3429 = vmul.f32 %v1006, %v3316
        %v3430 = vmul.f32 %v1007, %v3318
        %v3431 = vmul.f32 %v1008, %v3320
        %v3432 = vmul.f32 %v1009, %v3322
        %v3433 = vmul.f32 %v1010, %v3324
        %v3434 = vmul.f32 %v1011, %v3326
        %v3435 = vmul.f32 %v1012, %v3328
        %v3436 = vmul.f32 %v1013, %v3330
        %v3437 = vmul.f32 %v1014, %v3332
        %v3438 = vmul.f32 %v1015, %v3334
        %v3439 = vmul.f32 %v1016, %v3336
        %v3440 = vmul.f32 %v1017, %v3338
        %v3441 = vmul.f32 %v1018, %v3340
        %v3442 = vmul.f32 %v1019, %v3342
        %v3443 = vmul.f32 %v1020, %v3344
        %v3444 = vmul.f32 %v1021, %v3346
        %v3445 = vmul.f32 %v1022, %v3348
        %v3446 = vmul.f32 %v1023, %v3350
        %v3447 = vmul.f32 %v1024, %v3352
        %v3448 = vmul.f32 %v1025, %v3354
        %v3449 = vmul.f32 %v1026, %v3356
        %v3450 = vmul.f32 %v1027, %v3358
        %v3451 = vmul.f32 %v1028, %v3360
        %v3452 = vmul.f32 %v1029, %v3362
        %v3453 = vmul.f32 %v1030, %v3364
        %v3454 = vmul.f32 %v1031, %v3366
        %v3455 = vmul.f32 %v1032, %v3368
        %v3456 = vmul.f32 %v1033, %v3370
        %v3457 = vmul.f32 %v1034, %v3372
        %v3458 = vmul.f32 %v1035, %v3374
        %v3459 = vmul.f32 %v1036, %v3376
        %v3460 = vmul.f32 %v1037, %v3378
        %v3461 = vmul.f32 %v1038, %v3380
        %v3462 = vmul.f32 %v1039, %v3382
        %v3463 = vmul.f32 %v1040, %v3384
        %v3464 = vmul.f32 %v1041, %v3386
        %v3465 = vmul.f32 %v1042, %v3388
        %v3466 = vmul.f32 %v1043, %v3390
        %v3467 = vmul.f32 %v1044, %v3392
        %v3468 = vmul.f32 %v1045, %v3394
        %v3469 = vmul.f32 %v1046, %v3396
        %v3470 = vmul.f32 %v1047, %v3398
        %v3471 = vmul.f32 %v1048, %v3400
        %v3472 = vmul.f32 %v1049, %v3402
        %v3473 = vmul.f32 %v1050, %v3404
        %v3474 = vmul.f32 %v1051, %v3406
        %v3475 = vmul.f32 %v1052, %v3408
        %v3476 = vmul.f32 %v1053, %v3410
        %v3477 = vmul.f32 %v1054, %v3412
        %v3478 = vmul.f32 %v1055, %v3414
        %v3479 = vadd.f32 %v3415, %v3416
        %v3480 = vadd.f32 %v3479, %v3417
        %v3481 = vadd.f32 %v3480, %v3418
        %v3482 = vrot.slane %v3481, 4
        %v3483 = vadd.f32 %v3481, %v3482
        %v3484 = vrot.slane %v3483, 2
        %v3485 = vadd.f32 %v3483, %v3484
        %v3486 = vrot.slane %v3485, 1
        %v3487 = vadd.f32 %v3485, %v3486
        %v3488 = vadd.f32 %v3419, %v3420
        %v3489 = vadd.f32 %v3488, %v3421
        %v3490 = vadd.f32 %v3489, %v3422
        %v3491 = vrot.slane %v3490, 4
        %v3492 = vadd.f32 %v3490, %v3491
        %v3493 = vrot.slane %v3492, 2
        %v3494 = vadd.f32 %v3492, %v3493
        %v3495 = vrot.slane %v3494, 1
        %v3496 = vadd.f32 %v3494, %v3495
        %v3497 = vadd.f32 %v3423, %v3424
        %v3498 = vadd.f32 %v3497, %v3425
        %v3499 = vadd.f32 %v3498, %v3426
        %v3500 = vrot.slane %v3499, 4
        %v3501 = vadd.f32 %v3499, %v3500
        %v3502 = vrot.slane %v3501, 2
        %v3503 = vadd.f32 %v3501, %v3502
        %v3504 = vrot.slane %v3503, 1
        %v3505 = vadd.f32 %v3503, %v3504
        %v3506 = vadd.f32 %v3427, %v3428
        %v3507 = vadd.f32 %v3506, %v3429
        %v3508 = vadd.f32 %v3507, %v3430
        %v3509 = vrot.slane %v3508, 4
        %v3510 = vadd.f32 %v3508, %v3509
        %v3511 = vrot.slane %v3510, 2
        %v3512 = vadd.f32 %v3510, %v3511
        %v3513 = vrot.slane %v3512, 1
        %v3514 = vadd.f32 %v3512, %v3513
        %v3515 = vadd.f32 %v3431, %v3432
        %v3516 = vadd.f32 %v3515, %v3433
        %v3517 = vadd.f32 %v3516, %v3434
        %v3518 = vrot.slane %v3517, 4
        %v3519 = vadd.f32 %v3517, %v3518
        %v3520 = vrot.slane %v3519, 2
        %v3521 = vadd.f32 %v3519, %v3520
        %v3522 = vrot.slane %v3521, 1
        %v3523 = vadd.f32 %v3521, %v3522
        %v3524 = vadd.f32 %v3435, %v3436
        %v3525 = vadd.f32 %v3524, %v3437
        %v3526 = vadd.f32 %v3525, %v3438
        %v3527 = vrot.slane %v3526, 4
        %v3528 = vadd.f32 %v3526, %v3527
        %v3529 = vrot.slane %v3528, 2
        %v3530 = vadd.f32 %v3528, %v3529
        %v3531 = vrot.slane %v3530, 1
        %v3532 = vadd.f32 %v3530, %v3531
        %v3533 = vadd.f32 %v3439, %v3440
        %v3534 = vadd.f32 %v3533, %v3441
        %v3535 = vadd.f32 %v3534, %v3442
        %v3536 = vrot.slane %v3535, 4
        %v3537 = vadd.f32 %v3535, %v3536
        %v3538 = vrot.slane %v3537, 2
        %v3539 = vadd.f32 %v3537, %v3538
        %v3540 = vrot.slane %v3539, 1
        %v3541 = vadd.f32 %v3539, %v3540
        %v3542 = vadd.f32 %v3443, %v3444
        %v3543 = vadd.f32 %v3542, %v3445
        %v3544 = vadd.f32 %v3543, %v3446
        %v3545 = vrot.slane %v3544, 4
        %v3546 = vadd.f32 %v3544, %v3545
        %v3547 = vrot.slane %v3546, 2
        %v3548 = vadd.f32 %v3546, %v3547
        %v3549 = vrot.slane %v3548, 1
        %v3550 = vadd.f32 %v3548, %v3549
        %v3551 = vadd.f32 %v3447, %v3448
        %v3552 = vadd.f32 %v3551, %v3449
        %v3553 = vadd.f32 %v3552, %v3450
        %v3554 = vrot.slane %v3553, 4
        %v3555 = vadd.f32 %v3553, %v3554
        %v3556 = vrot.slane %v3555, 2
        %v3557 = vadd.f32 %v3555, %v3556
        %v3558 = vrot.slane %v3557, 1
        %v3559 = vadd.f32 %v3557, %v3558
        %v3560 = vadd.f32 %v3451, %v3452
        %v3561 = vadd.f32 %v3560, %v3453
        %v3562 = vadd.f32 %v3561, %v3454
        %v3563 = vrot.slane %v3562, 4
        %v3564 = vadd.f32 %v3562, %v3563
        %v3565 = vrot.slane %v3564, 2
        %v3566 = vadd.f32 %v3564, %v3565
        %v3567 = vrot.slane %v3566, 1
        %v3568 = vadd.f32 %v3566, %v3567
        %v3569 = vadd.f32 %v3455, %v3456
        %v3570 = vadd.f32 %v3569, %v3457
        %v3571 = vadd.f32 %v3570, %v3458
        %v3572 = vrot.slane %v3571, 4
        %v3573 = vadd.f32 %v3571, %v3572
        %v3574 = vrot.slane %v3573, 2
        %v3575 = vadd.f32 %v3573, %v3574
        %v3576 = vrot.slane %v3575, 1
        %v3577 = vadd.f32 %v3575, %v3576
        %v3578 = vadd.f32 %v3459, %v3460
        %v3579 = vadd.f32 %v3578, %v3461
        %v3580 = vadd.f32 %v3579, %v3462
        %v3581 = vrot.slane %v3580, 4
        %v3582 = vadd.f32 %v3580, %v3581
        %v3583 = vrot.slane %v3582, 2
        %v3584 = vadd.f32 %v3582, %v3583
        %v3585 = vrot.slane %v3584, 1
        %v3586 = vadd.f32 %v3584, %v3585
        %v3587 = vadd.f32 %v3463, %v3464
        %v3588 = vadd.f32 %v3587, %v3465
        %v3589 = vadd.f32 %v3588, %v3466
        %v3590 = vrot.slane %v3589, 4
        %v3591 = vadd.f32 %v3589, %v3590
        %v3592 = vrot.slane %v3591, 2
        %v3593 = vadd.f32 %v3591, %v3592
        %v3594 = vrot.slane %v3593, 1
        %v3595 = vadd.f32 %v3593, %v3594
        %v3596 = vadd.f32 %v3467, %v3468
        %v3597 = vadd.f32 %v3596, %v3469
        %v3598 = vadd.f32 %v3597, %v3470
        %v3599 = vrot.slane %v3598, 4
        %v3600 = vadd.f32 %v3598, %v3599
        %v3601 = vrot.slane %v3600, 2
        %v3602 = vadd.f32 %v3600, %v3601
        %v3603 = vrot.slane %v3602, 1
        %v3604 = vadd.f32 %v3602, %v3603
        %v3605 = vadd.f32 %v3471, %v3472
        %v3606 = vadd.f32 %v3605, %v3473
        %v3607 = vadd.f32 %v3606, %v3474
        %v3608 = vrot.slane %v3607, 4
        %v3609 = vadd.f32 %v3607, %v3608
        %v3610 = vrot.slane %v3609, 2
        %v3611 = vadd.f32 %v3609, %v3610
        %v3612 = vrot.slane %v3611, 1
        %v3613 = vadd.f32 %v3611, %v3612
        %v3614 = vadd.f32 %v3475, %v3476
        %v3615 = vadd.f32 %v3614, %v3477
        %v3616 = vadd.f32 %v3615, %v3478
        %v3617 = vrot.slane %v3616, 4
        %v3618 = vadd.f32 %v3616, %v3617
        %v3619 = vrot.slane %v3618, 2
        %v3620 = vadd.f32 %v3618, %v3619
        %v3621 = vrot.slane %v3620, 1
        %v3622 = vadd.f32 %v3620, %v3621
        %vm3623 = vcmp.ge.s32.totalorder %v1657, 3
        %v3640 = vsel %vm2379, %v3496, %v3487
        %v3641 = vsel %vm2381, %v3505, %v3640
        %v3642 = vsel %vm2383, %v3514, %v3641
        %v3643 = vsel %vm2385, %v3523, %v3642
        %v3644 = vsel %vm2387, %v3532, %v3643
        %v3645 = vsel %vm2389, %v3541, %v3644
        %v3646 = vsel %vm2391, %v3550, %v3645
        %v3647 = vsel %vm2379, %v3568, %v3559
        %v3648 = vsel %vm2381, %v3577, %v3647
        %v3649 = vsel %vm2383, %v3586, %v3648
        %v3650 = vsel %vm2385, %v3595, %v3649
        %v3651 = vsel %vm2387, %v3604, %v3650
        %v3652 = vsel %vm2389, %v3613, %v3651
        %v3653 = vsel %vm2391, %v3622, %v3652
        %v3656 = vsel %vm3623, %v3646, 0.0
        %v3657 = vsel %vm3623, %v3653, 0.0
        %s3658 = sld [smem:[#allocation2 + $0x6]]
        %v3659 = vstv %s3658
        %v3660 = vmul.f32 %v3656, %v3659
        %v3661 = vmul.f32 %v3657, %v3659
        %v3664 = vrot.slane %v3660, 1
        %v3665 = vrot.slane %v3660, 2
        %v3666 = vrot.slane %v3660, 3
        %v3667 = vrot.slane %v3660, 4
        %v3668 = vrot.slane %v3660, 5
        %v3669 = vrot.slane %v3660, 6
        %v3670 = vrot.slane %v3660, 7
        %v3671 = vrot.slane %v3661, 1
        %v3672 = vrot.slane %v3661, 2
        %v3673 = vrot.slane %v3661, 3
        %v3674 = vrot.slane %v3661, 4
        %v3675 = vrot.slane %v3661, 5
        %v3676 = vrot.slane %v3661, 6
        %v3677 = vrot.slane %v3661, 7
        %v3694 = vadd.f32 %v3067, %v3660
        %v3695 = vadd.f32 %v3068, %v3664
        %v3696 = vadd.f32 %v3069, %v3665
        %v3697 = vadd.f32 %v3070, %v3666
        %v3698 = vadd.f32 %v3071, %v3667
        %v3699 = vadd.f32 %v3072, %v3668
        %v3700 = vadd.f32 %v3073, %v3669
        %v3701 = vadd.f32 %v3074, %v3670
        %v3702 = vadd.f32 %v3075, %v3661
        %v3703 = vadd.f32 %v3076, %v3671
        %v3704 = vadd.f32 %v3077, %v3672
        %v3705 = vadd.f32 %v3078, %v3673
        %v3706 = vadd.f32 %v3079, %v3674
        %v3707 = vadd.f32 %v3080, %v3675
        %v3708 = vadd.f32 %v3081, %v3676
        %v3709 = vadd.f32 %v3082, %v3677
        %s3710 = sld [smem:[#allocation2 + $0x7]]
        %v3711 = vstv %s3710
        %v3712 = vmul.f32 %v3656, %v3711
        %v3713 = vmul.f32 %v3657, %v3711
        %v3716 = vrot.slane %v3712, 1
        %v3717 = vrot.slane %v3712, 2
        %v3718 = vrot.slane %v3712, 3
        %v3719 = vrot.slane %v3712, 4
        %v3720 = vrot.slane %v3712, 5
        %v3721 = vrot.slane %v3712, 6
        %v3722 = vrot.slane %v3712, 7
        %v3723 = vrot.slane %v3713, 1
        %v3724 = vrot.slane %v3713, 2
        %v3725 = vrot.slane %v3713, 3
        %v3726 = vrot.slane %v3713, 4
        %v3727 = vrot.slane %v3713, 5
        %v3728 = vrot.slane %v3713, 6
        %v3729 = vrot.slane %v3713, 7
        %v3746 = vadd.f32 %v3119, %v3712
        %v3747 = vadd.f32 %v3120, %v3716
        %v3748 = vadd.f32 %v3121, %v3717
        %v3749 = vadd.f32 %v3122, %v3718
        %v3750 = vadd.f32 %v3123, %v3719
        %v3751 = vadd.f32 %v3124, %v3720
        %v3752 = vadd.f32 %v3125, %v3721
        %v3753 = vadd.f32 %v3126, %v3722
        %v3754 = vadd.f32 %v3127, %v3713
        %v3755 = vadd.f32 %v3128, %v3723
        %v3756 = vadd.f32 %v3129, %v3724
        %v3757 = vadd.f32 %v3130, %v3725
        %v3758 = vadd.f32 %v3131, %v3726
        %v3759 = vadd.f32 %v3132, %v3727
        %v3760 = vadd.f32 %v3133, %v3728
        %v3761 = vadd.f32 %v3134, %v3729
        %s3762 = sld [smem:[#allocation2 + $0x18]]
        %v3763 = vstv %s3762
        %v3764 = vmul.f32 %v3656, %v3763
        %v3765 = vmul.f32 %v3657, %v3763
        %v3768 = vrot.slane %v3764, 1
        %v3769 = vrot.slane %v3764, 2
        %v3770 = vrot.slane %v3764, 3
        %v3771 = vrot.slane %v3764, 4
        %v3772 = vrot.slane %v3764, 5
        %v3773 = vrot.slane %v3764, 6
        %v3774 = vrot.slane %v3764, 7
        %v3775 = vrot.slane %v3765, 1
        %v3776 = vrot.slane %v3765, 2
        %v3777 = vrot.slane %v3765, 3
        %v3778 = vrot.slane %v3765, 4
        %v3779 = vrot.slane %v3765, 5
        %v3780 = vrot.slane %v3765, 6
        %v3781 = vrot.slane %v3765, 7
        %v3798 = vadd.f32 %v3171, %v3764
        %v3799 = vadd.f32 %v3172, %v3768
        %v3800 = vadd.f32 %v3173, %v3769
        %v3801 = vadd.f32 %v3174, %v3770
        %v3802 = vadd.f32 %v3175, %v3771
        %v3803 = vadd.f32 %v3176, %v3772
        %v3804 = vadd.f32 %v3177, %v3773
        %v3805 = vadd.f32 %v3178, %v3774
        %v3806 = vadd.f32 %v3179, %v3765
        %v3807 = vadd.f32 %v3180, %v3775
        %v3808 = vadd.f32 %v3181, %v3776
        %v3809 = vadd.f32 %v3182, %v3777
        %v3810 = vadd.f32 %v3183, %v3778
        %v3811 = vadd.f32 %v3184, %v3779
        %v3812 = vadd.f32 %v3185, %v3780
        %v3813 = vadd.f32 %v3186, %v3781
        %s3814 = sld [smem:[#allocation2 + $0x19]]
        %v3815 = vstv %s3814
        %v3816 = vmul.f32 %v3656, %v3815
        %v3817 = vmul.f32 %v3657, %v3815
        %v3820 = vrot.slane %v3816, 1
        %v3821 = vrot.slane %v3816, 2
        %v3822 = vrot.slane %v3816, 3
        %v3823 = vrot.slane %v3816, 4
        %v3824 = vrot.slane %v3816, 5
        %v3825 = vrot.slane %v3816, 6
        %v3826 = vrot.slane %v3816, 7
        %v3827 = vrot.slane %v3817, 1
        %v3828 = vrot.slane %v3817, 2
        %v3829 = vrot.slane %v3817, 3
        %v3830 = vrot.slane %v3817, 4
        %v3831 = vrot.slane %v3817, 5
        %v3832 = vrot.slane %v3817, 6
        %v3833 = vrot.slane %v3817, 7
        %v3850 = vadd.f32 %v3223, %v3816
        %v3851 = vadd.f32 %v3224, %v3820
        %v3852 = vadd.f32 %v3225, %v3821
        %v3853 = vadd.f32 %v3226, %v3822
        %v3854 = vadd.f32 %v3227, %v3823
        %v3855 = vadd.f32 %v3228, %v3824
        %v3856 = vadd.f32 %v3229, %v3825
        %v3857 = vadd.f32 %v3230, %v3826
        %v3858 = vadd.f32 %v3231, %v3817
        %v3859 = vadd.f32 %v3232, %v3827
        %v3860 = vadd.f32 %v3233, %v3828
        %v3861 = vadd.f32 %v3234, %v3829
        %v3862 = vadd.f32 %v3235, %v3830
        %v3863 = vadd.f32 %v3236, %v3831
        %v3864 = vadd.f32 %v3237, %v3832
        %v3865 = vadd.f32 %v3238, %v3833
        %v3868 = vrot.slane %v3656, 1
        %v3869 = vrot.slane %v3656, 2
        %v3870 = vrot.slane %v3656, 3
        %v3871 = vrot.slane %v3656, 4
        %v3872 = vrot.slane %v3656, 5
        %v3873 = vrot.slane %v3656, 6
        %v3874 = vrot.slane %v3656, 7
        %v3875 = vrot.slane %v3657, 1
        %v3876 = vrot.slane %v3657, 2
        %v3877 = vrot.slane %v3657, 3
        %v3878 = vrot.slane %v3657, 4
        %v3879 = vrot.slane %v3657, 5
        %v3880 = vrot.slane %v3657, 6
        %v3881 = vrot.slane %v3657, 7
        %v3898 = vadd.f32 %v3271, %v3656
        %v3899 = vadd.f32 %v3272, %v3868
        %v3900 = vadd.f32 %v3273, %v3869
        %v3901 = vadd.f32 %v3274, %v3870
        %v3902 = vadd.f32 %v3275, %v3871
        %v3903 = vadd.f32 %v3276, %v3872
        %v3904 = vadd.f32 %v3277, %v3873
        %v3905 = vadd.f32 %v3278, %v3874
        %v3906 = vadd.f32 %v3279, %v3657
        %v3907 = vadd.f32 %v3280, %v3875
        %v3908 = vadd.f32 %v3281, %v3876
        %v3909 = vadd.f32 %v3282, %v3877
        %v3910 = vadd.f32 %v3283, %v3878
        %v3911 = vadd.f32 %v3284, %v3879
        %v3912 = vadd.f32 %v3285, %v3880
        %v3913 = vadd.f32 %v3286, %v3881
        %3914 = vrot.lane.b32.xlu0 %v1592, 4
        %v3915 = vpop.permute.xlu0 %3914
        %3916 = vrot.lane.b32.xlu0 %v1593, 4
        %v3917 = vpop.permute.xlu0 %3916
        %3918 = vrot.lane.b32.xlu0 %v1594, 4
        %v3919 = vpop.permute.xlu0 %3918
        %3920 = vrot.lane.b32.xlu0 %v1595, 4
        %v3921 = vpop.permute.xlu0 %3920
        %3922 = vrot.lane.b32.xlu0 %v1596, 4
        %v3923 = vpop.permute.xlu0 %3922
        %3924 = vrot.lane.b32.xlu0 %v1597, 4
        %v3925 = vpop.permute.xlu0 %3924
        %3926 = vrot.lane.b32.xlu0 %v1598, 4
        %v3927 = vpop.permute.xlu0 %3926
        %3928 = vrot.lane.b32.xlu0 %v1599, 4
        %v3929 = vpop.permute.xlu0 %3928
        %3930 = vrot.lane.b32.xlu0 %v1600, 4
        %v3931 = vpop.permute.xlu0 %3930
        %3932 = vrot.lane.b32.xlu0 %v1601, 4
        %v3933 = vpop.permute.xlu0 %3932
        %3934 = vrot.lane.b32.xlu0 %v1602, 4
        %v3935 = vpop.permute.xlu0 %3934
        %3936 = vrot.lane.b32.xlu0 %v1603, 4
        %v3937 = vpop.permute.xlu0 %3936
        %3938 = vrot.lane.b32.xlu0 %v1604, 4
        %v3939 = vpop.permute.xlu0 %3938
        %3940 = vrot.lane.b32.xlu0 %v1605, 4
        %v3941 = vpop.permute.xlu0 %3940
        %3942 = vrot.lane.b32.xlu0 %v1606, 4
        %v3943 = vpop.permute.xlu0 %3942
        %3944 = vrot.lane.b32.xlu0 %v1607, 4
        %v3945 = vpop.permute.xlu0 %3944
        %3946 = vrot.lane.b32.xlu0 %v1608, 4
        %v3947 = vpop.permute.xlu0 %3946
        %3948 = vrot.lane.b32.xlu0 %v1609, 4
        %v3949 = vpop.permute.xlu0 %3948
        %3950 = vrot.lane.b32.xlu0 %v1610, 4
        %v3951 = vpop.permute.xlu0 %3950
        %3952 = vrot.lane.b32.xlu0 %v1611, 4
        %v3953 = vpop.permute.xlu0 %3952
        %3954 = vrot.lane.b32.xlu0 %v1612, 4
        %v3955 = vpop.permute.xlu0 %3954
        %3956 = vrot.lane.b32.xlu0 %v1613, 4
        %v3957 = vpop.permute.xlu0 %3956
        %3958 = vrot.lane.b32.xlu0 %v1614, 4
        %v3959 = vpop.permute.xlu0 %3958
        %3960 = vrot.lane.b32.xlu0 %v1615, 4
        %v3961 = vpop.permute.xlu0 %3960
        %3962 = vrot.lane.b32.xlu0 %v1616, 4
        %v3963 = vpop.permute.xlu0 %3962
        %3964 = vrot.lane.b32.xlu0 %v1617, 4
        %v3965 = vpop.permute.xlu0 %3964
        %3966 = vrot.lane.b32.xlu0 %v1618, 4
        %v3967 = vpop.permute.xlu0 %3966
        %3968 = vrot.lane.b32.xlu0 %v1619, 4
        %v3969 = vpop.permute.xlu0 %3968
        %3970 = vrot.lane.b32.xlu0 %v1620, 4
        %v3971 = vpop.permute.xlu0 %3970
        %3972 = vrot.lane.b32.xlu0 %v1621, 4
        %v3973 = vpop.permute.xlu0 %3972
        %3974 = vrot.lane.b32.xlu0 %v1622, 4
        %v3975 = vpop.permute.xlu0 %3974
        %3976 = vrot.lane.b32.xlu0 %v1623, 4
        %v3977 = vpop.permute.xlu0 %3976
        %3978 = vrot.lane.b32.xlu0 %v1624, 4
        %v3979 = vpop.permute.xlu0 %3978
        %3980 = vrot.lane.b32.xlu0 %v1625, 4
        %v3981 = vpop.permute.xlu0 %3980
        %3982 = vrot.lane.b32.xlu0 %v1626, 4
        %v3983 = vpop.permute.xlu0 %3982
        %3984 = vrot.lane.b32.xlu0 %v1627, 4
        %v3985 = vpop.permute.xlu0 %3984
        %3986 = vrot.lane.b32.xlu0 %v1628, 4
        %v3987 = vpop.permute.xlu0 %3986
        %3988 = vrot.lane.b32.xlu0 %v1629, 4
        %v3989 = vpop.permute.xlu0 %3988
        %3990 = vrot.lane.b32.xlu0 %v1630, 4
        %v3991 = vpop.permute.xlu0 %3990
        %3992 = vrot.lane.b32.xlu0 %v1631, 4
        %v3993 = vpop.permute.xlu0 %3992
        %3994 = vrot.lane.b32.xlu0 %v1632, 4
        %v3995 = vpop.permute.xlu0 %3994
        %3996 = vrot.lane.b32.xlu0 %v1633, 4
        %v3997 = vpop.permute.xlu0 %3996
        %3998 = vrot.lane.b32.xlu0 %v1634, 4
        %v3999 = vpop.permute.xlu0 %3998
        %4000 = vrot.lane.b32.xlu0 %v1635, 4
        %v4001 = vpop.permute.xlu0 %4000
        %4002 = vrot.lane.b32.xlu0 %v1636, 4
        %v4003 = vpop.permute.xlu0 %4002
        %4004 = vrot.lane.b32.xlu0 %v1637, 4
        %v4005 = vpop.permute.xlu0 %4004
        %4006 = vrot.lane.b32.xlu0 %v1638, 4
        %v4007 = vpop.permute.xlu0 %4006
        %4008 = vrot.lane.b32.xlu0 %v1639, 4
        %v4009 = vpop.permute.xlu0 %4008
        %4010 = vrot.lane.b32.xlu0 %v1640, 4
        %v4011 = vpop.permute.xlu0 %4010
        %4012 = vrot.lane.b32.xlu0 %v1641, 4
        %v4013 = vpop.permute.xlu0 %4012
        %4014 = vrot.lane.b32.xlu0 %v1642, 4
        %v4015 = vpop.permute.xlu0 %4014
        %4016 = vrot.lane.b32.xlu0 %v1643, 4
        %v4017 = vpop.permute.xlu0 %4016
        %4018 = vrot.lane.b32.xlu0 %v1644, 4
        %v4019 = vpop.permute.xlu0 %4018
        %4020 = vrot.lane.b32.xlu0 %v1645, 4
        %v4021 = vpop.permute.xlu0 %4020
        %4022 = vrot.lane.b32.xlu0 %v1646, 4
        %v4023 = vpop.permute.xlu0 %4022
        %4024 = vrot.lane.b32.xlu0 %v1647, 4
        %v4025 = vpop.permute.xlu0 %4024
        %4026 = vrot.lane.b32.xlu0 %v1648, 4
        %v4027 = vpop.permute.xlu0 %4026
        %4028 = vrot.lane.b32.xlu0 %v1649, 4
        %v4029 = vpop.permute.xlu0 %4028
        %4030 = vrot.lane.b32.xlu0 %v1650, 4
        %v4031 = vpop.permute.xlu0 %4030
        %4032 = vrot.lane.b32.xlu0 %v1651, 4
        %v4033 = vpop.permute.xlu0 %4032
        %4034 = vrot.lane.b32.xlu0 %v1652, 4
        %v4035 = vpop.permute.xlu0 %4034
        %4036 = vrot.lane.b32.xlu0 %v1653, 4
        %v4037 = vpop.permute.xlu0 %4036
        %4038 = vrot.lane.b32.xlu0 %v1654, 4
        %v4039 = vpop.permute.xlu0 %4038
        %4040 = vrot.lane.b32.xlu0 %v1655, 4
        %v4041 = vpop.permute.xlu0 %4040
        %v4042 = vmul.f32 %v992, %v3915
        %v4043 = vmul.f32 %v993, %v3917
        %v4044 = vmul.f32 %v994, %v3919
        %v4045 = vmul.f32 %v995, %v3921
        %v4046 = vmul.f32 %v996, %v3923
        %v4047 = vmul.f32 %v997, %v3925
        %v4048 = vmul.f32 %v998, %v3927
        %v4049 = vmul.f32 %v999, %v3929
        %v4050 = vmul.f32 %v1000, %v3931
        %v4051 = vmul.f32 %v1001, %v3933
        %v4052 = vmul.f32 %v1002, %v3935
        %v4053 = vmul.f32 %v1003, %v3937
        %v4054 = vmul.f32 %v1004, %v3939
        %v4055 = vmul.f32 %v1005, %v3941
        %v4056 = vmul.f32 %v1006, %v3943
        %v4057 = vmul.f32 %v1007, %v3945
        %v4058 = vmul.f32 %v1008, %v3947
        %v4059 = vmul.f32 %v1009, %v3949
        %v4060 = vmul.f32 %v1010, %v3951
        %v4061 = vmul.f32 %v1011, %v3953
        %v4062 = vmul.f32 %v1012, %v3955
        %v4063 = vmul.f32 %v1013, %v3957
        %v4064 = vmul.f32 %v1014, %v3959
        %v4065 = vmul.f32 %v1015, %v3961
        %v4066 = vmul.f32 %v1016, %v3963
        %v4067 = vmul.f32 %v1017, %v3965
        %v4068 = vmul.f32 %v1018, %v3967
        %v4069 = vmul.f32 %v1019, %v3969
        %v4070 = vmul.f32 %v1020, %v3971
        %v4071 = vmul.f32 %v1021, %v3973
        %v4072 = vmul.f32 %v1022, %v3975
        %v4073 = vmul.f32 %v1023, %v3977
        %v4074 = vmul.f32 %v1024, %v3979
        %v4075 = vmul.f32 %v1025, %v3981
        %v4076 = vmul.f32 %v1026, %v3983
        %v4077 = vmul.f32 %v1027, %v3985
        %v4078 = vmul.f32 %v1028, %v3987
        %v4079 = vmul.f32 %v1029, %v3989
        %v4080 = vmul.f32 %v1030, %v3991
        %v4081 = vmul.f32 %v1031, %v3993
        %v4082 = vmul.f32 %v1032, %v3995
        %v4083 = vmul.f32 %v1033, %v3997
        %v4084 = vmul.f32 %v1034, %v3999
        %v4085 = vmul.f32 %v1035, %v4001
        %v4086 = vmul.f32 %v1036, %v4003
        %v4087 = vmul.f32 %v1037, %v4005
        %v4088 = vmul.f32 %v1038, %v4007
        %v4089 = vmul.f32 %v1039, %v4009
        %v4090 = vmul.f32 %v1040, %v4011
        %v4091 = vmul.f32 %v1041, %v4013
        %v4092 = vmul.f32 %v1042, %v4015
        %v4093 = vmul.f32 %v1043, %v4017
        %v4094 = vmul.f32 %v1044, %v4019
        %v4095 = vmul.f32 %v1045, %v4021
        %v4096 = vmul.f32 %v1046, %v4023
        %v4097 = vmul.f32 %v1047, %v4025
        %v4098 = vmul.f32 %v1048, %v4027
        %v4099 = vmul.f32 %v1049, %v4029
        %v4100 = vmul.f32 %v1050, %v4031
        %v4101 = vmul.f32 %v1051, %v4033
        %v4102 = vmul.f32 %v1052, %v4035
        %v4103 = vmul.f32 %v1053, %v4037
        %v4104 = vmul.f32 %v1054, %v4039
        %v4105 = vmul.f32 %v1055, %v4041
        %v4106 = vadd.f32 %v4042, %v4043
        %v4107 = vadd.f32 %v4106, %v4044
        %v4108 = vadd.f32 %v4107, %v4045
        %v4109 = vrot.slane %v4108, 4
        %v4110 = vadd.f32 %v4108, %v4109
        %v4111 = vrot.slane %v4110, 2
        %v4112 = vadd.f32 %v4110, %v4111
        %v4113 = vrot.slane %v4112, 1
        %v4114 = vadd.f32 %v4112, %v4113
        %v4115 = vadd.f32 %v4046, %v4047
        %v4116 = vadd.f32 %v4115, %v4048
        %v4117 = vadd.f32 %v4116, %v4049
        %v4118 = vrot.slane %v4117, 4
        %v4119 = vadd.f32 %v4117, %v4118
        %v4120 = vrot.slane %v4119, 2
        %v4121 = vadd.f32 %v4119, %v4120
        %v4122 = vrot.slane %v4121, 1
        %v4123 = vadd.f32 %v4121, %v4122
        %v4124 = vadd.f32 %v4050, %v4051
        %v4125 = vadd.f32 %v4124, %v4052
        %v4126 = vadd.f32 %v4125, %v4053
        %v4127 = vrot.slane %v4126, 4
        %v4128 = vadd.f32 %v4126, %v4127
        %v4129 = vrot.slane %v4128, 2
        %v4130 = vadd.f32 %v4128, %v4129
        %v4131 = vrot.slane %v4130, 1
        %v4132 = vadd.f32 %v4130, %v4131
        %v4133 = vadd.f32 %v4054, %v4055
        %v4134 = vadd.f32 %v4133, %v4056
        %v4135 = vadd.f32 %v4134, %v4057
        %v4136 = vrot.slane %v4135, 4
        %v4137 = vadd.f32 %v4135, %v4136
        %v4138 = vrot.slane %v4137, 2
        %v4139 = vadd.f32 %v4137, %v4138
        %v4140 = vrot.slane %v4139, 1
        %v4141 = vadd.f32 %v4139, %v4140
        %v4142 = vadd.f32 %v4058, %v4059
        %v4143 = vadd.f32 %v4142, %v4060
        %v4144 = vadd.f32 %v4143, %v4061
        %v4145 = vrot.slane %v4144, 4
        %v4146 = vadd.f32 %v4144, %v4145
        %v4147 = vrot.slane %v4146, 2
        %v4148 = vadd.f32 %v4146, %v4147
        %v4149 = vrot.slane %v4148, 1
        %v4150 = vadd.f32 %v4148, %v4149
        %v4151 = vadd.f32 %v4062, %v4063
        %v4152 = vadd.f32 %v4151, %v4064
        %v4153 = vadd.f32 %v4152, %v4065
        %v4154 = vrot.slane %v4153, 4
        %v4155 = vadd.f32 %v4153, %v4154
        %v4156 = vrot.slane %v4155, 2
        %v4157 = vadd.f32 %v4155, %v4156
        %v4158 = vrot.slane %v4157, 1
        %v4159 = vadd.f32 %v4157, %v4158
        %v4160 = vadd.f32 %v4066, %v4067
        %v4161 = vadd.f32 %v4160, %v4068
        %v4162 = vadd.f32 %v4161, %v4069
        %v4163 = vrot.slane %v4162, 4
        %v4164 = vadd.f32 %v4162, %v4163
        %v4165 = vrot.slane %v4164, 2
        %v4166 = vadd.f32 %v4164, %v4165
        %v4167 = vrot.slane %v4166, 1
        %v4168 = vadd.f32 %v4166, %v4167
        %v4169 = vadd.f32 %v4070, %v4071
        %v4170 = vadd.f32 %v4169, %v4072
        %v4171 = vadd.f32 %v4170, %v4073
        %v4172 = vrot.slane %v4171, 4
        %v4173 = vadd.f32 %v4171, %v4172
        %v4174 = vrot.slane %v4173, 2
        %v4175 = vadd.f32 %v4173, %v4174
        %v4176 = vrot.slane %v4175, 1
        %v4177 = vadd.f32 %v4175, %v4176
        %v4178 = vadd.f32 %v4074, %v4075
        %v4179 = vadd.f32 %v4178, %v4076
        %v4180 = vadd.f32 %v4179, %v4077
        %v4181 = vrot.slane %v4180, 4
        %v4182 = vadd.f32 %v4180, %v4181
        %v4183 = vrot.slane %v4182, 2
        %v4184 = vadd.f32 %v4182, %v4183
        %v4185 = vrot.slane %v4184, 1
        %v4186 = vadd.f32 %v4184, %v4185
        %v4187 = vadd.f32 %v4078, %v4079
        %v4188 = vadd.f32 %v4187, %v4080
        %v4189 = vadd.f32 %v4188, %v4081
        %v4190 = vrot.slane %v4189, 4
        %v4191 = vadd.f32 %v4189, %v4190
        %v4192 = vrot.slane %v4191, 2
        %v4193 = vadd.f32 %v4191, %v4192
        %v4194 = vrot.slane %v4193, 1
        %v4195 = vadd.f32 %v4193, %v4194
        %v4196 = vadd.f32 %v4082, %v4083
        %v4197 = vadd.f32 %v4196, %v4084
        %v4198 = vadd.f32 %v4197, %v4085
        %v4199 = vrot.slane %v4198, 4
        %v4200 = vadd.f32 %v4198, %v4199
        %v4201 = vrot.slane %v4200, 2
        %v4202 = vadd.f32 %v4200, %v4201
        %v4203 = vrot.slane %v4202, 1
        %v4204 = vadd.f32 %v4202, %v4203
        %v4205 = vadd.f32 %v4086, %v4087
        %v4206 = vadd.f32 %v4205, %v4088
        %v4207 = vadd.f32 %v4206, %v4089
        %v4208 = vrot.slane %v4207, 4
        %v4209 = vadd.f32 %v4207, %v4208
        %v4210 = vrot.slane %v4209, 2
        %v4211 = vadd.f32 %v4209, %v4210
        %v4212 = vrot.slane %v4211, 1
        %v4213 = vadd.f32 %v4211, %v4212
        %v4214 = vadd.f32 %v4090, %v4091
        %v4215 = vadd.f32 %v4214, %v4092
        %v4216 = vadd.f32 %v4215, %v4093
        %v4217 = vrot.slane %v4216, 4
        %v4218 = vadd.f32 %v4216, %v4217
        %v4219 = vrot.slane %v4218, 2
        %v4220 = vadd.f32 %v4218, %v4219
        %v4221 = vrot.slane %v4220, 1
        %v4222 = vadd.f32 %v4220, %v4221
        %v4223 = vadd.f32 %v4094, %v4095
        %v4224 = vadd.f32 %v4223, %v4096
        %v4225 = vadd.f32 %v4224, %v4097
        %v4226 = vrot.slane %v4225, 4
        %v4227 = vadd.f32 %v4225, %v4226
        %v4228 = vrot.slane %v4227, 2
        %v4229 = vadd.f32 %v4227, %v4228
        %v4230 = vrot.slane %v4229, 1
        %v4231 = vadd.f32 %v4229, %v4230
        %v4232 = vadd.f32 %v4098, %v4099
        %v4233 = vadd.f32 %v4232, %v4100
        %v4234 = vadd.f32 %v4233, %v4101
        %v4235 = vrot.slane %v4234, 4
        %v4236 = vadd.f32 %v4234, %v4235
        %v4237 = vrot.slane %v4236, 2
        %v4238 = vadd.f32 %v4236, %v4237
        %v4239 = vrot.slane %v4238, 1
        %v4240 = vadd.f32 %v4238, %v4239
        %v4241 = vadd.f32 %v4102, %v4103
        %v4242 = vadd.f32 %v4241, %v4104
        %v4243 = vadd.f32 %v4242, %v4105
        %v4244 = vrot.slane %v4243, 4
        %v4245 = vadd.f32 %v4243, %v4244
        %v4246 = vrot.slane %v4245, 2
        %v4247 = vadd.f32 %v4245, %v4246
        %v4248 = vrot.slane %v4247, 1
        %v4249 = vadd.f32 %v4247, %v4248
        %vm4250 = vcmp.ge.s32.totalorder %v1657, 4
        %v4267 = vsel %vm2379, %v4123, %v4114
        %v4268 = vsel %vm2381, %v4132, %v4267
        %v4269 = vsel %vm2383, %v4141, %v4268
        %v4270 = vsel %vm2385, %v4150, %v4269
        %v4271 = vsel %vm2387, %v4159, %v4270
        %v4272 = vsel %vm2389, %v4168, %v4271
        %v4273 = vsel %vm2391, %v4177, %v4272
        %v4274 = vsel %vm2379, %v4195, %v4186
        %v4275 = vsel %vm2381, %v4204, %v4274
        %v4276 = vsel %vm2383, %v4213, %v4275
        %v4277 = vsel %vm2385, %v4222, %v4276
        %v4278 = vsel %vm2387, %v4231, %v4277
        %v4279 = vsel %vm2389, %v4240, %v4278
        %v4280 = vsel %vm2391, %v4249, %v4279
        %v4283 = vsel %vm4250, %v4273, 0.0
        %v4284 = vsel %vm4250, %v4280, 0.0
        %s4285 = sld [smem:[#allocation2 + $0x8]]
        %v4286 = vstv %s4285
        %v4287 = vmul.f32 %v4283, %v4286
        %v4288 = vmul.f32 %v4284, %v4286
        %v4291 = vrot.slane %v4287, 1
        %v4292 = vrot.slane %v4287, 2
        %v4293 = vrot.slane %v4287, 3
        %v4294 = vrot.slane %v4287, 4
        %v4295 = vrot.slane %v4287, 5
        %v4296 = vrot.slane %v4287, 6
        %v4297 = vrot.slane %v4287, 7
        %v4298 = vrot.slane %v4288, 1
        %v4299 = vrot.slane %v4288, 2
        %v4300 = vrot.slane %v4288, 3
        %v4301 = vrot.slane %v4288, 4
        %v4302 = vrot.slane %v4288, 5
        %v4303 = vrot.slane %v4288, 6
        %v4304 = vrot.slane %v4288, 7
        %v4321 = vadd.f32 %v3694, %v4287
        %v4322 = vadd.f32 %v3695, %v4291
        %v4323 = vadd.f32 %v3696, %v4292
        %v4324 = vadd.f32 %v3697, %v4293
        %v4325 = vadd.f32 %v3698, %v4294
        %v4326 = vadd.f32 %v3699, %v4295
        %v4327 = vadd.f32 %v3700, %v4296
        %v4328 = vadd.f32 %v3701, %v4297
        %v4329 = vadd.f32 %v3702, %v4288
        %v4330 = vadd.f32 %v3703, %v4298
        %v4331 = vadd.f32 %v3704, %v4299
        %v4332 = vadd.f32 %v3705, %v4300
        %v4333 = vadd.f32 %v3706, %v4301
        %v4334 = vadd.f32 %v3707, %v4302
        %v4335 = vadd.f32 %v3708, %v4303
        %v4336 = vadd.f32 %v3709, %v4304
        %s4337 = sld [smem:[#allocation2 + $0x9]]
        %v4338 = vstv %s4337
        %v4339 = vmul.f32 %v4283, %v4338
        %v4340 = vmul.f32 %v4284, %v4338
        %v4343 = vrot.slane %v4339, 1
        %v4344 = vrot.slane %v4339, 2
        %v4345 = vrot.slane %v4339, 3
        %v4346 = vrot.slane %v4339, 4
        %v4347 = vrot.slane %v4339, 5
        %v4348 = vrot.slane %v4339, 6
        %v4349 = vrot.slane %v4339, 7
        %v4350 = vrot.slane %v4340, 1
        %v4351 = vrot.slane %v4340, 2
        %v4352 = vrot.slane %v4340, 3
        %v4353 = vrot.slane %v4340, 4
        %v4354 = vrot.slane %v4340, 5
        %v4355 = vrot.slane %v4340, 6
        %v4356 = vrot.slane %v4340, 7
        %v4373 = vadd.f32 %v3746, %v4339
        %v4374 = vadd.f32 %v3747, %v4343
        %v4375 = vadd.f32 %v3748, %v4344
        %v4376 = vadd.f32 %v3749, %v4345
        %v4377 = vadd.f32 %v3750, %v4346
        %v4378 = vadd.f32 %v3751, %v4347
        %v4379 = vadd.f32 %v3752, %v4348
        %v4380 = vadd.f32 %v3753, %v4349
        %v4381 = vadd.f32 %v3754, %v4340
        %v4382 = vadd.f32 %v3755, %v4350
        %v4383 = vadd.f32 %v3756, %v4351
        %v4384 = vadd.f32 %v3757, %v4352
        %v4385 = vadd.f32 %v3758, %v4353
        %v4386 = vadd.f32 %v3759, %v4354
        %v4387 = vadd.f32 %v3760, %v4355
        %v4388 = vadd.f32 %v3761, %v4356
        %s4389 = sld [smem:[#allocation2 + $0x1a]]
        %v4390 = vstv %s4389
        %v4391 = vmul.f32 %v4283, %v4390
        %v4392 = vmul.f32 %v4284, %v4390
        %v4395 = vrot.slane %v4391, 1
        %v4396 = vrot.slane %v4391, 2
        %v4397 = vrot.slane %v4391, 3
        %v4398 = vrot.slane %v4391, 4
        %v4399 = vrot.slane %v4391, 5
        %v4400 = vrot.slane %v4391, 6
        %v4401 = vrot.slane %v4391, 7
        %v4402 = vrot.slane %v4392, 1
        %v4403 = vrot.slane %v4392, 2
        %v4404 = vrot.slane %v4392, 3
        %v4405 = vrot.slane %v4392, 4
        %v4406 = vrot.slane %v4392, 5
        %v4407 = vrot.slane %v4392, 6
        %v4408 = vrot.slane %v4392, 7
        %v4425 = vadd.f32 %v3798, %v4391
        %v4426 = vadd.f32 %v3799, %v4395
        %v4427 = vadd.f32 %v3800, %v4396
        %v4428 = vadd.f32 %v3801, %v4397
        %v4429 = vadd.f32 %v3802, %v4398
        %v4430 = vadd.f32 %v3803, %v4399
        %v4431 = vadd.f32 %v3804, %v4400
        %v4432 = vadd.f32 %v3805, %v4401
        %v4433 = vadd.f32 %v3806, %v4392
        %v4434 = vadd.f32 %v3807, %v4402
        %v4435 = vadd.f32 %v3808, %v4403
        %v4436 = vadd.f32 %v3809, %v4404
        %v4437 = vadd.f32 %v3810, %v4405
        %v4438 = vadd.f32 %v3811, %v4406
        %v4439 = vadd.f32 %v3812, %v4407
        %v4440 = vadd.f32 %v3813, %v4408
        %s4441 = sld [smem:[#allocation2 + $0x1b]]
        %v4442 = vstv %s4441
        %v4443 = vmul.f32 %v4283, %v4442
        %v4444 = vmul.f32 %v4284, %v4442
        %v4447 = vrot.slane %v4443, 1
        %v4448 = vrot.slane %v4443, 2
        %v4449 = vrot.slane %v4443, 3
        %v4450 = vrot.slane %v4443, 4
        %v4451 = vrot.slane %v4443, 5
        %v4452 = vrot.slane %v4443, 6
        %v4453 = vrot.slane %v4443, 7
        %v4454 = vrot.slane %v4444, 1
        %v4455 = vrot.slane %v4444, 2
        %v4456 = vrot.slane %v4444, 3
        %v4457 = vrot.slane %v4444, 4
        %v4458 = vrot.slane %v4444, 5
        %v4459 = vrot.slane %v4444, 6
        %v4460 = vrot.slane %v4444, 7
        %v4477 = vadd.f32 %v3850, %v4443
        %v4478 = vadd.f32 %v3851, %v4447
        %v4479 = vadd.f32 %v3852, %v4448
        %v4480 = vadd.f32 %v3853, %v4449
        %v4481 = vadd.f32 %v3854, %v4450
        %v4482 = vadd.f32 %v3855, %v4451
        %v4483 = vadd.f32 %v3856, %v4452
        %v4484 = vadd.f32 %v3857, %v4453
        %v4485 = vadd.f32 %v3858, %v4444
        %v4486 = vadd.f32 %v3859, %v4454
        %v4487 = vadd.f32 %v3860, %v4455
        %v4488 = vadd.f32 %v3861, %v4456
        %v4489 = vadd.f32 %v3862, %v4457
        %v4490 = vadd.f32 %v3863, %v4458
        %v4491 = vadd.f32 %v3864, %v4459
        %v4492 = vadd.f32 %v3865, %v4460
        %v4495 = vrot.slane %v4283, 1
        %v4496 = vrot.slane %v4283, 2
        %v4497 = vrot.slane %v4283, 3
        %v4498 = vrot.slane %v4283, 4
        %v4499 = vrot.slane %v4283, 5
        %v4500 = vrot.slane %v4283, 6
        %v4501 = vrot.slane %v4283, 7
        %v4502 = vrot.slane %v4284, 1
        %v4503 = vrot.slane %v4284, 2
        %v4504 = vrot.slane %v4284, 3
        %v4505 = vrot.slane %v4284, 4
        %v4506 = vrot.slane %v4284, 5
        %v4507 = vrot.slane %v4284, 6
        %v4508 = vrot.slane %v4284, 7
        %v4525 = vadd.f32 %v3898, %v4283
        %v4526 = vadd.f32 %v3899, %v4495
        %v4527 = vadd.f32 %v3900, %v4496
        %v4528 = vadd.f32 %v3901, %v4497
        %v4529 = vadd.f32 %v3902, %v4498
        %v4530 = vadd.f32 %v3903, %v4499
        %v4531 = vadd.f32 %v3904, %v4500
        %v4532 = vadd.f32 %v3905, %v4501
        %v4533 = vadd.f32 %v3906, %v4284
        %v4534 = vadd.f32 %v3907, %v4502
        %v4535 = vadd.f32 %v3908, %v4503
        %v4536 = vadd.f32 %v3909, %v4504
        %v4537 = vadd.f32 %v3910, %v4505
        %v4538 = vadd.f32 %v3911, %v4506
        %v4539 = vadd.f32 %v3912, %v4507
        %v4540 = vadd.f32 %v3913, %v4508
        %4541 = vrot.lane.b32.xlu0 %v1592, 5
        %v4542 = vpop.permute.xlu0 %4541
        %4543 = vrot.lane.b32.xlu0 %v1593, 5
        %v4544 = vpop.permute.xlu0 %4543
        %4545 = vrot.lane.b32.xlu0 %v1594, 5
        %v4546 = vpop.permute.xlu0 %4545
        %4547 = vrot.lane.b32.xlu0 %v1595, 5
        %v4548 = vpop.permute.xlu0 %4547
        %4549 = vrot.lane.b32.xlu0 %v1596, 5
        %v4550 = vpop.permute.xlu0 %4549
        %4551 = vrot.lane.b32.xlu0 %v1597, 5
        %v4552 = vpop.permute.xlu0 %4551
        %4553 = vrot.lane.b32.xlu0 %v1598, 5
        %v4554 = vpop.permute.xlu0 %4553
        %4555 = vrot.lane.b32.xlu0 %v1599, 5
        %v4556 = vpop.permute.xlu0 %4555
        %4557 = vrot.lane.b32.xlu0 %v1600, 5
        %v4558 = vpop.permute.xlu0 %4557
        %4559 = vrot.lane.b32.xlu0 %v1601, 5
        %v4560 = vpop.permute.xlu0 %4559
        %4561 = vrot.lane.b32.xlu0 %v1602, 5
        %v4562 = vpop.permute.xlu0 %4561
        %4563 = vrot.lane.b32.xlu0 %v1603, 5
        %v4564 = vpop.permute.xlu0 %4563
        %4565 = vrot.lane.b32.xlu0 %v1604, 5
        %v4566 = vpop.permute.xlu0 %4565
        %4567 = vrot.lane.b32.xlu0 %v1605, 5
        %v4568 = vpop.permute.xlu0 %4567
        %4569 = vrot.lane.b32.xlu0 %v1606, 5
        %v4570 = vpop.permute.xlu0 %4569
        %4571 = vrot.lane.b32.xlu0 %v1607, 5
        %v4572 = vpop.permute.xlu0 %4571
        %4573 = vrot.lane.b32.xlu0 %v1608, 5
        %v4574 = vpop.permute.xlu0 %4573
        %4575 = vrot.lane.b32.xlu0 %v1609, 5
        %v4576 = vpop.permute.xlu0 %4575
        %4577 = vrot.lane.b32.xlu0 %v1610, 5
        %v4578 = vpop.permute.xlu0 %4577
        %4579 = vrot.lane.b32.xlu0 %v1611, 5
        %v4580 = vpop.permute.xlu0 %4579
        %4581 = vrot.lane.b32.xlu0 %v1612, 5
        %v4582 = vpop.permute.xlu0 %4581
        %4583 = vrot.lane.b32.xlu0 %v1613, 5
        %v4584 = vpop.permute.xlu0 %4583
        %4585 = vrot.lane.b32.xlu0 %v1614, 5
        %v4586 = vpop.permute.xlu0 %4585
        %4587 = vrot.lane.b32.xlu0 %v1615, 5
        %v4588 = vpop.permute.xlu0 %4587
        %4589 = vrot.lane.b32.xlu0 %v1616, 5
        %v4590 = vpop.permute.xlu0 %4589
        %4591 = vrot.lane.b32.xlu0 %v1617, 5
        %v4592 = vpop.permute.xlu0 %4591
        %4593 = vrot.lane.b32.xlu0 %v1618, 5
        %v4594 = vpop.permute.xlu0 %4593
        %4595 = vrot.lane.b32.xlu0 %v1619, 5
        %v4596 = vpop.permute.xlu0 %4595
        %4597 = vrot.lane.b32.xlu0 %v1620, 5
        %v4598 = vpop.permute.xlu0 %4597
        %4599 = vrot.lane.b32.xlu0 %v1621, 5
        %v4600 = vpop.permute.xlu0 %4599
        %4601 = vrot.lane.b32.xlu0 %v1622, 5
        %v4602 = vpop.permute.xlu0 %4601
        %4603 = vrot.lane.b32.xlu0 %v1623, 5
        %v4604 = vpop.permute.xlu0 %4603
        %4605 = vrot.lane.b32.xlu0 %v1624, 5
        %v4606 = vpop.permute.xlu0 %4605
        %4607 = vrot.lane.b32.xlu0 %v1625, 5
        %v4608 = vpop.permute.xlu0 %4607
        %4609 = vrot.lane.b32.xlu0 %v1626, 5
        %v4610 = vpop.permute.xlu0 %4609
        %4611 = vrot.lane.b32.xlu0 %v1627, 5
        %v4612 = vpop.permute.xlu0 %4611
        %4613 = vrot.lane.b32.xlu0 %v1628, 5
        %v4614 = vpop.permute.xlu0 %4613
        %4615 = vrot.lane.b32.xlu0 %v1629, 5
        %v4616 = vpop.permute.xlu0 %4615
        %4617 = vrot.lane.b32.xlu0 %v1630, 5
        %v4618 = vpop.permute.xlu0 %4617
        %4619 = vrot.lane.b32.xlu0 %v1631, 5
        %v4620 = vpop.permute.xlu0 %4619
        %4621 = vrot.lane.b32.xlu0 %v1632, 5
        %v4622 = vpop.permute.xlu0 %4621
        %4623 = vrot.lane.b32.xlu0 %v1633, 5
        %v4624 = vpop.permute.xlu0 %4623
        %4625 = vrot.lane.b32.xlu0 %v1634, 5
        %v4626 = vpop.permute.xlu0 %4625
        %4627 = vrot.lane.b32.xlu0 %v1635, 5
        %v4628 = vpop.permute.xlu0 %4627
        %4629 = vrot.lane.b32.xlu0 %v1636, 5
        %v4630 = vpop.permute.xlu0 %4629
        %4631 = vrot.lane.b32.xlu0 %v1637, 5
        %v4632 = vpop.permute.xlu0 %4631
        %4633 = vrot.lane.b32.xlu0 %v1638, 5
        %v4634 = vpop.permute.xlu0 %4633
        %4635 = vrot.lane.b32.xlu0 %v1639, 5
        %v4636 = vpop.permute.xlu0 %4635
        %4637 = vrot.lane.b32.xlu0 %v1640, 5
        %v4638 = vpop.permute.xlu0 %4637
        %4639 = vrot.lane.b32.xlu0 %v1641, 5
        %v4640 = vpop.permute.xlu0 %4639
        %4641 = vrot.lane.b32.xlu0 %v1642, 5
        %v4642 = vpop.permute.xlu0 %4641
        %4643 = vrot.lane.b32.xlu0 %v1643, 5
        %v4644 = vpop.permute.xlu0 %4643
        %4645 = vrot.lane.b32.xlu0 %v1644, 5
        %v4646 = vpop.permute.xlu0 %4645
        %4647 = vrot.lane.b32.xlu0 %v1645, 5
        %v4648 = vpop.permute.xlu0 %4647
        %4649 = vrot.lane.b32.xlu0 %v1646, 5
        %v4650 = vpop.permute.xlu0 %4649
        %4651 = vrot.lane.b32.xlu0 %v1647, 5
        %v4652 = vpop.permute.xlu0 %4651
        %4653 = vrot.lane.b32.xlu0 %v1648, 5
        %v4654 = vpop.permute.xlu0 %4653
        %4655 = vrot.lane.b32.xlu0 %v1649, 5
        %v4656 = vpop.permute.xlu0 %4655
        %4657 = vrot.lane.b32.xlu0 %v1650, 5
        %v4658 = vpop.permute.xlu0 %4657
        %4659 = vrot.lane.b32.xlu0 %v1651, 5
        %v4660 = vpop.permute.xlu0 %4659
        %4661 = vrot.lane.b32.xlu0 %v1652, 5
        %v4662 = vpop.permute.xlu0 %4661
        %4663 = vrot.lane.b32.xlu0 %v1653, 5
        %v4664 = vpop.permute.xlu0 %4663
        %4665 = vrot.lane.b32.xlu0 %v1654, 5
        %v4666 = vpop.permute.xlu0 %4665
        %4667 = vrot.lane.b32.xlu0 %v1655, 5
        %v4668 = vpop.permute.xlu0 %4667
        %v4669 = vmul.f32 %v992, %v4542
        %v4670 = vmul.f32 %v993, %v4544
        %v4671 = vmul.f32 %v994, %v4546
        %v4672 = vmul.f32 %v995, %v4548
        %v4673 = vmul.f32 %v996, %v4550
        %v4674 = vmul.f32 %v997, %v4552
        %v4675 = vmul.f32 %v998, %v4554
        %v4676 = vmul.f32 %v999, %v4556
        %v4677 = vmul.f32 %v1000, %v4558
        %v4678 = vmul.f32 %v1001, %v4560
        %v4679 = vmul.f32 %v1002, %v4562
        %v4680 = vmul.f32 %v1003, %v4564
        %v4681 = vmul.f32 %v1004, %v4566
        %v4682 = vmul.f32 %v1005, %v4568
        %v4683 = vmul.f32 %v1006, %v4570
        %v4684 = vmul.f32 %v1007, %v4572
        %v4685 = vmul.f32 %v1008, %v4574
        %v4686 = vmul.f32 %v1009, %v4576
        %v4687 = vmul.f32 %v1010, %v4578
        %v4688 = vmul.f32 %v1011, %v4580
        %v4689 = vmul.f32 %v1012, %v4582
        %v4690 = vmul.f32 %v1013, %v4584
        %v4691 = vmul.f32 %v1014, %v4586
        %v4692 = vmul.f32 %v1015, %v4588
        %v4693 = vmul.f32 %v1016, %v4590
        %v4694 = vmul.f32 %v1017, %v4592
        %v4695 = vmul.f32 %v1018, %v4594
        %v4696 = vmul.f32 %v1019, %v4596
        %v4697 = vmul.f32 %v1020, %v4598
        %v4698 = vmul.f32 %v1021, %v4600
        %v4699 = vmul.f32 %v1022, %v4602
        %v4700 = vmul.f32 %v1023, %v4604
        %v4701 = vmul.f32 %v1024, %v4606
        %v4702 = vmul.f32 %v1025, %v4608
        %v4703 = vmul.f32 %v1026, %v4610
        %v4704 = vmul.f32 %v1027, %v4612
        %v4705 = vmul.f32 %v1028, %v4614
        %v4706 = vmul.f32 %v1029, %v4616
        %v4707 = vmul.f32 %v1030, %v4618
        %v4708 = vmul.f32 %v1031, %v4620
        %v4709 = vmul.f32 %v1032, %v4622
        %v4710 = vmul.f32 %v1033, %v4624
        %v4711 = vmul.f32 %v1034, %v4626
        %v4712 = vmul.f32 %v1035, %v4628
        %v4713 = vmul.f32 %v1036, %v4630
        %v4714 = vmul.f32 %v1037, %v4632
        %v4715 = vmul.f32 %v1038, %v4634
        %v4716 = vmul.f32 %v1039, %v4636
        %v4717 = vmul.f32 %v1040, %v4638
        %v4718 = vmul.f32 %v1041, %v4640
        %v4719 = vmul.f32 %v1042, %v4642
        %v4720 = vmul.f32 %v1043, %v4644
        %v4721 = vmul.f32 %v1044, %v4646
        %v4722 = vmul.f32 %v1045, %v4648
        %v4723 = vmul.f32 %v1046, %v4650
        %v4724 = vmul.f32 %v1047, %v4652
        %v4725 = vmul.f32 %v1048, %v4654
        %v4726 = vmul.f32 %v1049, %v4656
        %v4727 = vmul.f32 %v1050, %v4658
        %v4728 = vmul.f32 %v1051, %v4660
        %v4729 = vmul.f32 %v1052, %v4662
        %v4730 = vmul.f32 %v1053, %v4664
        %v4731 = vmul.f32 %v1054, %v4666
        %v4732 = vmul.f32 %v1055, %v4668
        %v4733 = vadd.f32 %v4669, %v4670
        %v4734 = vadd.f32 %v4733, %v4671
        %v4735 = vadd.f32 %v4734, %v4672
        %v4736 = vrot.slane %v4735, 4
        %v4737 = vadd.f32 %v4735, %v4736
        %v4738 = vrot.slane %v4737, 2
        %v4739 = vadd.f32 %v4737, %v4738
        %v4740 = vrot.slane %v4739, 1
        %v4741 = vadd.f32 %v4739, %v4740
        %v4742 = vadd.f32 %v4673, %v4674
        %v4743 = vadd.f32 %v4742, %v4675
        %v4744 = vadd.f32 %v4743, %v4676
        %v4745 = vrot.slane %v4744, 4
        %v4746 = vadd.f32 %v4744, %v4745
        %v4747 = vrot.slane %v4746, 2
        %v4748 = vadd.f32 %v4746, %v4747
        %v4749 = vrot.slane %v4748, 1
        %v4750 = vadd.f32 %v4748, %v4749
        %v4751 = vadd.f32 %v4677, %v4678
        %v4752 = vadd.f32 %v4751, %v4679
        %v4753 = vadd.f32 %v4752, %v4680
        %v4754 = vrot.slane %v4753, 4
        %v4755 = vadd.f32 %v4753, %v4754
        %v4756 = vrot.slane %v4755, 2
        %v4757 = vadd.f32 %v4755, %v4756
        %v4758 = vrot.slane %v4757, 1
        %v4759 = vadd.f32 %v4757, %v4758
        %v4760 = vadd.f32 %v4681, %v4682
        %v4761 = vadd.f32 %v4760, %v4683
        %v4762 = vadd.f32 %v4761, %v4684
        %v4763 = vrot.slane %v4762, 4
        %v4764 = vadd.f32 %v4762, %v4763
        %v4765 = vrot.slane %v4764, 2
        %v4766 = vadd.f32 %v4764, %v4765
        %v4767 = vrot.slane %v4766, 1
        %v4768 = vadd.f32 %v4766, %v4767
        %v4769 = vadd.f32 %v4685, %v4686
        %v4770 = vadd.f32 %v4769, %v4687
        %v4771 = vadd.f32 %v4770, %v4688
        %v4772 = vrot.slane %v4771, 4
        %v4773 = vadd.f32 %v4771, %v4772
        %v4774 = vrot.slane %v4773, 2
        %v4775 = vadd.f32 %v4773, %v4774
        %v4776 = vrot.slane %v4775, 1
        %v4777 = vadd.f32 %v4775, %v4776
        %v4778 = vadd.f32 %v4689, %v4690
        %v4779 = vadd.f32 %v4778, %v4691
        %v4780 = vadd.f32 %v4779, %v4692
        %v4781 = vrot.slane %v4780, 4
        %v4782 = vadd.f32 %v4780, %v4781
        %v4783 = vrot.slane %v4782, 2
        %v4784 = vadd.f32 %v4782, %v4783
        %v4785 = vrot.slane %v4784, 1
        %v4786 = vadd.f32 %v4784, %v4785
        %v4787 = vadd.f32 %v4693, %v4694
        %v4788 = vadd.f32 %v4787, %v4695
        %v4789 = vadd.f32 %v4788, %v4696
        %v4790 = vrot.slane %v4789, 4
        %v4791 = vadd.f32 %v4789, %v4790
        %v4792 = vrot.slane %v4791, 2
        %v4793 = vadd.f32 %v4791, %v4792
        %v4794 = vrot.slane %v4793, 1
        %v4795 = vadd.f32 %v4793, %v4794
        %v4796 = vadd.f32 %v4697, %v4698
        %v4797 = vadd.f32 %v4796, %v4699
        %v4798 = vadd.f32 %v4797, %v4700
        %v4799 = vrot.slane %v4798, 4
        %v4800 = vadd.f32 %v4798, %v4799
        %v4801 = vrot.slane %v4800, 2
        %v4802 = vadd.f32 %v4800, %v4801
        %v4803 = vrot.slane %v4802, 1
        %v4804 = vadd.f32 %v4802, %v4803
        %v4805 = vadd.f32 %v4701, %v4702
        %v4806 = vadd.f32 %v4805, %v4703
        %v4807 = vadd.f32 %v4806, %v4704
        %v4808 = vrot.slane %v4807, 4
        %v4809 = vadd.f32 %v4807, %v4808
        %v4810 = vrot.slane %v4809, 2
        %v4811 = vadd.f32 %v4809, %v4810
        %v4812 = vrot.slane %v4811, 1
        %v4813 = vadd.f32 %v4811, %v4812
        %v4814 = vadd.f32 %v4705, %v4706
        %v4815 = vadd.f32 %v4814, %v4707
        %v4816 = vadd.f32 %v4815, %v4708
        %v4817 = vrot.slane %v4816, 4
        %v4818 = vadd.f32 %v4816, %v4817
        %v4819 = vrot.slane %v4818, 2
        %v4820 = vadd.f32 %v4818, %v4819
        %v4821 = vrot.slane %v4820, 1
        %v4822 = vadd.f32 %v4820, %v4821
        %v4823 = vadd.f32 %v4709, %v4710
        %v4824 = vadd.f32 %v4823, %v4711
        %v4825 = vadd.f32 %v4824, %v4712
        %v4826 = vrot.slane %v4825, 4
        %v4827 = vadd.f32 %v4825, %v4826
        %v4828 = vrot.slane %v4827, 2
        %v4829 = vadd.f32 %v4827, %v4828
        %v4830 = vrot.slane %v4829, 1
        %v4831 = vadd.f32 %v4829, %v4830
        %v4832 = vadd.f32 %v4713, %v4714
        %v4833 = vadd.f32 %v4832, %v4715
        %v4834 = vadd.f32 %v4833, %v4716
        %v4835 = vrot.slane %v4834, 4
        %v4836 = vadd.f32 %v4834, %v4835
        %v4837 = vrot.slane %v4836, 2
        %v4838 = vadd.f32 %v4836, %v4837
        %v4839 = vrot.slane %v4838, 1
        %v4840 = vadd.f32 %v4838, %v4839
        %v4841 = vadd.f32 %v4717, %v4718
        %v4842 = vadd.f32 %v4841, %v4719
        %v4843 = vadd.f32 %v4842, %v4720
        %v4844 = vrot.slane %v4843, 4
        %v4845 = vadd.f32 %v4843, %v4844
        %v4846 = vrot.slane %v4845, 2
        %v4847 = vadd.f32 %v4845, %v4846
        %v4848 = vrot.slane %v4847, 1
        %v4849 = vadd.f32 %v4847, %v4848
        %v4850 = vadd.f32 %v4721, %v4722
        %v4851 = vadd.f32 %v4850, %v4723
        %v4852 = vadd.f32 %v4851, %v4724
        %v4853 = vrot.slane %v4852, 4
        %v4854 = vadd.f32 %v4852, %v4853
        %v4855 = vrot.slane %v4854, 2
        %v4856 = vadd.f32 %v4854, %v4855
        %v4857 = vrot.slane %v4856, 1
        %v4858 = vadd.f32 %v4856, %v4857
        %v4859 = vadd.f32 %v4725, %v4726
        %v4860 = vadd.f32 %v4859, %v4727
        %v4861 = vadd.f32 %v4860, %v4728
        %v4862 = vrot.slane %v4861, 4
        %v4863 = vadd.f32 %v4861, %v4862
        %v4864 = vrot.slane %v4863, 2
        %v4865 = vadd.f32 %v4863, %v4864
        %v4866 = vrot.slane %v4865, 1
        %v4867 = vadd.f32 %v4865, %v4866
        %v4868 = vadd.f32 %v4729, %v4730
        %v4869 = vadd.f32 %v4868, %v4731
        %v4870 = vadd.f32 %v4869, %v4732
        %v4871 = vrot.slane %v4870, 4
        %v4872 = vadd.f32 %v4870, %v4871
        %v4873 = vrot.slane %v4872, 2
        %v4874 = vadd.f32 %v4872, %v4873
        %v4875 = vrot.slane %v4874, 1
        %v4876 = vadd.f32 %v4874, %v4875
        %vm4877 = vcmp.ge.s32.totalorder %v1657, 5
        %v4894 = vsel %vm2379, %v4750, %v4741
        %v4895 = vsel %vm2381, %v4759, %v4894
        %v4896 = vsel %vm2383, %v4768, %v4895
        %v4897 = vsel %vm2385, %v4777, %v4896
        %v4898 = vsel %vm2387, %v4786, %v4897
        %v4899 = vsel %vm2389, %v4795, %v4898
        %v4900 = vsel %vm2391, %v4804, %v4899
        %v4901 = vsel %vm2379, %v4822, %v4813
        %v4902 = vsel %vm2381, %v4831, %v4901
        %v4903 = vsel %vm2383, %v4840, %v4902
        %v4904 = vsel %vm2385, %v4849, %v4903
        %v4905 = vsel %vm2387, %v4858, %v4904
        %v4906 = vsel %vm2389, %v4867, %v4905
        %v4907 = vsel %vm2391, %v4876, %v4906
        %v4910 = vsel %vm4877, %v4900, 0.0
        %v4911 = vsel %vm4877, %v4907, 0.0
        %s4912 = sld [smem:[#allocation2 + $0xa]]
        %v4913 = vstv %s4912
        %v4914 = vmul.f32 %v4910, %v4913
        %v4915 = vmul.f32 %v4911, %v4913
        %v4918 = vrot.slane %v4914, 1
        %v4919 = vrot.slane %v4914, 2
        %v4920 = vrot.slane %v4914, 3
        %v4921 = vrot.slane %v4914, 4
        %v4922 = vrot.slane %v4914, 5
        %v4923 = vrot.slane %v4914, 6
        %v4924 = vrot.slane %v4914, 7
        %v4925 = vrot.slane %v4915, 1
        %v4926 = vrot.slane %v4915, 2
        %v4927 = vrot.slane %v4915, 3
        %v4928 = vrot.slane %v4915, 4
        %v4929 = vrot.slane %v4915, 5
        %v4930 = vrot.slane %v4915, 6
        %v4931 = vrot.slane %v4915, 7
        %v4948 = vadd.f32 %v4321, %v4914
        %v4949 = vadd.f32 %v4322, %v4918
        %v4950 = vadd.f32 %v4323, %v4919
        %v4951 = vadd.f32 %v4324, %v4920
        %v4952 = vadd.f32 %v4325, %v4921
        %v4953 = vadd.f32 %v4326, %v4922
        %v4954 = vadd.f32 %v4327, %v4923
        %v4955 = vadd.f32 %v4328, %v4924
        %v4956 = vadd.f32 %v4329, %v4915
        %v4957 = vadd.f32 %v4330, %v4925
        %v4958 = vadd.f32 %v4331, %v4926
        %v4959 = vadd.f32 %v4332, %v4927
        %v4960 = vadd.f32 %v4333, %v4928
        %v4961 = vadd.f32 %v4334, %v4929
        %v4962 = vadd.f32 %v4335, %v4930
        %v4963 = vadd.f32 %v4336, %v4931
        %s4964 = sld [smem:[#allocation2 + $0xb]]
        %v4965 = vstv %s4964
        %v4966 = vmul.f32 %v4910, %v4965
        %v4967 = vmul.f32 %v4911, %v4965
        %v4970 = vrot.slane %v4966, 1
        %v4971 = vrot.slane %v4966, 2
        %v4972 = vrot.slane %v4966, 3
        %v4973 = vrot.slane %v4966, 4
        %v4974 = vrot.slane %v4966, 5
        %v4975 = vrot.slane %v4966, 6
        %v4976 = vrot.slane %v4966, 7
        %v4977 = vrot.slane %v4967, 1
        %v4978 = vrot.slane %v4967, 2
        %v4979 = vrot.slane %v4967, 3
        %v4980 = vrot.slane %v4967, 4
        %v4981 = vrot.slane %v4967, 5
        %v4982 = vrot.slane %v4967, 6
        %v4983 = vrot.slane %v4967, 7
        %v5000 = vadd.f32 %v4373, %v4966
        %v5001 = vadd.f32 %v4374, %v4970
        %v5002 = vadd.f32 %v4375, %v4971
        %v5003 = vadd.f32 %v4376, %v4972
        %v5004 = vadd.f32 %v4377, %v4973
        %v5005 = vadd.f32 %v4378, %v4974
        %v5006 = vadd.f32 %v4379, %v4975
        %v5007 = vadd.f32 %v4380, %v4976
        %v5008 = vadd.f32 %v4381, %v4967
        %v5009 = vadd.f32 %v4382, %v4977
        %v5010 = vadd.f32 %v4383, %v4978
        %v5011 = vadd.f32 %v4384, %v4979
        %v5012 = vadd.f32 %v4385, %v4980
        %v5013 = vadd.f32 %v4386, %v4981
        %v5014 = vadd.f32 %v4387, %v4982
        %v5015 = vadd.f32 %v4388, %v4983
        %s5016 = sld [smem:[#allocation2 + $0x1c]]
        %v5017 = vstv %s5016
        %v5018 = vmul.f32 %v4910, %v5017
        %v5019 = vmul.f32 %v4911, %v5017
        %v5022 = vrot.slane %v5018, 1
        %v5023 = vrot.slane %v5018, 2
        %v5024 = vrot.slane %v5018, 3
        %v5025 = vrot.slane %v5018, 4
        %v5026 = vrot.slane %v5018, 5
        %v5027 = vrot.slane %v5018, 6
        %v5028 = vrot.slane %v5018, 7
        %v5029 = vrot.slane %v5019, 1
        %v5030 = vrot.slane %v5019, 2
        %v5031 = vrot.slane %v5019, 3
        %v5032 = vrot.slane %v5019, 4
        %v5033 = vrot.slane %v5019, 5
        %v5034 = vrot.slane %v5019, 6
        %v5035 = vrot.slane %v5019, 7
        %v5052 = vadd.f32 %v4425, %v5018
        %v5053 = vadd.f32 %v4426, %v5022
        %v5054 = vadd.f32 %v4427, %v5023
        %v5055 = vadd.f32 %v4428, %v5024
        %v5056 = vadd.f32 %v4429, %v5025
        %v5057 = vadd.f32 %v4430, %v5026
        %v5058 = vadd.f32 %v4431, %v5027
        %v5059 = vadd.f32 %v4432, %v5028
        %v5060 = vadd.f32 %v4433, %v5019
        %v5061 = vadd.f32 %v4434, %v5029
        %v5062 = vadd.f32 %v4435, %v5030
        %v5063 = vadd.f32 %v4436, %v5031
        %v5064 = vadd.f32 %v4437, %v5032
        %v5065 = vadd.f32 %v4438, %v5033
        %v5066 = vadd.f32 %v4439, %v5034
        %v5067 = vadd.f32 %v4440, %v5035
        %s5068 = sld [smem:[#allocation2 + $0x1d]]
        %v5069 = vstv %s5068
        %v5070 = vmul.f32 %v4910, %v5069
        %v5071 = vmul.f32 %v4911, %v5069
        %v5074 = vrot.slane %v5070, 1
        %v5075 = vrot.slane %v5070, 2
        %v5076 = vrot.slane %v5070, 3
        %v5077 = vrot.slane %v5070, 4
        %v5078 = vrot.slane %v5070, 5
        %v5079 = vrot.slane %v5070, 6
        %v5080 = vrot.slane %v5070, 7
        %v5081 = vrot.slane %v5071, 1
        %v5082 = vrot.slane %v5071, 2
        %v5083 = vrot.slane %v5071, 3
        %v5084 = vrot.slane %v5071, 4
        %v5085 = vrot.slane %v5071, 5
        %v5086 = vrot.slane %v5071, 6
        %v5087 = vrot.slane %v5071, 7
        %v5104 = vadd.f32 %v4477, %v5070
        %v5105 = vadd.f32 %v4478, %v5074
        %v5106 = vadd.f32 %v4479, %v5075
        %v5107 = vadd.f32 %v4480, %v5076
        %v5108 = vadd.f32 %v4481, %v5077
        %v5109 = vadd.f32 %v4482, %v5078
        %v5110 = vadd.f32 %v4483, %v5079
        %v5111 = vadd.f32 %v4484, %v5080
        %v5112 = vadd.f32 %v4485, %v5071
        %v5113 = vadd.f32 %v4486, %v5081
        %v5114 = vadd.f32 %v4487, %v5082
        %v5115 = vadd.f32 %v4488, %v5083
        %v5116 = vadd.f32 %v4489, %v5084
        %v5117 = vadd.f32 %v4490, %v5085
        %v5118 = vadd.f32 %v4491, %v5086
        %v5119 = vadd.f32 %v4492, %v5087
        %v5122 = vrot.slane %v4910, 1
        %v5123 = vrot.slane %v4910, 2
        %v5124 = vrot.slane %v4910, 3
        %v5125 = vrot.slane %v4910, 4
        %v5126 = vrot.slane %v4910, 5
        %v5127 = vrot.slane %v4910, 6
        %v5128 = vrot.slane %v4910, 7
        %v5129 = vrot.slane %v4911, 1
        %v5130 = vrot.slane %v4911, 2
        %v5131 = vrot.slane %v4911, 3
        %v5132 = vrot.slane %v4911, 4
        %v5133 = vrot.slane %v4911, 5
        %v5134 = vrot.slane %v4911, 6
        %v5135 = vrot.slane %v4911, 7
        %v5152 = vadd.f32 %v4525, %v4910
        %v5153 = vadd.f32 %v4526, %v5122
        %v5154 = vadd.f32 %v4527, %v5123
        %v5155 = vadd.f32 %v4528, %v5124
        %v5156 = vadd.f32 %v4529, %v5125
        %v5157 = vadd.f32 %v4530, %v5126
        %v5158 = vadd.f32 %v4531, %v5127
        %v5159 = vadd.f32 %v4532, %v5128
        %v5160 = vadd.f32 %v4533, %v4911
        %v5161 = vadd.f32 %v4534, %v5129
        %v5162 = vadd.f32 %v4535, %v5130
        %v5163 = vadd.f32 %v4536, %v5131
        %v5164 = vadd.f32 %v4537, %v5132
        %v5165 = vadd.f32 %v4538, %v5133
        %v5166 = vadd.f32 %v4539, %v5134
        %v5167 = vadd.f32 %v4540, %v5135
        %5168 = vrot.lane.b32.xlu0 %v1592, 6
        %v5169 = vpop.permute.xlu0 %5168
        %5170 = vrot.lane.b32.xlu0 %v1593, 6
        %v5171 = vpop.permute.xlu0 %5170
        %5172 = vrot.lane.b32.xlu0 %v1594, 6
        %v5173 = vpop.permute.xlu0 %5172
        %5174 = vrot.lane.b32.xlu0 %v1595, 6
        %v5175 = vpop.permute.xlu0 %5174
        %5176 = vrot.lane.b32.xlu0 %v1596, 6
        %v5177 = vpop.permute.xlu0 %5176
        %5178 = vrot.lane.b32.xlu0 %v1597, 6
        %v5179 = vpop.permute.xlu0 %5178
        %5180 = vrot.lane.b32.xlu0 %v1598, 6
        %v5181 = vpop.permute.xlu0 %5180
        %5182 = vrot.lane.b32.xlu0 %v1599, 6
        %v5183 = vpop.permute.xlu0 %5182
        %5184 = vrot.lane.b32.xlu0 %v1600, 6
        %v5185 = vpop.permute.xlu0 %5184
        %5186 = vrot.lane.b32.xlu0 %v1601, 6
        %v5187 = vpop.permute.xlu0 %5186
        %5188 = vrot.lane.b32.xlu0 %v1602, 6
        %v5189 = vpop.permute.xlu0 %5188
        %5190 = vrot.lane.b32.xlu0 %v1603, 6
        %v5191 = vpop.permute.xlu0 %5190
        %5192 = vrot.lane.b32.xlu0 %v1604, 6
        %v5193 = vpop.permute.xlu0 %5192
        %5194 = vrot.lane.b32.xlu0 %v1605, 6
        %v5195 = vpop.permute.xlu0 %5194
        %5196 = vrot.lane.b32.xlu0 %v1606, 6
        %v5197 = vpop.permute.xlu0 %5196
        %5198 = vrot.lane.b32.xlu0 %v1607, 6
        %v5199 = vpop.permute.xlu0 %5198
        %5200 = vrot.lane.b32.xlu0 %v1608, 6
        %v5201 = vpop.permute.xlu0 %5200
        %5202 = vrot.lane.b32.xlu0 %v1609, 6
        %v5203 = vpop.permute.xlu0 %5202
        %5204 = vrot.lane.b32.xlu0 %v1610, 6
        %v5205 = vpop.permute.xlu0 %5204
        %5206 = vrot.lane.b32.xlu0 %v1611, 6
        %v5207 = vpop.permute.xlu0 %5206
        %5208 = vrot.lane.b32.xlu0 %v1612, 6
        %v5209 = vpop.permute.xlu0 %5208
        %5210 = vrot.lane.b32.xlu0 %v1613, 6
        %v5211 = vpop.permute.xlu0 %5210
        %5212 = vrot.lane.b32.xlu0 %v1614, 6
        %v5213 = vpop.permute.xlu0 %5212
        %5214 = vrot.lane.b32.xlu0 %v1615, 6
        %v5215 = vpop.permute.xlu0 %5214
        %5216 = vrot.lane.b32.xlu0 %v1616, 6
        %v5217 = vpop.permute.xlu0 %5216
        %5218 = vrot.lane.b32.xlu0 %v1617, 6
        %v5219 = vpop.permute.xlu0 %5218
        %5220 = vrot.lane.b32.xlu0 %v1618, 6
        %v5221 = vpop.permute.xlu0 %5220
        %5222 = vrot.lane.b32.xlu0 %v1619, 6
        %v5223 = vpop.permute.xlu0 %5222
        %5224 = vrot.lane.b32.xlu0 %v1620, 6
        %v5225 = vpop.permute.xlu0 %5224
        %5226 = vrot.lane.b32.xlu0 %v1621, 6
        %v5227 = vpop.permute.xlu0 %5226
        %5228 = vrot.lane.b32.xlu0 %v1622, 6
        %v5229 = vpop.permute.xlu0 %5228
        %5230 = vrot.lane.b32.xlu0 %v1623, 6
        %v5231 = vpop.permute.xlu0 %5230
        %5232 = vrot.lane.b32.xlu0 %v1624, 6
        %v5233 = vpop.permute.xlu0 %5232
        %5234 = vrot.lane.b32.xlu0 %v1625, 6
        %v5235 = vpop.permute.xlu0 %5234
        %5236 = vrot.lane.b32.xlu0 %v1626, 6
        %v5237 = vpop.permute.xlu0 %5236
        %5238 = vrot.lane.b32.xlu0 %v1627, 6
        %v5239 = vpop.permute.xlu0 %5238
        %5240 = vrot.lane.b32.xlu0 %v1628, 6
        %v5241 = vpop.permute.xlu0 %5240
        %5242 = vrot.lane.b32.xlu0 %v1629, 6
        %v5243 = vpop.permute.xlu0 %5242
        %5244 = vrot.lane.b32.xlu0 %v1630, 6
        %v5245 = vpop.permute.xlu0 %5244
        %5246 = vrot.lane.b32.xlu0 %v1631, 6
        %v5247 = vpop.permute.xlu0 %5246
        %5248 = vrot.lane.b32.xlu0 %v1632, 6
        %v5249 = vpop.permute.xlu0 %5248
        %5250 = vrot.lane.b32.xlu0 %v1633, 6
        %v5251 = vpop.permute.xlu0 %5250
        %5252 = vrot.lane.b32.xlu0 %v1634, 6
        %v5253 = vpop.permute.xlu0 %5252
        %5254 = vrot.lane.b32.xlu0 %v1635, 6
        %v5255 = vpop.permute.xlu0 %5254
        %5256 = vrot.lane.b32.xlu0 %v1636, 6
        %v5257 = vpop.permute.xlu0 %5256
        %5258 = vrot.lane.b32.xlu0 %v1637, 6
        %v5259 = vpop.permute.xlu0 %5258
        %5260 = vrot.lane.b32.xlu0 %v1638, 6
        %v5261 = vpop.permute.xlu0 %5260
        %5262 = vrot.lane.b32.xlu0 %v1639, 6
        %v5263 = vpop.permute.xlu0 %5262
        %5264 = vrot.lane.b32.xlu0 %v1640, 6
        %v5265 = vpop.permute.xlu0 %5264
        %5266 = vrot.lane.b32.xlu0 %v1641, 6
        %v5267 = vpop.permute.xlu0 %5266
        %5268 = vrot.lane.b32.xlu0 %v1642, 6
        %v5269 = vpop.permute.xlu0 %5268
        %5270 = vrot.lane.b32.xlu0 %v1643, 6
        %v5271 = vpop.permute.xlu0 %5270
        %5272 = vrot.lane.b32.xlu0 %v1644, 6
        %v5273 = vpop.permute.xlu0 %5272
        %5274 = vrot.lane.b32.xlu0 %v1645, 6
        %v5275 = vpop.permute.xlu0 %5274
        %5276 = vrot.lane.b32.xlu0 %v1646, 6
        %v5277 = vpop.permute.xlu0 %5276
        %5278 = vrot.lane.b32.xlu0 %v1647, 6
        %v5279 = vpop.permute.xlu0 %5278
        %5280 = vrot.lane.b32.xlu0 %v1648, 6
        %v5281 = vpop.permute.xlu0 %5280
        %5282 = vrot.lane.b32.xlu0 %v1649, 6
        %v5283 = vpop.permute.xlu0 %5282
        %5284 = vrot.lane.b32.xlu0 %v1650, 6
        %v5285 = vpop.permute.xlu0 %5284
        %5286 = vrot.lane.b32.xlu0 %v1651, 6
        %v5287 = vpop.permute.xlu0 %5286
        %5288 = vrot.lane.b32.xlu0 %v1652, 6
        %v5289 = vpop.permute.xlu0 %5288
        %5290 = vrot.lane.b32.xlu0 %v1653, 6
        %v5291 = vpop.permute.xlu0 %5290
        %5292 = vrot.lane.b32.xlu0 %v1654, 6
        %v5293 = vpop.permute.xlu0 %5292
        %5294 = vrot.lane.b32.xlu0 %v1655, 6
        %v5295 = vpop.permute.xlu0 %5294
        %v5296 = vmul.f32 %v992, %v5169
        %v5297 = vmul.f32 %v993, %v5171
        %v5298 = vmul.f32 %v994, %v5173
        %v5299 = vmul.f32 %v995, %v5175
        %v5300 = vmul.f32 %v996, %v5177
        %v5301 = vmul.f32 %v997, %v5179
        %v5302 = vmul.f32 %v998, %v5181
        %v5303 = vmul.f32 %v999, %v5183
        %v5304 = vmul.f32 %v1000, %v5185
        %v5305 = vmul.f32 %v1001, %v5187
        %v5306 = vmul.f32 %v1002, %v5189
        %v5307 = vmul.f32 %v1003, %v5191
        %v5308 = vmul.f32 %v1004, %v5193
        %v5309 = vmul.f32 %v1005, %v5195
        %v5310 = vmul.f32 %v1006, %v5197
        %v5311 = vmul.f32 %v1007, %v5199
        %v5312 = vmul.f32 %v1008, %v5201
        %v5313 = vmul.f32 %v1009, %v5203
        %v5314 = vmul.f32 %v1010, %v5205
        %v5315 = vmul.f32 %v1011, %v5207
        %v5316 = vmul.f32 %v1012, %v5209
        %v5317 = vmul.f32 %v1013, %v5211
        %v5318 = vmul.f32 %v1014, %v5213
        %v5319 = vmul.f32 %v1015, %v5215
        %v5320 = vmul.f32 %v1016, %v5217
        %v5321 = vmul.f32 %v1017, %v5219
        %v5322 = vmul.f32 %v1018, %v5221
        %v5323 = vmul.f32 %v1019, %v5223
        %v5324 = vmul.f32 %v1020, %v5225
        %v5325 = vmul.f32 %v1021, %v5227
        %v5326 = vmul.f32 %v1022, %v5229
        %v5327 = vmul.f32 %v1023, %v5231
        %v5328 = vmul.f32 %v1024, %v5233
        %v5329 = vmul.f32 %v1025, %v5235
        %v5330 = vmul.f32 %v1026, %v5237
        %v5331 = vmul.f32 %v1027, %v5239
        %v5332 = vmul.f32 %v1028, %v5241
        %v5333 = vmul.f32 %v1029, %v5243
        %v5334 = vmul.f32 %v1030, %v5245
        %v5335 = vmul.f32 %v1031, %v5247
        %v5336 = vmul.f32 %v1032, %v5249
        %v5337 = vmul.f32 %v1033, %v5251
        %v5338 = vmul.f32 %v1034, %v5253
        %v5339 = vmul.f32 %v1035, %v5255
        %v5340 = vmul.f32 %v1036, %v5257
        %v5341 = vmul.f32 %v1037, %v5259
        %v5342 = vmul.f32 %v1038, %v5261
        %v5343 = vmul.f32 %v1039, %v5263
        %v5344 = vmul.f32 %v1040, %v5265
        %v5345 = vmul.f32 %v1041, %v5267
        %v5346 = vmul.f32 %v1042, %v5269
        %v5347 = vmul.f32 %v1043, %v5271
        %v5348 = vmul.f32 %v1044, %v5273
        %v5349 = vmul.f32 %v1045, %v5275
        %v5350 = vmul.f32 %v1046, %v5277
        %v5351 = vmul.f32 %v1047, %v5279
        %v5352 = vmul.f32 %v1048, %v5281
        %v5353 = vmul.f32 %v1049, %v5283
        %v5354 = vmul.f32 %v1050, %v5285
        %v5355 = vmul.f32 %v1051, %v5287
        %v5356 = vmul.f32 %v1052, %v5289
        %v5357 = vmul.f32 %v1053, %v5291
        %v5358 = vmul.f32 %v1054, %v5293
        %v5359 = vmul.f32 %v1055, %v5295
        %v5360 = vadd.f32 %v5296, %v5297
        %v5361 = vadd.f32 %v5360, %v5298
        %v5362 = vadd.f32 %v5361, %v5299
        %v5363 = vrot.slane %v5362, 4
        %v5364 = vadd.f32 %v5362, %v5363
        %v5365 = vrot.slane %v5364, 2
        %v5366 = vadd.f32 %v5364, %v5365
        %v5367 = vrot.slane %v5366, 1
        %v5368 = vadd.f32 %v5366, %v5367
        %v5369 = vadd.f32 %v5300, %v5301
        %v5370 = vadd.f32 %v5369, %v5302
        %v5371 = vadd.f32 %v5370, %v5303
        %v5372 = vrot.slane %v5371, 4
        %v5373 = vadd.f32 %v5371, %v5372
        %v5374 = vrot.slane %v5373, 2
        %v5375 = vadd.f32 %v5373, %v5374
        %v5376 = vrot.slane %v5375, 1
        %v5377 = vadd.f32 %v5375, %v5376
        %v5378 = vadd.f32 %v5304, %v5305
        %v5379 = vadd.f32 %v5378, %v5306
        %v5380 = vadd.f32 %v5379, %v5307
        %v5381 = vrot.slane %v5380, 4
        %v5382 = vadd.f32 %v5380, %v5381
        %v5383 = vrot.slane %v5382, 2
        %v5384 = vadd.f32 %v5382, %v5383
        %v5385 = vrot.slane %v5384, 1
        %v5386 = vadd.f32 %v5384, %v5385
        %v5387 = vadd.f32 %v5308, %v5309
        %v5388 = vadd.f32 %v5387, %v5310
        %v5389 = vadd.f32 %v5388, %v5311
        %v5390 = vrot.slane %v5389, 4
        %v5391 = vadd.f32 %v5389, %v5390
        %v5392 = vrot.slane %v5391, 2
        %v5393 = vadd.f32 %v5391, %v5392
        %v5394 = vrot.slane %v5393, 1
        %v5395 = vadd.f32 %v5393, %v5394
        %v5396 = vadd.f32 %v5312, %v5313
        %v5397 = vadd.f32 %v5396, %v5314
        %v5398 = vadd.f32 %v5397, %v5315
        %v5399 = vrot.slane %v5398, 4
        %v5400 = vadd.f32 %v5398, %v5399
        %v5401 = vrot.slane %v5400, 2
        %v5402 = vadd.f32 %v5400, %v5401
        %v5403 = vrot.slane %v5402, 1
        %v5404 = vadd.f32 %v5402, %v5403
        %v5405 = vadd.f32 %v5316, %v5317
        %v5406 = vadd.f32 %v5405, %v5318
        %v5407 = vadd.f32 %v5406, %v5319
        %v5408 = vrot.slane %v5407, 4
        %v5409 = vadd.f32 %v5407, %v5408
        %v5410 = vrot.slane %v5409, 2
        %v5411 = vadd.f32 %v5409, %v5410
        %v5412 = vrot.slane %v5411, 1
        %v5413 = vadd.f32 %v5411, %v5412
        %v5414 = vadd.f32 %v5320, %v5321
        %v5415 = vadd.f32 %v5414, %v5322
        %v5416 = vadd.f32 %v5415, %v5323
        %v5417 = vrot.slane %v5416, 4
        %v5418 = vadd.f32 %v5416, %v5417
        %v5419 = vrot.slane %v5418, 2
        %v5420 = vadd.f32 %v5418, %v5419
        %v5421 = vrot.slane %v5420, 1
        %v5422 = vadd.f32 %v5420, %v5421
        %v5423 = vadd.f32 %v5324, %v5325
        %v5424 = vadd.f32 %v5423, %v5326
        %v5425 = vadd.f32 %v5424, %v5327
        %v5426 = vrot.slane %v5425, 4
        %v5427 = vadd.f32 %v5425, %v5426
        %v5428 = vrot.slane %v5427, 2
        %v5429 = vadd.f32 %v5427, %v5428
        %v5430 = vrot.slane %v5429, 1
        %v5431 = vadd.f32 %v5429, %v5430
        %v5432 = vadd.f32 %v5328, %v5329
        %v5433 = vadd.f32 %v5432, %v5330
        %v5434 = vadd.f32 %v5433, %v5331
        %v5435 = vrot.slane %v5434, 4
        %v5436 = vadd.f32 %v5434, %v5435
        %v5437 = vrot.slane %v5436, 2
        %v5438 = vadd.f32 %v5436, %v5437
        %v5439 = vrot.slane %v5438, 1
        %v5440 = vadd.f32 %v5438, %v5439
        %v5441 = vadd.f32 %v5332, %v5333
        %v5442 = vadd.f32 %v5441, %v5334
        %v5443 = vadd.f32 %v5442, %v5335
        %v5444 = vrot.slane %v5443, 4
        %v5445 = vadd.f32 %v5443, %v5444
        %v5446 = vrot.slane %v5445, 2
        %v5447 = vadd.f32 %v5445, %v5446
        %v5448 = vrot.slane %v5447, 1
        %v5449 = vadd.f32 %v5447, %v5448
        %v5450 = vadd.f32 %v5336, %v5337
        %v5451 = vadd.f32 %v5450, %v5338
        %v5452 = vadd.f32 %v5451, %v5339
        %v5453 = vrot.slane %v5452, 4
        %v5454 = vadd.f32 %v5452, %v5453
        %v5455 = vrot.slane %v5454, 2
        %v5456 = vadd.f32 %v5454, %v5455
        %v5457 = vrot.slane %v5456, 1
        %v5458 = vadd.f32 %v5456, %v5457
        %v5459 = vadd.f32 %v5340, %v5341
        %v5460 = vadd.f32 %v5459, %v5342
        %v5461 = vadd.f32 %v5460, %v5343
        %v5462 = vrot.slane %v5461, 4
        %v5463 = vadd.f32 %v5461, %v5462
        %v5464 = vrot.slane %v5463, 2
        %v5465 = vadd.f32 %v5463, %v5464
        %v5466 = vrot.slane %v5465, 1
        %v5467 = vadd.f32 %v5465, %v5466
        %v5468 = vadd.f32 %v5344, %v5345
        %v5469 = vadd.f32 %v5468, %v5346
        %v5470 = vadd.f32 %v5469, %v5347
        %v5471 = vrot.slane %v5470, 4
        %v5472 = vadd.f32 %v5470, %v5471
        %v5473 = vrot.slane %v5472, 2
        %v5474 = vadd.f32 %v5472, %v5473
        %v5475 = vrot.slane %v5474, 1
        %v5476 = vadd.f32 %v5474, %v5475
        %v5477 = vadd.f32 %v5348, %v5349
        %v5478 = vadd.f32 %v5477, %v5350
        %v5479 = vadd.f32 %v5478, %v5351
        %v5480 = vrot.slane %v5479, 4
        %v5481 = vadd.f32 %v5479, %v5480
        %v5482 = vrot.slane %v5481, 2
        %v5483 = vadd.f32 %v5481, %v5482
        %v5484 = vrot.slane %v5483, 1
        %v5485 = vadd.f32 %v5483, %v5484
        %v5486 = vadd.f32 %v5352, %v5353
        %v5487 = vadd.f32 %v5486, %v5354
        %v5488 = vadd.f32 %v5487, %v5355
        %v5489 = vrot.slane %v5488, 4
        %v5490 = vadd.f32 %v5488, %v5489
        %v5491 = vrot.slane %v5490, 2
        %v5492 = vadd.f32 %v5490, %v5491
        %v5493 = vrot.slane %v5492, 1
        %v5494 = vadd.f32 %v5492, %v5493
        %v5495 = vadd.f32 %v5356, %v5357
        %v5496 = vadd.f32 %v5495, %v5358
        %v5497 = vadd.f32 %v5496, %v5359
        %v5498 = vrot.slane %v5497, 4
        %v5499 = vadd.f32 %v5497, %v5498
        %v5500 = vrot.slane %v5499, 2
        %v5501 = vadd.f32 %v5499, %v5500
        %v5502 = vrot.slane %v5501, 1
        %v5503 = vadd.f32 %v5501, %v5502
        %vm5504 = vcmp.ge.s32.totalorder %v1657, 6
        %v5521 = vsel %vm2379, %v5377, %v5368
        %v5522 = vsel %vm2381, %v5386, %v5521
        %v5523 = vsel %vm2383, %v5395, %v5522
        %v5524 = vsel %vm2385, %v5404, %v5523
        %v5525 = vsel %vm2387, %v5413, %v5524
        %v5526 = vsel %vm2389, %v5422, %v5525
        %v5527 = vsel %vm2391, %v5431, %v5526
        %v5528 = vsel %vm2379, %v5449, %v5440
        %v5529 = vsel %vm2381, %v5458, %v5528
        %v5530 = vsel %vm2383, %v5467, %v5529
        %v5531 = vsel %vm2385, %v5476, %v5530
        %v5532 = vsel %vm2387, %v5485, %v5531
        %v5533 = vsel %vm2389, %v5494, %v5532
        %v5534 = vsel %vm2391, %v5503, %v5533
        %v5537 = vsel %vm5504, %v5527, 0.0
        %v5538 = vsel %vm5504, %v5534, 0.0
        %s5539 = sld [smem:[#allocation2 + $0xc]]
        %v5540 = vstv %s5539
        %v5541 = vmul.f32 %v5537, %v5540
        %v5542 = vmul.f32 %v5538, %v5540
        %v5545 = vrot.slane %v5541, 1
        %v5546 = vrot.slane %v5541, 2
        %v5547 = vrot.slane %v5541, 3
        %v5548 = vrot.slane %v5541, 4
        %v5549 = vrot.slane %v5541, 5
        %v5550 = vrot.slane %v5541, 6
        %v5551 = vrot.slane %v5541, 7
        %v5552 = vrot.slane %v5542, 1
        %v5553 = vrot.slane %v5542, 2
        %v5554 = vrot.slane %v5542, 3
        %v5555 = vrot.slane %v5542, 4
        %v5556 = vrot.slane %v5542, 5
        %v5557 = vrot.slane %v5542, 6
        %v5558 = vrot.slane %v5542, 7
        %v5575 = vadd.f32 %v4948, %v5541
        %v5576 = vadd.f32 %v4949, %v5545
        %v5577 = vadd.f32 %v4950, %v5546
        %v5578 = vadd.f32 %v4951, %v5547
        %v5579 = vadd.f32 %v4952, %v5548
        %v5580 = vadd.f32 %v4953, %v5549
        %v5581 = vadd.f32 %v4954, %v5550
        %v5582 = vadd.f32 %v4955, %v5551
        %v5583 = vadd.f32 %v4956, %v5542
        %v5584 = vadd.f32 %v4957, %v5552
        %v5585 = vadd.f32 %v4958, %v5553
        %v5586 = vadd.f32 %v4959, %v5554
        %v5587 = vadd.f32 %v4960, %v5555
        %v5588 = vadd.f32 %v4961, %v5556
        %v5589 = vadd.f32 %v4962, %v5557
        %v5590 = vadd.f32 %v4963, %v5558
        %s5591 = sld [smem:[#allocation2 + $0xd]]
        %v5592 = vstv %s5591
        %v5593 = vmul.f32 %v5537, %v5592
        %v5594 = vmul.f32 %v5538, %v5592
        %v5597 = vrot.slane %v5593, 1
        %v5598 = vrot.slane %v5593, 2
        %v5599 = vrot.slane %v5593, 3
        %v5600 = vrot.slane %v5593, 4
        %v5601 = vrot.slane %v5593, 5
        %v5602 = vrot.slane %v5593, 6
        %v5603 = vrot.slane %v5593, 7
        %v5604 = vrot.slane %v5594, 1
        %v5605 = vrot.slane %v5594, 2
        %v5606 = vrot.slane %v5594, 3
        %v5607 = vrot.slane %v5594, 4
        %v5608 = vrot.slane %v5594, 5
        %v5609 = vrot.slane %v5594, 6
        %v5610 = vrot.slane %v5594, 7
        %v5627 = vadd.f32 %v5000, %v5593
        %v5628 = vadd.f32 %v5001, %v5597
        %v5629 = vadd.f32 %v5002, %v5598
        %v5630 = vadd.f32 %v5003, %v5599
        %v5631 = vadd.f32 %v5004, %v5600
        %v5632 = vadd.f32 %v5005, %v5601
        %v5633 = vadd.f32 %v5006, %v5602
        %v5634 = vadd.f32 %v5007, %v5603
        %v5635 = vadd.f32 %v5008, %v5594
        %v5636 = vadd.f32 %v5009, %v5604
        %v5637 = vadd.f32 %v5010, %v5605
        %v5638 = vadd.f32 %v5011, %v5606
        %v5639 = vadd.f32 %v5012, %v5607
        %v5640 = vadd.f32 %v5013, %v5608
        %v5641 = vadd.f32 %v5014, %v5609
        %v5642 = vadd.f32 %v5015, %v5610
        %s5643 = sld [smem:[#allocation2 + $0x1e]]
        %v5644 = vstv %s5643
        %v5645 = vmul.f32 %v5537, %v5644
        %v5646 = vmul.f32 %v5538, %v5644
        %v5649 = vrot.slane %v5645, 1
        %v5650 = vrot.slane %v5645, 2
        %v5651 = vrot.slane %v5645, 3
        %v5652 = vrot.slane %v5645, 4
        %v5653 = vrot.slane %v5645, 5
        %v5654 = vrot.slane %v5645, 6
        %v5655 = vrot.slane %v5645, 7
        %v5656 = vrot.slane %v5646, 1
        %v5657 = vrot.slane %v5646, 2
        %v5658 = vrot.slane %v5646, 3
        %v5659 = vrot.slane %v5646, 4
        %v5660 = vrot.slane %v5646, 5
        %v5661 = vrot.slane %v5646, 6
        %v5662 = vrot.slane %v5646, 7
        %v5679 = vadd.f32 %v5052, %v5645
        %v5680 = vadd.f32 %v5053, %v5649
        %v5681 = vadd.f32 %v5054, %v5650
        %v5682 = vadd.f32 %v5055, %v5651
        %v5683 = vadd.f32 %v5056, %v5652
        %v5684 = vadd.f32 %v5057, %v5653
        %v5685 = vadd.f32 %v5058, %v5654
        %v5686 = vadd.f32 %v5059, %v5655
        %v5687 = vadd.f32 %v5060, %v5646
        %v5688 = vadd.f32 %v5061, %v5656
        %v5689 = vadd.f32 %v5062, %v5657
        %v5690 = vadd.f32 %v5063, %v5658
        %v5691 = vadd.f32 %v5064, %v5659
        %v5692 = vadd.f32 %v5065, %v5660
        %v5693 = vadd.f32 %v5066, %v5661
        %v5694 = vadd.f32 %v5067, %v5662
        %s5695 = sld [smem:[#allocation2 + $0x1f]]
        %v5696 = vstv %s5695
        %v5697 = vmul.f32 %v5537, %v5696
        %v5698 = vmul.f32 %v5538, %v5696
        %v5701 = vrot.slane %v5697, 1
        %v5702 = vrot.slane %v5697, 2
        %v5703 = vrot.slane %v5697, 3
        %v5704 = vrot.slane %v5697, 4
        %v5705 = vrot.slane %v5697, 5
        %v5706 = vrot.slane %v5697, 6
        %v5707 = vrot.slane %v5697, 7
        %v5708 = vrot.slane %v5698, 1
        %v5709 = vrot.slane %v5698, 2
        %v5710 = vrot.slane %v5698, 3
        %v5711 = vrot.slane %v5698, 4
        %v5712 = vrot.slane %v5698, 5
        %v5713 = vrot.slane %v5698, 6
        %v5714 = vrot.slane %v5698, 7
        %v5731 = vadd.f32 %v5104, %v5697
        %v5732 = vadd.f32 %v5105, %v5701
        %v5733 = vadd.f32 %v5106, %v5702
        %v5734 = vadd.f32 %v5107, %v5703
        %v5735 = vadd.f32 %v5108, %v5704
        %v5736 = vadd.f32 %v5109, %v5705
        %v5737 = vadd.f32 %v5110, %v5706
        %v5738 = vadd.f32 %v5111, %v5707
        %v5739 = vadd.f32 %v5112, %v5698
        %v5740 = vadd.f32 %v5113, %v5708
        %v5741 = vadd.f32 %v5114, %v5709
        %v5742 = vadd.f32 %v5115, %v5710
        %v5743 = vadd.f32 %v5116, %v5711
        %v5744 = vadd.f32 %v5117, %v5712
        %v5745 = vadd.f32 %v5118, %v5713
        %v5746 = vadd.f32 %v5119, %v5714
        %v5749 = vrot.slane %v5537, 1
        %v5750 = vrot.slane %v5537, 2
        %v5751 = vrot.slane %v5537, 3
        %v5752 = vrot.slane %v5537, 4
        %v5753 = vrot.slane %v5537, 5
        %v5754 = vrot.slane %v5537, 6
        %v5755 = vrot.slane %v5537, 7
        %v5756 = vrot.slane %v5538, 1
        %v5757 = vrot.slane %v5538, 2
        %v5758 = vrot.slane %v5538, 3
        %v5759 = vrot.slane %v5538, 4
        %v5760 = vrot.slane %v5538, 5
        %v5761 = vrot.slane %v5538, 6
        %v5762 = vrot.slane %v5538, 7
        %v5779 = vadd.f32 %v5152, %v5537
        %v5780 = vadd.f32 %v5153, %v5749
        %v5781 = vadd.f32 %v5154, %v5750
        %v5782 = vadd.f32 %v5155, %v5751
        %v5783 = vadd.f32 %v5156, %v5752
        %v5784 = vadd.f32 %v5157, %v5753
        %v5785 = vadd.f32 %v5158, %v5754
        %v5786 = vadd.f32 %v5159, %v5755
        %v5787 = vadd.f32 %v5160, %v5538
        %v5788 = vadd.f32 %v5161, %v5756
        %v5789 = vadd.f32 %v5162, %v5757
        %v5790 = vadd.f32 %v5163, %v5758
        %v5791 = vadd.f32 %v5164, %v5759
        %v5792 = vadd.f32 %v5165, %v5760
        %v5793 = vadd.f32 %v5166, %v5761
        %v5794 = vadd.f32 %v5167, %v5762
        %5795 = vrot.lane.b32.xlu0 %v1592, 7
        %v5796 = vpop.permute.xlu0 %5795
        %5797 = vrot.lane.b32.xlu0 %v1593, 7
        %v5798 = vpop.permute.xlu0 %5797
        %5799 = vrot.lane.b32.xlu0 %v1594, 7
        %v5800 = vpop.permute.xlu0 %5799
        %5801 = vrot.lane.b32.xlu0 %v1595, 7
        %v5802 = vpop.permute.xlu0 %5801
        %5803 = vrot.lane.b32.xlu0 %v1596, 7
        %v5804 = vpop.permute.xlu0 %5803
        %5805 = vrot.lane.b32.xlu0 %v1597, 7
        %v5806 = vpop.permute.xlu0 %5805
        %5807 = vrot.lane.b32.xlu0 %v1598, 7
        %v5808 = vpop.permute.xlu0 %5807
        %5809 = vrot.lane.b32.xlu0 %v1599, 7
        %v5810 = vpop.permute.xlu0 %5809
        %5811 = vrot.lane.b32.xlu0 %v1600, 7
        %v5812 = vpop.permute.xlu0 %5811
        %5813 = vrot.lane.b32.xlu0 %v1601, 7
        %v5814 = vpop.permute.xlu0 %5813
        %5815 = vrot.lane.b32.xlu0 %v1602, 7
        %v5816 = vpop.permute.xlu0 %5815
        %5817 = vrot.lane.b32.xlu0 %v1603, 7
        %v5818 = vpop.permute.xlu0 %5817
        %5819 = vrot.lane.b32.xlu0 %v1604, 7
        %v5820 = vpop.permute.xlu0 %5819
        %5821 = vrot.lane.b32.xlu0 %v1605, 7
        %v5822 = vpop.permute.xlu0 %5821
        %5823 = vrot.lane.b32.xlu0 %v1606, 7
        %v5824 = vpop.permute.xlu0 %5823
        %5825 = vrot.lane.b32.xlu0 %v1607, 7
        %v5826 = vpop.permute.xlu0 %5825
        %5827 = vrot.lane.b32.xlu0 %v1608, 7
        %v5828 = vpop.permute.xlu0 %5827
        %5829 = vrot.lane.b32.xlu0 %v1609, 7
        %v5830 = vpop.permute.xlu0 %5829
        %5831 = vrot.lane.b32.xlu0 %v1610, 7
        %v5832 = vpop.permute.xlu0 %5831
        %5833 = vrot.lane.b32.xlu0 %v1611, 7
        %v5834 = vpop.permute.xlu0 %5833
        %5835 = vrot.lane.b32.xlu0 %v1612, 7
        %v5836 = vpop.permute.xlu0 %5835
        %5837 = vrot.lane.b32.xlu0 %v1613, 7
        %v5838 = vpop.permute.xlu0 %5837
        %5839 = vrot.lane.b32.xlu0 %v1614, 7
        %v5840 = vpop.permute.xlu0 %5839
        %5841 = vrot.lane.b32.xlu0 %v1615, 7
        %v5842 = vpop.permute.xlu0 %5841
        %5843 = vrot.lane.b32.xlu0 %v1616, 7
        %v5844 = vpop.permute.xlu0 %5843
        %5845 = vrot.lane.b32.xlu0 %v1617, 7
        %v5846 = vpop.permute.xlu0 %5845
        %5847 = vrot.lane.b32.xlu0 %v1618, 7
        %v5848 = vpop.permute.xlu0 %5847
        %5849 = vrot.lane.b32.xlu0 %v1619, 7
        %v5850 = vpop.permute.xlu0 %5849
        %5851 = vrot.lane.b32.xlu0 %v1620, 7
        %v5852 = vpop.permute.xlu0 %5851
        %5853 = vrot.lane.b32.xlu0 %v1621, 7
        %v5854 = vpop.permute.xlu0 %5853
        %5855 = vrot.lane.b32.xlu0 %v1622, 7
        %v5856 = vpop.permute.xlu0 %5855
        %5857 = vrot.lane.b32.xlu0 %v1623, 7
        %v5858 = vpop.permute.xlu0 %5857
        %5859 = vrot.lane.b32.xlu0 %v1624, 7
        %v5860 = vpop.permute.xlu0 %5859
        %5861 = vrot.lane.b32.xlu0 %v1625, 7
        %v5862 = vpop.permute.xlu0 %5861
        %5863 = vrot.lane.b32.xlu0 %v1626, 7
        %v5864 = vpop.permute.xlu0 %5863
        %5865 = vrot.lane.b32.xlu0 %v1627, 7
        %v5866 = vpop.permute.xlu0 %5865
        %5867 = vrot.lane.b32.xlu0 %v1628, 7
        %v5868 = vpop.permute.xlu0 %5867
        %5869 = vrot.lane.b32.xlu0 %v1629, 7
        %v5870 = vpop.permute.xlu0 %5869
        %5871 = vrot.lane.b32.xlu0 %v1630, 7
        %v5872 = vpop.permute.xlu0 %5871
        %5873 = vrot.lane.b32.xlu0 %v1631, 7
        %v5874 = vpop.permute.xlu0 %5873
        %5875 = vrot.lane.b32.xlu0 %v1632, 7
        %v5876 = vpop.permute.xlu0 %5875
        %5877 = vrot.lane.b32.xlu0 %v1633, 7
        %v5878 = vpop.permute.xlu0 %5877
        %5879 = vrot.lane.b32.xlu0 %v1634, 7
        %v5880 = vpop.permute.xlu0 %5879
        %5881 = vrot.lane.b32.xlu0 %v1635, 7
        %v5882 = vpop.permute.xlu0 %5881
        %5883 = vrot.lane.b32.xlu0 %v1636, 7
        %v5884 = vpop.permute.xlu0 %5883
        %5885 = vrot.lane.b32.xlu0 %v1637, 7
        %v5886 = vpop.permute.xlu0 %5885
        %5887 = vrot.lane.b32.xlu0 %v1638, 7
        %v5888 = vpop.permute.xlu0 %5887
        %5889 = vrot.lane.b32.xlu0 %v1639, 7
        %v5890 = vpop.permute.xlu0 %5889
        %5891 = vrot.lane.b32.xlu0 %v1640, 7
        %v5892 = vpop.permute.xlu0 %5891
        %5893 = vrot.lane.b32.xlu0 %v1641, 7
        %v5894 = vpop.permute.xlu0 %5893
        %5895 = vrot.lane.b32.xlu0 %v1642, 7
        %v5896 = vpop.permute.xlu0 %5895
        %5897 = vrot.lane.b32.xlu0 %v1643, 7
        %v5898 = vpop.permute.xlu0 %5897
        %5899 = vrot.lane.b32.xlu0 %v1644, 7
        %v5900 = vpop.permute.xlu0 %5899
        %5901 = vrot.lane.b32.xlu0 %v1645, 7
        %v5902 = vpop.permute.xlu0 %5901
        %5903 = vrot.lane.b32.xlu0 %v1646, 7
        %v5904 = vpop.permute.xlu0 %5903
        %5905 = vrot.lane.b32.xlu0 %v1647, 7
        %v5906 = vpop.permute.xlu0 %5905
        %5907 = vrot.lane.b32.xlu0 %v1648, 7
        %v5908 = vpop.permute.xlu0 %5907
        %5909 = vrot.lane.b32.xlu0 %v1649, 7
        %v5910 = vpop.permute.xlu0 %5909
        %5911 = vrot.lane.b32.xlu0 %v1650, 7
        %v5912 = vpop.permute.xlu0 %5911
        %5913 = vrot.lane.b32.xlu0 %v1651, 7
        %v5914 = vpop.permute.xlu0 %5913
        %5915 = vrot.lane.b32.xlu0 %v1652, 7
        %v5916 = vpop.permute.xlu0 %5915
        %5917 = vrot.lane.b32.xlu0 %v1653, 7
        %v5918 = vpop.permute.xlu0 %5917
        %5919 = vrot.lane.b32.xlu0 %v1654, 7
        %v5920 = vpop.permute.xlu0 %5919
        %5921 = vrot.lane.b32.xlu0 %v1655, 7
        %v5922 = vpop.permute.xlu0 %5921
        %v5923 = vmul.f32 %v992, %v5796
        %v5924 = vmul.f32 %v993, %v5798
        %v5925 = vmul.f32 %v994, %v5800
        %v5926 = vmul.f32 %v995, %v5802
        %v5927 = vmul.f32 %v996, %v5804
        %v5928 = vmul.f32 %v997, %v5806
        %v5929 = vmul.f32 %v998, %v5808
        %v5930 = vmul.f32 %v999, %v5810
        %v5931 = vmul.f32 %v1000, %v5812
        %v5932 = vmul.f32 %v1001, %v5814
        %v5933 = vmul.f32 %v1002, %v5816
        %v5934 = vmul.f32 %v1003, %v5818
        %v5935 = vmul.f32 %v1004, %v5820
        %v5936 = vmul.f32 %v1005, %v5822
        %v5937 = vmul.f32 %v1006, %v5824
        %v5938 = vmul.f32 %v1007, %v5826
        %v5939 = vmul.f32 %v1008, %v5828
        %v5940 = vmul.f32 %v1009, %v5830
        %v5941 = vmul.f32 %v1010, %v5832
        %v5942 = vmul.f32 %v1011, %v5834
        %v5943 = vmul.f32 %v1012, %v5836
        %v5944 = vmul.f32 %v1013, %v5838
        %v5945 = vmul.f32 %v1014, %v5840
        %v5946 = vmul.f32 %v1015, %v5842
        %v5947 = vmul.f32 %v1016, %v5844
        %v5948 = vmul.f32 %v1017, %v5846
        %v5949 = vmul.f32 %v1018, %v5848
        %v5950 = vmul.f32 %v1019, %v5850
        %v5951 = vmul.f32 %v1020, %v5852
        %v5952 = vmul.f32 %v1021, %v5854
        %v5953 = vmul.f32 %v1022, %v5856
        %v5954 = vmul.f32 %v1023, %v5858
        %v5955 = vmul.f32 %v1024, %v5860
        %v5956 = vmul.f32 %v1025, %v5862
        %v5957 = vmul.f32 %v1026, %v5864
        %v5958 = vmul.f32 %v1027, %v5866
        %v5959 = vmul.f32 %v1028, %v5868
        %v5960 = vmul.f32 %v1029, %v5870
        %v5961 = vmul.f32 %v1030, %v5872
        %v5962 = vmul.f32 %v1031, %v5874
        %v5963 = vmul.f32 %v1032, %v5876
        %v5964 = vmul.f32 %v1033, %v5878
        %v5965 = vmul.f32 %v1034, %v5880
        %v5966 = vmul.f32 %v1035, %v5882
        %v5967 = vmul.f32 %v1036, %v5884
        %v5968 = vmul.f32 %v1037, %v5886
        %v5969 = vmul.f32 %v1038, %v5888
        %v5970 = vmul.f32 %v1039, %v5890
        %v5971 = vmul.f32 %v1040, %v5892
        %v5972 = vmul.f32 %v1041, %v5894
        %v5973 = vmul.f32 %v1042, %v5896
        %v5974 = vmul.f32 %v1043, %v5898
        %v5975 = vmul.f32 %v1044, %v5900
        %v5976 = vmul.f32 %v1045, %v5902
        %v5977 = vmul.f32 %v1046, %v5904
        %v5978 = vmul.f32 %v1047, %v5906
        %v5979 = vmul.f32 %v1048, %v5908
        %v5980 = vmul.f32 %v1049, %v5910
        %v5981 = vmul.f32 %v1050, %v5912
        %v5982 = vmul.f32 %v1051, %v5914
        %v5983 = vmul.f32 %v1052, %v5916
        %v5984 = vmul.f32 %v1053, %v5918
        %v5985 = vmul.f32 %v1054, %v5920
        %v5986 = vmul.f32 %v1055, %v5922
        %v5987 = vadd.f32 %v5923, %v5924
        %v5988 = vadd.f32 %v5987, %v5925
        %v5989 = vadd.f32 %v5988, %v5926
        %v5990 = vrot.slane %v5989, 4
        %v5991 = vadd.f32 %v5989, %v5990
        %v5992 = vrot.slane %v5991, 2
        %v5993 = vadd.f32 %v5991, %v5992
        %v5994 = vrot.slane %v5993, 1
        %v5995 = vadd.f32 %v5993, %v5994
        %v5996 = vadd.f32 %v5927, %v5928
        %v5997 = vadd.f32 %v5996, %v5929
        %v5998 = vadd.f32 %v5997, %v5930
        %v5999 = vrot.slane %v5998, 4
        %v6000 = vadd.f32 %v5998, %v5999
        %v6001 = vrot.slane %v6000, 2
        %v6002 = vadd.f32 %v6000, %v6001
        %v6003 = vrot.slane %v6002, 1
        %v6004 = vadd.f32 %v6002, %v6003
        %v6005 = vadd.f32 %v5931, %v5932
        %v6006 = vadd.f32 %v6005, %v5933
        %v6007 = vadd.f32 %v6006, %v5934
        %v6008 = vrot.slane %v6007, 4
        %v6009 = vadd.f32 %v6007, %v6008
        %v6010 = vrot.slane %v6009, 2
        %v6011 = vadd.f32 %v6009, %v6010
        %v6012 = vrot.slane %v6011, 1
        %v6013 = vadd.f32 %v6011, %v6012
        %v6014 = vadd.f32 %v5935, %v5936
        %v6015 = vadd.f32 %v6014, %v5937
        %v6016 = vadd.f32 %v6015, %v5938
        %v6017 = vrot.slane %v6016, 4
        %v6018 = vadd.f32 %v6016, %v6017
        %v6019 = vrot.slane %v6018, 2
        %v6020 = vadd.f32 %v6018, %v6019
        %v6021 = vrot.slane %v6020, 1
        %v6022 = vadd.f32 %v6020, %v6021
        %v6023 = vadd.f32 %v5939, %v5940
        %v6024 = vadd.f32 %v6023, %v5941
        %v6025 = vadd.f32 %v6024, %v5942
        %v6026 = vrot.slane %v6025, 4
        %v6027 = vadd.f32 %v6025, %v6026
        %v6028 = vrot.slane %v6027, 2
        %v6029 = vadd.f32 %v6027, %v6028
        %v6030 = vrot.slane %v6029, 1
        %v6031 = vadd.f32 %v6029, %v6030
        %v6032 = vadd.f32 %v5943, %v5944
        %v6033 = vadd.f32 %v6032, %v5945
        %v6034 = vadd.f32 %v6033, %v5946
        %v6035 = vrot.slane %v6034, 4
        %v6036 = vadd.f32 %v6034, %v6035
        %v6037 = vrot.slane %v6036, 2
        %v6038 = vadd.f32 %v6036, %v6037
        %v6039 = vrot.slane %v6038, 1
        %v6040 = vadd.f32 %v6038, %v6039
        %v6041 = vadd.f32 %v5947, %v5948
        %v6042 = vadd.f32 %v6041, %v5949
        %v6043 = vadd.f32 %v6042, %v5950
        %v6044 = vrot.slane %v6043, 4
        %v6045 = vadd.f32 %v6043, %v6044
        %v6046 = vrot.slane %v6045, 2
        %v6047 = vadd.f32 %v6045, %v6046
        %v6048 = vrot.slane %v6047, 1
        %v6049 = vadd.f32 %v6047, %v6048
        %v6050 = vadd.f32 %v5951, %v5952
        %v6051 = vadd.f32 %v6050, %v5953
        %v6052 = vadd.f32 %v6051, %v5954
        %v6053 = vrot.slane %v6052, 4
        %v6054 = vadd.f32 %v6052, %v6053
        %v6055 = vrot.slane %v6054, 2
        %v6056 = vadd.f32 %v6054, %v6055
        %v6057 = vrot.slane %v6056, 1
        %v6058 = vadd.f32 %v6056, %v6057
        %v6059 = vadd.f32 %v5955, %v5956
        %v6060 = vadd.f32 %v6059, %v5957
        %v6061 = vadd.f32 %v6060, %v5958
        %v6062 = vrot.slane %v6061, 4
        %v6063 = vadd.f32 %v6061, %v6062
        %v6064 = vrot.slane %v6063, 2
        %v6065 = vadd.f32 %v6063, %v6064
        %v6066 = vrot.slane %v6065, 1
        %v6067 = vadd.f32 %v6065, %v6066
        %v6068 = vadd.f32 %v5959, %v5960
        %v6069 = vadd.f32 %v6068, %v5961
        %v6070 = vadd.f32 %v6069, %v5962
        %v6071 = vrot.slane %v6070, 4
        %v6072 = vadd.f32 %v6070, %v6071
        %v6073 = vrot.slane %v6072, 2
        %v6074 = vadd.f32 %v6072, %v6073
        %v6075 = vrot.slane %v6074, 1
        %v6076 = vadd.f32 %v6074, %v6075
        %v6077 = vadd.f32 %v5963, %v5964
        %v6078 = vadd.f32 %v6077, %v5965
        %v6079 = vadd.f32 %v6078, %v5966
        %v6080 = vrot.slane %v6079, 4
        %v6081 = vadd.f32 %v6079, %v6080
        %v6082 = vrot.slane %v6081, 2
        %v6083 = vadd.f32 %v6081, %v6082
        %v6084 = vrot.slane %v6083, 1
        %v6085 = vadd.f32 %v6083, %v6084
        %v6086 = vadd.f32 %v5967, %v5968
        %v6087 = vadd.f32 %v6086, %v5969
        %v6088 = vadd.f32 %v6087, %v5970
        %v6089 = vrot.slane %v6088, 4
        %v6090 = vadd.f32 %v6088, %v6089
        %v6091 = vrot.slane %v6090, 2
        %v6092 = vadd.f32 %v6090, %v6091
        %v6093 = vrot.slane %v6092, 1
        %v6094 = vadd.f32 %v6092, %v6093
        %v6095 = vadd.f32 %v5971, %v5972
        %v6096 = vadd.f32 %v6095, %v5973
        %v6097 = vadd.f32 %v6096, %v5974
        %v6098 = vrot.slane %v6097, 4
        %v6099 = vadd.f32 %v6097, %v6098
        %v6100 = vrot.slane %v6099, 2
        %v6101 = vadd.f32 %v6099, %v6100
        %v6102 = vrot.slane %v6101, 1
        %v6103 = vadd.f32 %v6101, %v6102
        %v6104 = vadd.f32 %v5975, %v5976
        %v6105 = vadd.f32 %v6104, %v5977
        %v6106 = vadd.f32 %v6105, %v5978
        %v6107 = vrot.slane %v6106, 4
        %v6108 = vadd.f32 %v6106, %v6107
        %v6109 = vrot.slane %v6108, 2
        %v6110 = vadd.f32 %v6108, %v6109
        %v6111 = vrot.slane %v6110, 1
        %v6112 = vadd.f32 %v6110, %v6111
        %v6113 = vadd.f32 %v5979, %v5980
        %v6114 = vadd.f32 %v6113, %v5981
        %v6115 = vadd.f32 %v6114, %v5982
        %v6116 = vrot.slane %v6115, 4
        %v6117 = vadd.f32 %v6115, %v6116
        %v6118 = vrot.slane %v6117, 2
        %v6119 = vadd.f32 %v6117, %v6118
        %v6120 = vrot.slane %v6119, 1
        %v6121 = vadd.f32 %v6119, %v6120
        %v6122 = vadd.f32 %v5983, %v5984
        %v6123 = vadd.f32 %v6122, %v5985
        %v6124 = vadd.f32 %v6123, %v5986
        %v6125 = vrot.slane %v6124, 4
        %v6126 = vadd.f32 %v6124, %v6125
        %v6127 = vrot.slane %v6126, 2
        %v6128 = vadd.f32 %v6126, %v6127
        %v6129 = vrot.slane %v6128, 1
        %v6130 = vadd.f32 %v6128, %v6129
        %vm6131 = vcmp.ge.s32.totalorder %v1657, 7
        %v6148 = vsel %vm2379, %v6004, %v5995
        %v6149 = vsel %vm2381, %v6013, %v6148
        %v6150 = vsel %vm2383, %v6022, %v6149
        %v6151 = vsel %vm2385, %v6031, %v6150
        %v6152 = vsel %vm2387, %v6040, %v6151
        %v6153 = vsel %vm2389, %v6049, %v6152
        %v6154 = vsel %vm2391, %v6058, %v6153
        %v6155 = vsel %vm2379, %v6076, %v6067
        %v6156 = vsel %vm2381, %v6085, %v6155
        %v6157 = vsel %vm2383, %v6094, %v6156
        %v6158 = vsel %vm2385, %v6103, %v6157
        %v6159 = vsel %vm2387, %v6112, %v6158
        %v6160 = vsel %vm2389, %v6121, %v6159
        %v6161 = vsel %vm2391, %v6130, %v6160
        %v6164 = vsel %vm6131, %v6154, 0.0
        %v6165 = vsel %vm6131, %v6161, 0.0
        %s6166 = sld [smem:[#allocation2 + $0xe]]
        %v6167 = vstv %s6166
        %v6168 = vmul.f32 %v6164, %v6167
        %v6169 = vmul.f32 %v6165, %v6167
        %v6172 = vrot.slane %v6168, 1
        %v6173 = vrot.slane %v6168, 2
        %v6174 = vrot.slane %v6168, 3
        %v6175 = vrot.slane %v6168, 4
        %v6176 = vrot.slane %v6168, 5
        %v6177 = vrot.slane %v6168, 6
        %v6178 = vrot.slane %v6168, 7
        %v6179 = vrot.slane %v6169, 1
        %v6180 = vrot.slane %v6169, 2
        %v6181 = vrot.slane %v6169, 3
        %v6182 = vrot.slane %v6169, 4
        %v6183 = vrot.slane %v6169, 5
        %v6184 = vrot.slane %v6169, 6
        %v6185 = vrot.slane %v6169, 7
        %v6202 = vadd.f32 %v5575, %v6168
        %v6203 = vadd.f32 %v5576, %v6172
        %v6204 = vadd.f32 %v5577, %v6173
        %v6205 = vadd.f32 %v5578, %v6174
        %v6206 = vadd.f32 %v5579, %v6175
        %v6207 = vadd.f32 %v5580, %v6176
        %v6208 = vadd.f32 %v5581, %v6177
        %v6209 = vadd.f32 %v5582, %v6178
        %v6210 = vadd.f32 %v5583, %v6169
        %v6211 = vadd.f32 %v5584, %v6179
        %v6212 = vadd.f32 %v5585, %v6180
        %v6213 = vadd.f32 %v5586, %v6181
        %v6214 = vadd.f32 %v5587, %v6182
        %v6215 = vadd.f32 %v5588, %v6183
        %v6216 = vadd.f32 %v5589, %v6184
        %v6217 = vadd.f32 %v5590, %v6185
        %s6218 = sld [smem:[#allocation2 + $0xf]]
        %v6219 = vstv %s6218
        %v6220 = vmul.f32 %v6164, %v6219
        %v6221 = vmul.f32 %v6165, %v6219
        %v6224 = vrot.slane %v6220, 1
        %v6225 = vrot.slane %v6220, 2
        %v6226 = vrot.slane %v6220, 3
        %v6227 = vrot.slane %v6220, 4
        %v6228 = vrot.slane %v6220, 5
        %v6229 = vrot.slane %v6220, 6
        %v6230 = vrot.slane %v6220, 7
        %v6231 = vrot.slane %v6221, 1
        %v6232 = vrot.slane %v6221, 2
        %v6233 = vrot.slane %v6221, 3
        %v6234 = vrot.slane %v6221, 4
        %v6235 = vrot.slane %v6221, 5
        %v6236 = vrot.slane %v6221, 6
        %v6237 = vrot.slane %v6221, 7
        %v6254 = vadd.f32 %v5627, %v6220
        %v6255 = vadd.f32 %v5628, %v6224
        %v6256 = vadd.f32 %v5629, %v6225
        %v6257 = vadd.f32 %v5630, %v6226
        %v6258 = vadd.f32 %v5631, %v6227
        %v6259 = vadd.f32 %v5632, %v6228
        %v6260 = vadd.f32 %v5633, %v6229
        %v6261 = vadd.f32 %v5634, %v6230
        %v6262 = vadd.f32 %v5635, %v6221
        %v6263 = vadd.f32 %v5636, %v6231
        %v6264 = vadd.f32 %v5637, %v6232
        %v6265 = vadd.f32 %v5638, %v6233
        %v6266 = vadd.f32 %v5639, %v6234
        %v6267 = vadd.f32 %v5640, %v6235
        %v6268 = vadd.f32 %v5641, %v6236
        %v6269 = vadd.f32 %v5642, %v6237
        %s6270 = sld [smem:[#allocation2 + $0x20]]
        %v6271 = vstv %s6270
        %v6272 = vmul.f32 %v6164, %v6271
        %v6273 = vmul.f32 %v6165, %v6271
        %v6276 = vrot.slane %v6272, 1
        %v6277 = vrot.slane %v6272, 2
        %v6278 = vrot.slane %v6272, 3
        %v6279 = vrot.slane %v6272, 4
        %v6280 = vrot.slane %v6272, 5
        %v6281 = vrot.slane %v6272, 6
        %v6282 = vrot.slane %v6272, 7
        %v6283 = vrot.slane %v6273, 1
        %v6284 = vrot.slane %v6273, 2
        %v6285 = vrot.slane %v6273, 3
        %v6286 = vrot.slane %v6273, 4
        %v6287 = vrot.slane %v6273, 5
        %v6288 = vrot.slane %v6273, 6
        %v6289 = vrot.slane %v6273, 7
        %v6306 = vadd.f32 %v5679, %v6272
        %v6307 = vadd.f32 %v5680, %v6276
        %v6308 = vadd.f32 %v5681, %v6277
        %v6309 = vadd.f32 %v5682, %v6278
        %v6310 = vadd.f32 %v5683, %v6279
        %v6311 = vadd.f32 %v5684, %v6280
        %v6312 = vadd.f32 %v5685, %v6281
        %v6313 = vadd.f32 %v5686, %v6282
        %v6314 = vadd.f32 %v5687, %v6273
        %v6315 = vadd.f32 %v5688, %v6283
        %v6316 = vadd.f32 %v5689, %v6284
        %v6317 = vadd.f32 %v5690, %v6285
        %v6318 = vadd.f32 %v5691, %v6286
        %v6319 = vadd.f32 %v5692, %v6287
        %v6320 = vadd.f32 %v5693, %v6288
        %v6321 = vadd.f32 %v5694, %v6289
        %s6322 = sld [smem:[#allocation2 + $0x21]]
        %v6323 = vstv %s6322
        %v6324 = vmul.f32 %v6164, %v6323
        %v6325 = vmul.f32 %v6165, %v6323
        %v6328 = vrot.slane %v6324, 1
        %v6329 = vrot.slane %v6324, 2
        %v6330 = vrot.slane %v6324, 3
        %v6331 = vrot.slane %v6324, 4
        %v6332 = vrot.slane %v6324, 5
        %v6333 = vrot.slane %v6324, 6
        %v6334 = vrot.slane %v6324, 7
        %v6335 = vrot.slane %v6325, 1
        %v6336 = vrot.slane %v6325, 2
        %v6337 = vrot.slane %v6325, 3
        %v6338 = vrot.slane %v6325, 4
        %v6339 = vrot.slane %v6325, 5
        %v6340 = vrot.slane %v6325, 6
        %v6341 = vrot.slane %v6325, 7
        %v6358 = vadd.f32 %v5731, %v6324
        %v6359 = vadd.f32 %v5732, %v6328
        %v6360 = vadd.f32 %v5733, %v6329
        %v6361 = vadd.f32 %v5734, %v6330
        %v6362 = vadd.f32 %v5735, %v6331
        %v6363 = vadd.f32 %v5736, %v6332
        %v6364 = vadd.f32 %v5737, %v6333
        %v6365 = vadd.f32 %v5738, %v6334
        %v6366 = vadd.f32 %v5739, %v6325
        %v6367 = vadd.f32 %v5740, %v6335
        %v6368 = vadd.f32 %v5741, %v6336
        %v6369 = vadd.f32 %v5742, %v6337
        %v6370 = vadd.f32 %v5743, %v6338
        %v6371 = vadd.f32 %v5744, %v6339
        %v6372 = vadd.f32 %v5745, %v6340
        %v6373 = vadd.f32 %v5746, %v6341
        %v6376 = vrot.slane %v6164, 1
        %v6377 = vrot.slane %v6164, 2
        %v6378 = vrot.slane %v6164, 3
        %v6379 = vrot.slane %v6164, 4
        %v6380 = vrot.slane %v6164, 5
        %v6381 = vrot.slane %v6164, 6
        %v6382 = vrot.slane %v6164, 7
        %v6383 = vrot.slane %v6165, 1
        %v6384 = vrot.slane %v6165, 2
        %v6385 = vrot.slane %v6165, 3
        %v6386 = vrot.slane %v6165, 4
        %v6387 = vrot.slane %v6165, 5
        %v6388 = vrot.slane %v6165, 6
        %v6389 = vrot.slane %v6165, 7
        %v6406 = vadd.f32 %v5779, %v6164
        %v6407 = vadd.f32 %v5780, %v6376
        %v6408 = vadd.f32 %v5781, %v6377
        %v6409 = vadd.f32 %v5782, %v6378
        %v6410 = vadd.f32 %v5783, %v6379
        %v6411 = vadd.f32 %v5784, %v6380
        %v6412 = vadd.f32 %v5785, %v6381
        %v6413 = vadd.f32 %v5786, %v6382
        %v6414 = vadd.f32 %v5787, %v6165
        %v6415 = vadd.f32 %v5788, %v6383
        %v6416 = vadd.f32 %v5789, %v6384
        %v6417 = vadd.f32 %v5790, %v6385
        %v6418 = vadd.f32 %v5791, %v6386
        %v6419 = vadd.f32 %v5792, %v6387
        %v6420 = vadd.f32 %v5793, %v6388
        %v6421 = vadd.f32 %v5794, %v6389
        %v6438 = vrot.slane %v6203, 7
        %v6439 = vsel %vm2379, %v6438, %v6202
        %v6440 = vrot.slane %v6204, 6
        %v6441 = vsel %vm2381, %v6440, %v6439
        %v6442 = vrot.slane %v6205, 5
        %v6443 = vsel %vm2383, %v6442, %v6441
        %v6444 = vrot.slane %v6206, 4
        %v6445 = vsel %vm2385, %v6444, %v6443
        %v6446 = vrot.slane %v6207, 3
        %v6447 = vsel %vm2387, %v6446, %v6445
        %v6448 = vrot.slane %v6208, 2
        %v6449 = vsel %vm2389, %v6448, %v6447
        %v6450 = vrot.slane %v6209, 1
        %v6451 = vsel %vm2391, %v6450, %v6449
        %v6452 = vrot.slane %v6211, 7
        %v6453 = vsel %vm2379, %v6452, %v6210
        %v6454 = vrot.slane %v6212, 6
        %v6455 = vsel %vm2381, %v6454, %v6453
        %v6456 = vrot.slane %v6213, 5
        %v6457 = vsel %vm2383, %v6456, %v6455
        %v6458 = vrot.slane %v6214, 4
        %v6459 = vsel %vm2385, %v6458, %v6457
        %v6460 = vrot.slane %v6215, 3
        %v6461 = vsel %vm2387, %v6460, %v6459
        %v6462 = vrot.slane %v6216, 2
        %v6463 = vsel %vm2389, %v6462, %v6461
        %v6464 = vrot.slane %v6217, 1
        %v6465 = vsel %vm2391, %v6464, %v6463
        %6468 = vst [vmem:[%s403] sm:$0xff] %v6451
        %6469 = vst [vmem:[%s403 + $0x8] sm:$0xff] %v6465
        %v6486 = vrot.slane %v6255, 7
        %v6487 = vsel %vm2379, %v6486, %v6254
        %v6488 = vrot.slane %v6256, 6
        %v6489 = vsel %vm2381, %v6488, %v6487
        %v6490 = vrot.slane %v6257, 5
        %v6491 = vsel %vm2383, %v6490, %v6489
        %v6492 = vrot.slane %v6258, 4
        %v6493 = vsel %vm2385, %v6492, %v6491
        %v6494 = vrot.slane %v6259, 3
        %v6495 = vsel %vm2387, %v6494, %v6493
        %v6496 = vrot.slane %v6260, 2
        %v6497 = vsel %vm2389, %v6496, %v6495
        %v6498 = vrot.slane %v6261, 1
        %v6499 = vsel %vm2391, %v6498, %v6497
        %v6500 = vrot.slane %v6263, 7
        %v6501 = vsel %vm2379, %v6500, %v6262
        %v6502 = vrot.slane %v6264, 6
        %v6503 = vsel %vm2381, %v6502, %v6501
        %v6504 = vrot.slane %v6265, 5
        %v6505 = vsel %vm2383, %v6504, %v6503
        %v6506 = vrot.slane %v6266, 4
        %v6507 = vsel %vm2385, %v6506, %v6505
        %v6508 = vrot.slane %v6267, 3
        %v6509 = vsel %vm2387, %v6508, %v6507
        %v6510 = vrot.slane %v6268, 2
        %v6511 = vsel %vm2389, %v6510, %v6509
        %v6512 = vrot.slane %v6269, 1
        %v6513 = vsel %vm2391, %v6512, %v6511
        %s6516 = scalar_lea.vmem %s403, 16 [#allocation5]
        %6517 = vst [vmem:[%s6516] sm:$0xff] %v6499
        %6518 = vst [vmem:[%s6516 + $0x8] sm:$0xff] %v6513
        %v6535 = vrot.slane %v6307, 7
        %v6536 = vsel %vm2379, %v6535, %v6306
        %v6537 = vrot.slane %v6308, 6
        %v6538 = vsel %vm2381, %v6537, %v6536
        %v6539 = vrot.slane %v6309, 5
        %v6540 = vsel %vm2383, %v6539, %v6538
        %v6541 = vrot.slane %v6310, 4
        %v6542 = vsel %vm2385, %v6541, %v6540
        %v6543 = vrot.slane %v6311, 3
        %v6544 = vsel %vm2387, %v6543, %v6542
        %v6545 = vrot.slane %v6312, 2
        %v6546 = vsel %vm2389, %v6545, %v6544
        %v6547 = vrot.slane %v6313, 1
        %v6548 = vsel %vm2391, %v6547, %v6546
        %v6549 = vrot.slane %v6315, 7
        %v6550 = vsel %vm2379, %v6549, %v6314
        %v6551 = vrot.slane %v6316, 6
        %v6552 = vsel %vm2381, %v6551, %v6550
        %v6553 = vrot.slane %v6317, 5
        %v6554 = vsel %vm2383, %v6553, %v6552
        %v6555 = vrot.slane %v6318, 4
        %v6556 = vsel %vm2385, %v6555, %v6554
        %v6557 = vrot.slane %v6319, 3
        %v6558 = vsel %vm2387, %v6557, %v6556
        %v6559 = vrot.slane %v6320, 2
        %v6560 = vsel %vm2389, %v6559, %v6558
        %v6561 = vrot.slane %v6321, 1
        %v6562 = vsel %vm2391, %v6561, %v6560
        %6565 = vst [vmem:[%s410] sm:$0xff] %v6548
        %6566 = vst [vmem:[%s410 + $0x8] sm:$0xff] %v6562
        %v6583 = vrot.slane %v6359, 7
        %v6584 = vsel %vm2379, %v6583, %v6358
        %v6585 = vrot.slane %v6360, 6
        %v6586 = vsel %vm2381, %v6585, %v6584
        %v6587 = vrot.slane %v6361, 5
        %v6588 = vsel %vm2383, %v6587, %v6586
        %v6589 = vrot.slane %v6362, 4
        %v6590 = vsel %vm2385, %v6589, %v6588
        %v6591 = vrot.slane %v6363, 3
        %v6592 = vsel %vm2387, %v6591, %v6590
        %v6593 = vrot.slane %v6364, 2
        %v6594 = vsel %vm2389, %v6593, %v6592
        %v6595 = vrot.slane %v6365, 1
        %v6596 = vsel %vm2391, %v6595, %v6594
        %v6597 = vrot.slane %v6367, 7
        %v6598 = vsel %vm2379, %v6597, %v6366
        %v6599 = vrot.slane %v6368, 6
        %v6600 = vsel %vm2381, %v6599, %v6598
        %v6601 = vrot.slane %v6369, 5
        %v6602 = vsel %vm2383, %v6601, %v6600
        %v6603 = vrot.slane %v6370, 4
        %v6604 = vsel %vm2385, %v6603, %v6602
        %v6605 = vrot.slane %v6371, 3
        %v6606 = vsel %vm2387, %v6605, %v6604
        %v6607 = vrot.slane %v6372, 2
        %v6608 = vsel %vm2389, %v6607, %v6606
        %v6609 = vrot.slane %v6373, 1
        %v6610 = vsel %vm2391, %v6609, %v6608
        %s6613 = scalar_lea.vmem %s410, 16 [#allocation6]
        %6614 = vst [vmem:[%s6613] sm:$0xff] %v6596
        %6615 = vst [vmem:[%s6613 + $0x8] sm:$0xff] %v6610
        %6616 = vst [vmem:[%s417] sm:$0xff] %v6548
        %6617 = vst [vmem:[%s417 + $0x8] sm:$0xff] %v6562
        %v6618 = vld [vmem:[%s3] sm:$0xff]
        %v6635 = vrot.slane %v6407, 7
        %v6636 = vsel %vm2379, %v6635, %v6406
        %v6637 = vrot.slane %v6408, 6
        %v6638 = vsel %vm2381, %v6637, %v6636
        %v6639 = vrot.slane %v6409, 5
        %v6640 = vsel %vm2383, %v6639, %v6638
        %v6641 = vrot.slane %v6410, 4
        %v6642 = vsel %vm2385, %v6641, %v6640
        %v6643 = vrot.slane %v6411, 3
        %v6644 = vsel %vm2387, %v6643, %v6642
        %v6645 = vrot.slane %v6412, 2
        %v6646 = vsel %vm2389, %v6645, %v6644
        %v6647 = vrot.slane %v6413, 1
        %v6648 = vsel %vm2391, %v6647, %v6646
        %v6649 = vrot.slane %v6415, 7
        %v6650 = vsel %vm2379, %v6649, %v6414
        %v6651 = vrot.slane %v6416, 6
        %v6652 = vsel %vm2381, %v6651, %v6650
        %v6653 = vrot.slane %v6417, 5
        %v6654 = vsel %vm2383, %v6653, %v6652
        %v6655 = vrot.slane %v6418, 4
        %v6656 = vsel %vm2385, %v6655, %v6654
        %v6657 = vrot.slane %v6419, 3
        %v6658 = vsel %vm2387, %v6657, %v6656
        %v6659 = vrot.slane %v6420, 2
        %v6660 = vsel %vm2389, %v6659, %v6658
        %v6661 = vrot.slane %v6421, 1
        %v6662 = vsel %vm2391, %v6661, %v6660
        %vm6665 = vcmask 130048
        %v6667 = vsel %vm6665, %v6618, 0
        %6669 = vmatpush.msra.mxu0 0.0
        %6670 = vmatpush.msra.mxu0 0.0
        %6671 = vmatpush.msra.mxu0 0.0
        %6672 = vmatpush.msra.mxu0 0.0
        %6673 = vmatpush.msra.mxu0 0.0
        %6674 = vmatpush.msra.mxu0 0.0
        %6675 = vmatpush.msra.mxu0 0.0
        %6676 = vmatpush.msra.mxu0 0.0
        %6677 = vmatpush.msra.mxu0 0.0
        %6678 = vmatpush.msra.mxu0 0.0
        %6679 = vmatpush.msra.mxu0 0.0
        %6680 = vmatpush.msra.mxu0 0.0
        %6681 = vmatpush.msra.mxu0 0.0
        %6682 = vmatpush.msra.mxu0 0.0
        %6683 = vmatpush.msra.mxu0 %v6662
        %6684 = vmatpush.msra.mxu0 %v6648
        %6685 = vmatmul.f32.gmra.mxu0 %v6667
        %v6686 = vpop.f32.mrf.mxu0
        %v6687 = vadd.f32 0.0, %v6686
        %6688 = vdwg.mxu0
        %v6689 = vld [vmem:[%s4] sm:$0xff]
        %v6690 = vld [vmem:[%s4 + $0x8] sm:$0xff]
        %v6691 = vld [vmem:[%s4 + $0x10] sm:$0xff]
        %v6692 = vld [vmem:[%s4 + $0x18] sm:$0xff]
        %v6693 = vld [vmem:[%s4 + $0x20] sm:$0xff]
        %v6694 = vld [vmem:[%s4 + $0x28] sm:$0xff]
        %v6695 = vld [vmem:[%s4 + $0x30] sm:$0xff]
        %v6696 = vld [vmem:[%s4 + $0x38] sm:$0xff]
        %v6697 = vld [vmem:[%s4 + $0x40] sm:$0xff]
        %v6698 = vld [vmem:[%s4 + $0x48] sm:$0xff]
        %v6699 = vld [vmem:[%s4 + $0x50] sm:$0xff]
        %v6700 = vld [vmem:[%s4 + $0x58] sm:$0xff]
        %v6701 = vld [vmem:[%s4 + $0x60] sm:$0xff]
        %v6702 = vld [vmem:[%s4 + $0x68] sm:$0xff]
        %v6703 = vld [vmem:[%s4 + $0x70] sm:$0xff]
        %v6704 = vld [vmem:[%s4 + $0x78] sm:$0xff]
        %6705 = vmatpush.msra.mxu0 %v6704
        %6706 = vmatpush.msra.mxu0 %v6703
        %6707 = vmatpush.msra.mxu0 %v6702
        %6708 = vmatpush.msra.mxu0 %v6701
        %6709 = vmatpush.msra.mxu0 %v6700
        %6710 = vmatpush.msra.mxu0 %v6699
        %6711 = vmatpush.msra.mxu0 %v6698
        %6712 = vmatpush.msra.mxu0 %v6697
        %6713 = vmatpush.msra.mxu0 %v6696
        %6714 = vmatpush.msra.mxu0 %v6695
        %6715 = vmatpush.msra.mxu0 %v6694
        %6716 = vmatpush.msra.mxu0 %v6693
        %6717 = vmatpush.msra.mxu0 %v6692
        %6718 = vmatpush.msra.mxu0 %v6691
        %6719 = vmatpush.msra.mxu0 %v6690
        %6720 = vmatpush.msra.mxu0 %v6689
        %6721 = vmatmul.f32.gmra.mxu0 %v6687
        %v6722 = vpop.f32.mrf.mxu0
        %v6723 = vadd.f32 0.0, %v6722
        %6724 = vdwg.mxu0
        %v6725 = vxor.u32 %v6723, 2147483648
        %v6726 = vmul.f32 %v6725, 1.442695
        %v6727 = vpow.pop %v6726
        %v6728 = vadd.f32 %v6727, 1.0
        %v6729 = vrcp.pop %v6728
        %v6730 = vmul.f32 %v6728, %v6729
        %v6731 = vsub.f32 1.0, %v6730
        %v6732 = vmul.f32 %v6729, %v6731
        %v6733 = vadd.f32 %v6729, %v6732
        %vm6734 = vweird.f32 %v6728
        %vm6735 = vweird.f32 %v6729
        %vm6736 = vmor %vm6734, %vm6735
        %v6737 = vsel %vm6736, %v6729, %v6733
        %v6738 = vand.u32 2147483647, %v6728
        %vm6739 = vcmp.eq.f32.partialorder %v6738, 8.507059e+37
        %v6740 = vand.u32 %v6728, 2147483648
        %v6741 = vor.u32 1.1754944e-38, %v6740
        %v6742 = vsel %vm6739, %v6741, %v6737
        %v6743 = vmul.f32 1.0, %v6742
        %vm6744 = vcmask 523264
        %6745 = vst.msk [vmem:[%s424] sm:$0xff] %vm6744, %v6743
        %s6746 = sand.u32 %s193, 1
        %s6747 = scalar_lea.sflag [#allocation3], %s6746
        %s6748 = sand.u32 %s193, 1
        %s6749 = smul.addr %s6748, 32
        %s6750 = scalar_lea.vmem [#allocation5], %s6749
        %s6751 = sand.u32 %s31, 1
        %s6752 = scalar_lea.sflag [#allocation7], %s6751
        %s6753 = sand.u32 %s221, 1
        %s6754 = smul.addr %s6753, 32
        %s6755 = scalar_lea.vmem [#allocation6], %s6754
        %s6756 = sand.u32 %s31, 1
        %s6757 = scalar_lea.sflag [#allocation7], %s6756
        %s6758 = sand.u32 %s249, 1
        %s6759 = smul.addr %s6758, 16
        %s6760 = scalar_lea.vmem [#allocation8], %s6759
        %s6761 = sand.u32 %s277, 1
        %s6762 = scalar_lea.sflag [#allocation10], %s6761
        %s6763 = sand.u32 %s277, 1
        %s6764 = smul.addr %s6763, 8
        %s6765 = scalar_lea.vmem [#allocation9], %s6764
        // Predicated region
        $region49: #{crestereo_mf_forward.1} parent=43 // pred_check
          %p6766 = pneg %p203
        $region50: #{crestereo_mf_forward.1} parent=43 // pred_check_branch
          %6768 = sbr.rel (%p6766) target = $region52
        $region51: #{crestereo_mf_forward.1} parent=43 // pred_region
          %s6769 = smul.u32 2, %s36
          %6771 = vsyncadd %s6747, 0
          %s6772 = smul.addr %s35, 4
          %s6773 = sadd.s32 %s6769, %s6772
          %s6774 = smul.addr %s6773, 8
          %s6775 = scalar_lea.hbm %s6, %s6774
          %s6776 = sshll.u32 %s6750, 4
          %s6777 = int_to_ptr.vmem [resolvable:$true] %s6776
          %s6778 = sshll.u32 %s6775, 4
          %s6779 = int_to_ptr.hbm [resolvable:$true] %s6778
          %6784 = dma.vmem_to_hbm [thread:$0]  %s6777, 512, %s6779, %s6747, 128, 128, 8
        $region52: #{crestereo_mf_forward.1} parent=43 // pred_fallthru
          _
        // Predicated region
        $region53: #{crestereo_mf_forward.1} parent=43 // pred_check
          %p6785 = pneg %p231
        $region54: #{crestereo_mf_forward.1} parent=43 // pred_check_branch
          %6787 = sbr.rel (%p6785) target = $region56
        $region55: #{crestereo_mf_forward.1} parent=43 // pred_region
          %s6788 = smul.u32 2, %s36
          %6790 = vsyncadd %s6752, 0
          %s6791 = smul.addr %s35, 4
          %s6792 = sadd.s32 %s6788, %s6791
          %s6793 = smul.addr %s6792, 8
          %s6794 = scalar_lea.hbm %s7, %s6793
          %s6795 = sshll.u32 %s6755, 4
          %s6796 = int_to_ptr.vmem [resolvable:$true] %s6795
          %s6797 = sshll.u32 %s6794, 4
          %s6798 = int_to_ptr.hbm [resolvable:$true] %s6797
          %6803 = dma.vmem_to_hbm [thread:$0]  %s6796, 512, %s6798, %s6752, 128, 128, 8
        $region56: #{crestereo_mf_forward.1} parent=43 // pred_fallthru
          _
        // Predicated region
        $region57: #{crestereo_mf_forward.1} parent=43 // pred_check
          %p6804 = pneg %p259
        $region58: #{crestereo_mf_forward.1} parent=43 // pred_check_branch
          %6806 = sbr.rel (%p6804) target = $region60
        $region59: #{crestereo_mf_forward.1} parent=43 // pred_region
          %s6807 = smul.u32 2, %s36
          %6809 = vsyncadd %s6757, 0
          %s6810 = smul.addr %s35, 2
          %s6811 = sadd.s32 %s6807, %s6810
          %s6812 = smul.addr %s6811, 8
          %s6813 = scalar_lea.hbm %s8, %s6812
          %s6814 = sshll.u32 %s6760, 4
          %s6815 = int_to_ptr.vmem [resolvable:$true] %s6814
          %s6816 = sshll.u32 %s6813, 4
          %s6817 = int_to_ptr.hbm [resolvable:$true] %s6816
          %6822 = dma.vmem_to_hbm [thread:$0]  %s6815, 256, %s6817, %s6757, 128, 128, 8
        $region60: #{crestereo_mf_forward.1} parent=43 // pred_fallthru
          _
        // Predicated region
        $region61: #{crestereo_mf_forward.1} parent=43 // pred_check
          %p6823 = pneg %p287
        $region62: #{crestereo_mf_forward.1} parent=43 // pred_check_branch
          %6825 = sbr.rel (%p6823) target = $region64
        $region63: #{crestereo_mf_forward.1} parent=43 // pred_region
          %6827 = vsyncadd %s6762, 0
          %s6828 = sadd.s32 %s36, %s35
          %s6829 = smul.addr %s6828, 8
          %s6830 = scalar_lea.hbm %s9, %s6829
          %s6832 = sshll.u32 %s6765, 4
          %s6833 = int_to_ptr.vmem [resolvable:$true] %s6832
          %s6834 = sshll.u32 %s6830, 4
          %s6835 = int_to_ptr.hbm [resolvable:$true] %s6834
          %6837 = dma.vmem_to_hbm [thread:$0]  %s6833, 128, %s6835, %s6762
        $region64: #{crestereo_mf_forward.1} parent=43 // pred_fallthru
          _
      $region44: #{crestereo_mf_forward.1} parent=5 // pred_fallthru
        _
      %p6838 = scmp.le.s32.totalorder 2, %s26
      // Predicated region
      $region65: #{crestereo_mf_forward.1} parent=5 // pred_check
        %p6839 = pneg %p6838
      $region66: #{crestereo_mf_forward.1} parent=5 // pred_check_branch
        %6841 = sbr.rel (%p6839) target = $region68
      $region67: #{crestereo_mf_forward.1} parent=5 // pred_region
        %s6842 = ssub.s32 %s26, 2
        // Predicated region
        $region69: #{crestereo_mf_forward.1} parent=67 // pred_check
          %p6843 = pneg %p209
        $region70: #{crestereo_mf_forward.1} parent=67 // pred_check_branch
          %6845 = sbr.rel (%p6843) target = $region72
        $region71: #{crestereo_mf_forward.1} parent=67 // pred_region
          %s6846 = sand.u32 %s194, 1
          %s6847 = scalar_lea.sflag [#allocation3], %s6846
          %s6848 = sand.u32 %s194, 1
          %s6849 = smul.addr %s6848, 32
          %s6850 = scalar_lea.vmem [#allocation5], %s6849
          %6852 = dma.done %s6847, 512
        $region72: #{crestereo_mf_forward.1} parent=67 // pred_fallthru
          _
        // Predicated region
        $region73: #{crestereo_mf_forward.1} parent=67 // pred_check
          %p6853 = pneg %p237
        $region74: #{crestereo_mf_forward.1} parent=67 // pred_check_branch
          %6855 = sbr.rel (%p6853) target = $region76
        $region75: #{crestereo_mf_forward.1} parent=67 // pred_region
          %s6856 = sand.u32 %s32, 1
          %s6857 = scalar_lea.sflag [#allocation7], %s6856
          %s6858 = sand.u32 %s222, 1
          %s6859 = smul.addr %s6858, 32
          %s6860 = scalar_lea.vmem [#allocation6], %s6859
          %6862 = dma.done %s6857, 512
        $region76: #{crestereo_mf_forward.1} parent=67 // pred_fallthru
          _
        // Predicated region
        $region77: #{crestereo_mf_forward.1} parent=67 // pred_check
          %p6863 = pneg %p265
        $region78: #{crestereo_mf_forward.1} parent=67 // pred_check_branch
          %6865 = sbr.rel (%p6863) target = $region80
        $region79: #{crestereo_mf_forward.1} parent=67 // pred_region
          %s6866 = sand.u32 %s32, 1
          %s6867 = scalar_lea.sflag [#allocation7], %s6866
          %s6868 = sand.u32 %s250, 1
          %s6869 = smul.addr %s6868, 16
          %s6870 = scalar_lea.vmem [#allocation8], %s6869
          %6872 = dma.done %s6867, 256
        $region80: #{crestereo_mf_forward.1} parent=67 // pred_fallthru
          _
        // Predicated region
        $region81: #{crestereo_mf_forward.1} parent=67 // pred_check
          %p6873 = pneg %p293
        $region82: #{crestereo_mf_forward.1} parent=67 // pred_check_branch
          %6875 = sbr.rel (%p6873) target = $region84
        $region83: #{crestereo_mf_forward.1} parent=67 // pred_region
          %s6876 = sand.u32 %s278, 1
          %s6877 = scalar_lea.sflag [#allocation10], %s6876
          %s6878 = sand.u32 %s278, 1
          %s6879 = smul.addr %s6878, 8
          %s6880 = scalar_lea.vmem [#allocation9], %s6879
          %6882 = dma.done %s6877, 128
        $region84: #{crestereo_mf_forward.1} parent=67 // pred_fallthru
          _
      $region68: #{crestereo_mf_forward.1} parent=5 // pred_fallthru
        _
    $region6: #{crestereo_mf_forward.1} parent=1 // loop_footer
      %s30 = sadd.s32 1, %s26
    $region7: #{crestereo_mf_forward.1} parent=1 // loop_footer_branch
      %25 = sbr.rel target = $region3
    $region8: #{crestereo_mf_forward.1} parent=1 // loop_exit
      _
    %6883 = vsyncpa [#allocation3], 1
    %s6884 = scalar_lea.sflag [#allocation3], 1
    %6885 = vsyncpa %s6884, 1
    %6886 = vsyncpa [#allocation7], 1
    %s6887 = scalar_lea.sflag [#allocation7], 1
    %6888 = vsyncpa %s6887, 1
    %6889 = vsyncpa [#allocation10], 1
    %s6890 = scalar_lea.sflag [#allocation10], 1
    %6891 = vsyncpa %s6890, 1
    %6892 = vsyncpa [#allocation4], 1
    %s6893 = scalar_lea.sflag [#allocation4], 1
    %6894 = vsyncpa %s6893, 1

</llo_original>
